<compile_context>
chip_gen: v7x
topology: tpu7x:2x2x1
jax: 0.10.0
libtpu: 0.0.40
codegen_flags: <defaults>
</compile_context>

<pallas_src>
import functools

import jax
import jax.numpy as jnp
from jax.experimental import pallas as pl
from jax.experimental.pallas import tpu as pltpu


def _lstm_layer_kernel(hidden_dim, time_block,
                       x_ref, wx_ref, wh_ref, b_ref,
                       y_ref, h_out_ref, c_out_ref,
                       h_sc, c_sc):
    """One LSTM layer over a block of `time_block` timesteps.

    Grid = (T // time_block,); h/c carried across grid steps in VMEM scratch.
      x_ref   : (Bp, TT, D)   f32    input block (batch-major)
      wx_ref  : (D, 4H)       bf16   packed input weights  [f|g|i|o]
      wh_ref  : (H, 4H)       bf16   packed recurrent weights
      b_ref   : (1, 4H)       f32    packed bias (x-bias + h-bias)
      y_ref   : (Bp, TT, H)   f32    per-step hidden output block
      h_out   : (Bp, H)       f32    final hidden state (written at last block)
      c_out   : (Bp, H)       f32    final cell state   (written at last block)
    """
    H = hidden_dim
    tb = pl.program_id(0)

    @pl.when(tb == 0)
    def _():
        h_sc[...] = jnp.zeros_like(h_sc)
        c_sc[...] = jnp.zeros_like(c_sc)

    Bp, TT, D = x_ref.shape

    # ---- Bulk input projection for the whole time block (one MXU matmul,
    #      M = Bp*TT instead of Bp), bias added once. ----
    x_blk = x_ref[...].astype(jnp.bfloat16).reshape(Bp * TT, D)
    xp = jnp.dot(x_blk, wx_ref[...], preferred_element_type=jnp.float32)
    xp = (xp + b_ref[...]).reshape(Bp, TT, 4 * H)          # (Bp, TT, 4H) f32

    wh = wh_ref[...]                                        # (H, 4H) bf16, load once

    # ---- Sequential recurrence over the block (statically unrolled). ----
    h = h_sc[...]
    c = c_sc[...]
    for tt in range(time_block):
        z = xp[:, tt, :] + jnp.dot(h.astype(jnp.bfloat16), wh,
                                   preferred_element_type=jnp.float32)  # (Bp, 4H)
        f_t = jax.nn.sigmoid(z[:, 0 * H:1 * H])
        g_t = jnp.tanh(       z[:, 1 * H:2 * H])
        i_t = jax.nn.sigmoid(z[:, 2 * H:3 * H])
        o_t = jax.nn.sigmoid(z[:, 3 * H:4 * H])
        c = f_t * c + i_t * g_t
        h = o_t * jnp.tanh(c)
        y_ref[:, tt:tt + 1, :] = h[:, None, :]              # store into VMEM out block

    h_sc[...] = h
    c_sc[...] = c

    @pl.when(tb == pl.num_programs(0) - 1)
    def _():
        h_out_ref[...] = h
        c_out_ref[...] = c


def _pick_time_block(T):
    for cand in (32, 16, 8):
        if T % cand == 0:
            return cand
    return T  # fall back to the full sequence as one block


def _lstm_layer(x, wx_p, wh_p, b_p, H, TT):
    """x: (Bp, T, D) f32; wx_p: (D,4H) bf16; wh_p: (H,4H) bf16; b_p: (1,4H) f32."""
    Bp, T, D = x.shape
    grid = (T // TT,)
    kernel = functools.partial(_lstm_layer_kernel, H, TT)

    # TODO(synk): on v7x, add a leading "parallel" batch-tile grid axis (2nd TC) and
    # request single-buffered weight blocks for large H; not needed at these shapes.
    y, h_f, c_f = pl.pallas_call(
        kernel,
        out_shape=[
            jax.ShapeDtypeStruct((Bp, T, H), jnp.float32),
            jax.ShapeDtypeStruct((Bp, H), jnp.float32),
            jax.ShapeDtypeStruct((Bp, H), jnp.float32),
        ],
        grid_spec=pltpu.PrefetchScalarGridSpec(
            num_scalar_prefetch=0,
            grid=grid,
            in_specs=[
                pl.BlockSpec((Bp, TT, D), lambda tb: (0, tb, 0)),   # x block
                pl.BlockSpec((D, 4 * H), lambda tb: (0, 0)),        # Wx packed (const)
                pl.BlockSpec((H, 4 * H), lambda tb: (0, 0)),        # Wh packed (const)
                pl.BlockSpec((1, 4 * H), lambda tb: (0, 0)),        # bias (const)
            ],
            out_specs=[
                pl.BlockSpec((Bp, TT, H), lambda tb: (0, tb, 0)),   # y block
                pl.BlockSpec((Bp, H), lambda tb: (0, 0)),           # final h
                pl.BlockSpec((Bp, H), lambda tb: (0, 0)),           # final c
            ],
            scratch_shapes=[
                pltpu.VMEM((Bp, H), jnp.float32),   # h carry
                pltpu.VMEM((Bp, H), jnp.float32),   # c carry
            ],
        ),
        compiler_params=pltpu.CompilerParams(
            dimension_semantics=("arbitrary",)),     # time blocks are sequential
    )(x, wx_p, wh_p, b_p)
    return y, h_f, c_f


@jax.jit
def lstm_forward(x, params):
    """x: (B, T, D_in) f32. params: list of (wx (4,D_l,H), wh (4,H,H), b (4,H)).

    Returns y (B, T, H) and (h, c) each (B, num_layers, H) — PyTorch convention.
    """
    B, T, D_in = x.shape
    H = params[0][0].shape[-1]

    B_pad = max(8, ((B + 7) // 8) * 8)                  # full-sublane batch
    x_p = jnp.pad(x, ((0, B_pad - B), (0, 0), (0, 0)))  # zero rows are independent
    TT = _pick_time_block(T)

    h_list, c_list = [], []
    layer_in = x_p
    for (wx, wh, b) in params:
        D = wx.shape[1]
        # Pack per-gate weights into fused (D, 4H)/(H, 4H) bf16 matrices, [f|g|i|o].
        wx_p = jnp.transpose(wx, (1, 0, 2)).reshape(D, 4 * H).astype(jnp.bfloat16)
        wh_p = jnp.transpose(wh, (1, 0, 2)).reshape(H, 4 * H).astype(jnp.bfloat16)
        b_p = b.reshape(1, 4 * H).astype(jnp.float32)
        y, h_f, c_f = _lstm_layer(layer_in, wx_p, wh_p, b_p, H, TT)
        layer_in = y
        h_list.append(h_f[:B])
        c_list.append(c_f[:B])

    y = layer_in[:B]                       # (B, T, H)
    h = jnp.stack(h_list, axis=1)          # (B, num_layers, H)
    c = jnp.stack(c_list, axis=1)          # (B, num_layers, H)
    return y, (h, c)


def init_params(key, input_dim, hidden_dim, num_layers):
    """Deterministic synthetic init (per-gate x/h weights; x+h biases combined).

    Gate order along axis 0: 0=forget, 1=cell(g), 2=input, 3=output.
    """
    params = []
    for l in range(num_layers):
        d = input_dim if l == 0 else hidden_dim
        key, k1, k2, k3, k4 = jax.random.split(key, 5)
        wx = jax.random.normal(k1, (4, d, hidden_dim), jnp.float32) * 0.1
        wh = jax.random.normal(k2, (4, hidden_dim, hidden_dim), jnp.float32) * 0.1
        bx = jax.random.normal(k3, (4, hidden_dim), jnp.float32) * 0.1
        bh = jax.random.normal(k4, (4, hidden_dim), jnp.float32) * 0.1
        params.append((wx, wh, bx + bh))
    return params


def lstm_ref(x, params):
    """Pure-JAX f32 reference mirroring the PyTorch module's forward."""
    B, T, _ = x.shape
    L = len(params)
    H = params[0][0].shape[-1]
    h = jnp.zeros((L, B, H), jnp.float32)
    c = jnp.zeros((L, B, H), jnp.float32)
    outs = []
    for t in range(T):
        x_t = x[:, t, :]
        for l, (wx, wh, b) in enumerate(params):
            z = [x_t @ wx[g] + h[l] @ wh[g] + b[g] for g in range(4)]
            f_t = jax.nn.sigmoid(z[0])
            g_t = jnp.tanh(z[1])
            i_t = jax.nn.sigmoid(z[2])
            o_t = jax.nn.sigmoid(z[3])
            c_new = f_t * c[l] + i_t * g_t
            h_new = o_t * jnp.tanh(c_new)
            h = h.at[l].set(h_new)
            c = c.at[l].set(c_new)
            x_t = h_new
        outs.append(x_t[:, None, :])
    y = jnp.concatenate(outs, axis=1)
    return y, (jnp.transpose(h, (1, 0, 2)), jnp.transpose(c, (1, 0, 2)))


if __name__ == "__main__":
    B, T, D_IN, H, L = 2, 8, 16, 32, 2
    key = jax.random.PRNGKey(0)
    kx, kp = jax.random.split(key)
    x = jax.random.normal(kx, (B, T, D_IN), jnp.float32)
    params = init_params(kp, D_IN, H, L)

    y, (h, c) = lstm_forward(x, params)
    jax.block_until_ready((y, h, c))

    y_r, (h_r, c_r) = lstm_ref(x, params)
    assert y.shape == (B, T, H) and h.shape == (B, L, H) and c.shape == (B, L, H)
    # bf16 weights in the kernel vs f32 reference -> modest tolerance.
    assert jnp.allclose(y, y_r, atol=2e-2, rtol=2e-2)
    assert jnp.allclose(h, h_r, atol=2e-2, rtol=2e-2)
    assert jnp.allclose(c, c_r, atol=2e-2, rtol=2e-2)
    print("KERNEL_OK")
</pallas_src>

<mosaic_0001>
module attributes {stable_mosaic.version = 11 : i64} {
  func.func @_lstm_layer_kernel(%arg0: i32, %arg1: memref<8x8x32xf32, #tpu.memory_space<vmem>>, %arg2: memref<32x128xbf16, #tpu.memory_space<vmem>>, %arg3: memref<32x128xbf16, #tpu.memory_space<vmem>>, %arg4: memref<1x128xf32, #tpu.memory_space<vmem>>, %arg5: memref<8x8x32xf32, #tpu.memory_space<vmem>>, %arg6: memref<8x32xf32, #tpu.memory_space<vmem>>, %arg7: memref<8x32xf32, #tpu.memory_space<vmem>>, %arg8: memref<8x32xf32, #tpu.memory_space<vmem>>, %arg9: memref<8x32xf32, #tpu.memory_space<vmem>>) attributes {dimension_semantics = [#tpu.dimension_semantics<arbitrary>], iteration_bounds = array<i64: 1>, scalar_prefetch = 0 : i64, scratch_operands = 2 : i64, tpu.core_type = #tpu.core_type<tc>, window_params = [{transform_indices = @transform_0, window_bounds = array<i64: 8, 8, 32>}, {pipeline_mode = #tpu.pipeline_mode<synchronous>, transform_indices = @transform_1, window_bounds = array<i64: 32, 128>}, {pipeline_mode = #tpu.pipeline_mode<synchronous>, transform_indices = @transform_2, window_bounds = array<i64: 32, 128>}, {pipeline_mode = #tpu.pipeline_mode<synchronous>, transform_indices = @transform_3, window_bounds = array<i64: 1, 128>}, {transform_indices = @transform_4, window_bounds = array<i64: 8, 8, 32>}, {pipeline_mode = #tpu.pipeline_mode<synchronous>, transform_indices = @transform_5, window_bounds = array<i64: 8, 32>}, {pipeline_mode = #tpu.pipeline_mode<synchronous>, transform_indices = @transform_6, window_bounds = array<i64: 8, 32>}]} {
    %c0_i32 = arith.constant 0 : i32
    %0 = arith.cmpi eq, %arg0, %c0_i32 : i32
    %1 = arith.extui %0 : i1 to i32
    %c0_i32_0 = arith.constant 0 : i32
    %2 = arith.cmpi ne, %1, %c0_i32_0 : i32
    scf.if %2 {
      %cst_68 = arith.constant 0.000000e+00 : f32
      %276 = vector.broadcast %cst_68 : f32 to vector<8x32xf32>
      %c0_69 = arith.constant 0 : index
      %c0_70 = arith.constant 0 : index
      %277 = vector.load %arg8[%c0_69, %c0_70] : memref<8x32xf32, #tpu.memory_space<vmem>>, vector<8x32xf32>
      tpu.vector_store %arg8[%c0_69, %c0_70], %276 {strides = array<i32>} : memref<8x32xf32, #tpu.memory_space<vmem>>, vector<8x32xf32>,
      %cst_71 = arith.constant 0.000000e+00 : f32
      %278 = vector.broadcast %cst_71 : f32 to vector<8x32xf32>
      %c0_72 = arith.constant 0 : index
      %c0_73 = arith.constant 0 : index
      %279 = vector.load %arg9[%c0_72, %c0_73] : memref<8x32xf32, #tpu.memory_space<vmem>>, vector<8x32xf32>
      tpu.vector_store %arg9[%c0_72, %c0_73], %278 {strides = array<i32>} : memref<8x32xf32, #tpu.memory_space<vmem>>, vector<8x32xf32>,
    } else {
    }
    %c0 = arith.constant 0 : index
    %c0_1 = arith.constant 0 : index
    %c0_2 = arith.constant 0 : index
    %3 = vector.load %arg1[%c0, %c0_1, %c0_2] : memref<8x8x32xf32, #tpu.memory_space<vmem>>, vector<8x8x32xf32>
    %4 = arith.truncf %3 : vector<8x8x32xf32> to vector<8x8x32xbf16>
    %5 = vector.shape_cast %4 : vector<8x8x32xbf16> to vector<64x32xbf16>
    %c0_3 = arith.constant 0 : index
    %c0_4 = arith.constant 0 : index
    %6 = vector.load %arg2[%c0_3, %c0_4] : memref<32x128xbf16, #tpu.memory_space<vmem>>, vector<32x128xbf16>
    %cst = arith.constant dense<0.000000e+00> : vector<64x128xf32>
    %7 = tpu.matmul %5, %6, %cst {dimension_numbers = #tpu.dot_dimension_numbers<[1], [0], [0], [1], [0, 0, 1, 1], [], []>} : vector<64x32xbf16>, vector<32x128xbf16>, vector<64x128xf32> -> vector<64x128xf32>
    %c0_5 = arith.constant 0 : index
    %c0_6 = arith.constant 0 : index
    %8 = vector.load %arg4[%c0_5, %c0_6] : memref<1x128xf32, #tpu.memory_space<vmem>>, vector<1x128xf32>
    %9 = vector.broadcast %8 : vector<1x128xf32> to vector<64x128xf32>
    %10 = arith.addf %7, %9 : vector<64x128xf32>
    %11 = vector.shape_cast %10 : vector<64x128xf32> to vector<8x8x128xf32>
    %c0_7 = arith.constant 0 : index
    %c0_8 = arith.constant 0 : index
    %12 = vector.load %arg3[%c0_7, %c0_8] : memref<32x128xbf16, #tpu.memory_space<vmem>>, vector<32x128xbf16>
    %c0_9 = arith.constant 0 : index
    %c0_10 = arith.constant 0 : index
    %13 = vector.load %arg8[%c0_9, %c0_10] : memref<8x32xf32, #tpu.memory_space<vmem>>, vector<8x32xf32>
    %c0_11 = arith.constant 0 : index
    %c0_12 = arith.constant 0 : index
    %14 = vector.load %arg9[%c0_11, %c0_12] : memref<8x32xf32, #tpu.memory_space<vmem>>, vector<8x32xf32>
    %15 = vector.extract_strided_slice %11 {offsets = [0, 0, 0], sizes = [8, 1, 128], strides = [1, 1, 1]} : vector<8x8x128xf32> to vector<8x1x128xf32>
    %16 = vector.shape_cast %15 : vector<8x1x128xf32> to vector<8x128xf32>
    %17 = arith.truncf %13 : vector<8x32xf32> to vector<8x32xbf16>
    %cst_13 = arith.constant dense<0.000000e+00> : vector<8x128xf32>
    %18 = tpu.matmul %17, %12, %cst_13 {dimension_numbers = #tpu.dot_dimension_numbers<[1], [0], [0], [1], [0, 0, 1, 1], [], []>} : vector<8x32xbf16>, vector<32x128xbf16>, vector<8x128xf32> -> vector<8x128xf32>
    %19 = arith.addf %16, %18 : vector<8x128xf32>
    %20 = vector.extract_strided_slice %19 {offsets = [0, 0], sizes = [8, 32], strides = [1, 1]} : vector<8x128xf32> to vector<8x32xf32>
    %21 = arith.negf %20 : vector<8x32xf32>
    %22 = math.exp %21 : vector<8x32xf32>
    %cst_14 = arith.constant 1.000000e+00 : f32
    %23 = vector.broadcast %cst_14 : f32 to vector<8x32xf32>
    %24 = arith.addf %23, %22 : vector<8x32xf32>
    %25 = arith.divf %23, %24 : vector<8x32xf32>
    %26 = vector.extract_strided_slice %19 {offsets = [0, 32], sizes = [8, 32], strides = [1, 1]} : vector<8x128xf32> to vector<8x32xf32>
    %27 = math.tanh %26 : vector<8x32xf32>
    %28 = vector.extract_strided_slice %19 {offsets = [0, 64], sizes = [8, 32], strides = [1, 1]} : vector<8x128xf32> to vector<8x32xf32>
    %29 = arith.negf %28 : vector<8x32xf32>
    %30 = math.exp %29 : vector<8x32xf32>
    %cst_15 = arith.constant 1.000000e+00 : f32
    %31 = vector.broadcast %cst_15 : f32 to vector<8x32xf32>
    %32 = arith.addf %31, %30 : vector<8x32xf32>
    %33 = arith.divf %31, %32 : vector<8x32xf32>
    %34 = vector.extract_strided_slice %19 {offsets = [0, 96], sizes = [8, 32], strides = [1, 1]} : vector<8x128xf32> to vector<8x32xf32>
    %35 = arith.negf %34 : vector<8x32xf32>
    %36 = math.exp %35 : vector<8x32xf32>
    %cst_16 = arith.constant 1.000000e+00 : f32
    %37 = vector.broadcast %cst_16 : f32 to vector<8x32xf32>
    %38 = arith.addf %37, %36 : vector<8x32xf32>
    %39 = arith.divf %37, %38 : vector<8x32xf32>
    %40 = arith.mulf %25, %14 : vector<8x32xf32>
    %41 = arith.mulf %33, %27 : vector<8x32xf32>
    %42 = arith.addf %40, %41 : vector<8x32xf32>
    %43 = math.tanh %42 : vector<8x32xf32>
    %44 = arith.mulf %39, %43 : vector<8x32xf32>
    %45 = vector.shape_cast %44 : vector<8x32xf32> to vector<8x1x32xf32>
    %c0_17 = arith.constant 0 : index
    %c0_18 = arith.constant 0 : index
    %c0_19 = arith.constant 0 : index
    %46 = vector.load %arg5[%c0_17, %c0_18, %c0_19] : memref<8x8x32xf32, #tpu.memory_space<vmem>>, vector<8x1x32xf32>
    tpu.vector_store %arg5[%c0_17, %c0_18, %c0_19], %45 {strides = array<i32>} : memref<8x8x32xf32, #tpu.memory_space<vmem>>, vector<8x1x32xf32>,
    %47 = vector.extract_strided_slice %11 {offsets = [0, 1, 0], sizes = [8, 1, 128], strides = [1, 1, 1]} : vector<8x8x128xf32> to vector<8x1x128xf32>
    %48 = vector.shape_cast %47 : vector<8x1x128xf32> to vector<8x128xf32>
    %49 = arith.truncf %44 : vector<8x32xf32> to vector<8x32xbf16>
    %cst_20 = arith.constant dense<0.000000e+00> : vector<8x128xf32>
    %50 = tpu.matmul %49, %12, %cst_20 {dimension_numbers = #tpu.dot_dimension_numbers<[1], [0], [0], [1], [0, 0, 1, 1], [], []>} : vector<8x32xbf16>, vector<32x128xbf16>, vector<8x128xf32> -> vector<8x128xf32>
    %51 = arith.addf %48, %50 : vector<8x128xf32>
    %52 = vector.extract_strided_slice %51 {offsets = [0, 0], sizes = [8, 32], strides = [1, 1]} : vector<8x128xf32> to vector<8x32xf32>
    %53 = arith.negf %52 : vector<8x32xf32>
    %54 = math.exp %53 : vector<8x32xf32>
    %cst_21 = arith.constant 1.000000e+00 : f32
    %55 = vector.broadcast %cst_21 : f32 to vector<8x32xf32>
    %56 = arith.addf %55, %54 : vector<8x32xf32>
    %57 = arith.divf %55, %56 : vector<8x32xf32>
    %58 = vector.extract_strided_slice %51 {offsets = [0, 32], sizes = [8, 32], strides = [1, 1]} : vector<8x128xf32> to vector<8x32xf32>
    %59 = math.tanh %58 : vector<8x32xf32>
    %60 = vector.extract_strided_slice %51 {offsets = [0, 64], sizes = [8, 32], strides = [1, 1]} : vector<8x128xf32> to vector<8x32xf32>
    %61 = arith.negf %60 : vector<8x32xf32>
    %62 = math.exp %61 : vector<8x32xf32>
    %cst_22 = arith.constant 1.000000e+00 : f32
    %63 = vector.broadcast %cst_22 : f32 to vector<8x32xf32>
    %64 = arith.addf %63, %62 : vector<8x32xf32>
    %65 = arith.divf %63, %64 : vector<8x32xf32>
    %66 = vector.extract_strided_slice %51 {offsets = [0, 96], sizes = [8, 32], strides = [1, 1]} : vector<8x128xf32> to vector<8x32xf32>
    %67 = arith.negf %66 : vector<8x32xf32>
    %68 = math.exp %67 : vector<8x32xf32>
    %cst_23 = arith.constant 1.000000e+00 : f32
    %69 = vector.broadcast %cst_23 : f32 to vector<8x32xf32>
    %70 = arith.addf %69, %68 : vector<8x32xf32>
    %71 = arith.divf %69, %70 : vector<8x32xf32>
    %72 = arith.mulf %57, %42 : vector<8x32xf32>
    %73 = arith.mulf %65, %59 : vector<8x32xf32>
    %74 = arith.addf %72, %73 : vector<8x32xf32>
    %75 = math.tanh %74 : vector<8x32xf32>
    %76 = arith.mulf %71, %75 : vector<8x32xf32>
    %77 = vector.shape_cast %76 : vector<8x32xf32> to vector<8x1x32xf32>
    %c0_24 = arith.constant 0 : index
    %c1 = arith.constant 1 : index
    %c0_25 = arith.constant 0 : index
    %78 = vector.load %arg5[%c0_24, %c1, %c0_25] : memref<8x8x32xf32, #tpu.memory_space<vmem>>, vector<8x1x32xf32>
    tpu.vector_store %arg5[%c0_24, %c1, %c0_25], %77 {strides = array<i32>} : memref<8x8x32xf32, #tpu.memory_space<vmem>>, vector<8x1x32xf32>,
    %79 = vector.extract_strided_slice %11 {offsets = [0, 2, 0], sizes = [8, 1, 128], strides = [1, 1, 1]} : vector<8x8x128xf32> to vector<8x1x128xf32>
    %80 = vector.shape_cast %79 : vector<8x1x128xf32> to vector<8x128xf32>
    %81 = arith.truncf %76 : vector<8x32xf32> to vector<8x32xbf16>
    %cst_26 = arith.constant dense<0.000000e+00> : vector<8x128xf32>
    %82 = tpu.matmul %81, %12, %cst_26 {dimension_numbers = #tpu.dot_dimension_numbers<[1], [0], [0], [1], [0, 0, 1, 1], [], []>} : vector<8x32xbf16>, vector<32x128xbf16>, vector<8x128xf32> -> vector<8x128xf32>
    %83 = arith.addf %80, %82 : vector<8x128xf32>
    %84 = vector.extract_strided_slice %83 {offsets = [0, 0], sizes = [8, 32], strides = [1, 1]} : vector<8x128xf32> to vector<8x32xf32>
    %85 = arith.negf %84 : vector<8x32xf32>
    %86 = math.exp %85 : vector<8x32xf32>
    %cst_27 = arith.constant 1.000000e+00 : f32
    %87 = vector.broadcast %cst_27 : f32 to vector<8x32xf32>
    %88 = arith.addf %87, %86 : vector<8x32xf32>
    %89 = arith.divf %87, %88 : vector<8x32xf32>
    %90 = vector.extract_strided_slice %83 {offsets = [0, 32], sizes = [8, 32], strides = [1, 1]} : vector<8x128xf32> to vector<8x32xf32>
    %91 = math.tanh %90 : vector<8x32xf32>
    %92 = vector.extract_strided_slice %83 {offsets = [0, 64], sizes = [8, 32], strides = [1, 1]} : vector<8x128xf32> to vector<8x32xf32>
    %93 = arith.negf %92 : vector<8x32xf32>
    %94 = math.exp %93 : vector<8x32xf32>
    %cst_28 = arith.constant 1.000000e+00 : f32
    %95 = vector.broadcast %cst_28 : f32 to vector<8x32xf32>
    %96 = arith.addf %95, %94 : vector<8x32xf32>
    %97 = arith.divf %95, %96 : vector<8x32xf32>
    %98 = vector.extract_strided_slice %83 {offsets = [0, 96], sizes = [8, 32], strides = [1, 1]} : vector<8x128xf32> to vector<8x32xf32>
    %99 = arith.negf %98 : vector<8x32xf32>
    %100 = math.exp %99 : vector<8x32xf32>
    %cst_29 = arith.constant 1.000000e+00 : f32
    %101 = vector.broadcast %cst_29 : f32 to vector<8x32xf32>
    %102 = arith.addf %101, %100 : vector<8x32xf32>
    %103 = arith.divf %101, %102 : vector<8x32xf32>
    %104 = arith.mulf %89, %74 : vector<8x32xf32>
    %105 = arith.mulf %97, %91 : vector<8x32xf32>
    %106 = arith.addf %104, %105 : vector<8x32xf32>
    %107 = math.tanh %106 : vector<8x32xf32>
    %108 = arith.mulf %103, %107 : vector<8x32xf32>
    %109 = vector.shape_cast %108 : vector<8x32xf32> to vector<8x1x32xf32>
    %c0_30 = arith.constant 0 : index
    %c2 = arith.constant 2 : index
    %c0_31 = arith.constant 0 : index
    %110 = vector.load %arg5[%c0_30, %c2, %c0_31] : memref<8x8x32xf32, #tpu.memory_space<vmem>>, vector<8x1x32xf32>
    tpu.vector_store %arg5[%c0_30, %c2, %c0_31], %109 {strides = array<i32>} : memref<8x8x32xf32, #tpu.memory_space<vmem>>, vector<8x1x32xf32>,
    %111 = vector.extract_strided_slice %11 {offsets = [0, 3, 0], sizes = [8, 1, 128], strides = [1, 1, 1]} : vector<8x8x128xf32> to vector<8x1x128xf32>
    %112 = vector.shape_cast %111 : vector<8x1x128xf32> to vector<8x128xf32>
    %113 = arith.truncf %108 : vector<8x32xf32> to vector<8x32xbf16>
    %cst_32 = arith.constant dense<0.000000e+00> : vector<8x128xf32>
    %114 = tpu.matmul %113, %12, %cst_32 {dimension_numbers = #tpu.dot_dimension_numbers<[1], [0], [0], [1], [0, 0, 1, 1], [], []>} : vector<8x32xbf16>, vector<32x128xbf16>, vector<8x128xf32> -> vector<8x128xf32>
    %115 = arith.addf %112, %114 : vector<8x128xf32>
    %116 = vector.extract_strided_slice %115 {offsets = [0, 0], sizes = [8, 32], strides = [1, 1]} : vector<8x128xf32> to vector<8x32xf32>
    %117 = arith.negf %116 : vector<8x32xf32>
    %118 = math.exp %117 : vector<8x32xf32>
    %cst_33 = arith.constant 1.000000e+00 : f32
    %119 = vector.broadcast %cst_33 : f32 to vector<8x32xf32>
    %120 = arith.addf %119, %118 : vector<8x32xf32>
    %121 = arith.divf %119, %120 : vector<8x32xf32>
    %122 = vector.extract_strided_slice %115 {offsets = [0, 32], sizes = [8, 32], strides = [1, 1]} : vector<8x128xf32> to vector<8x32xf32>
    %123 = math.tanh %122 : vector<8x32xf32>
    %124 = vector.extract_strided_slice %115 {offsets = [0, 64], sizes = [8, 32], strides = [1, 1]} : vector<8x128xf32> to vector<8x32xf32>
    %125 = arith.negf %124 : vector<8x32xf32>
    %126 = math.exp %125 : vector<8x32xf32>
    %cst_34 = arith.constant 1.000000e+00 : f32
    %127 = vector.broadcast %cst_34 : f32 to vector<8x32xf32>
    %128 = arith.addf %127, %126 : vector<8x32xf32>
    %129 = arith.divf %127, %128 : vector<8x32xf32>
    %130 = vector.extract_strided_slice %115 {offsets = [0, 96], sizes = [8, 32], strides = [1, 1]} : vector<8x128xf32> to vector<8x32xf32>
    %131 = arith.negf %130 : vector<8x32xf32>
    %132 = math.exp %131 : vector<8x32xf32>
    %cst_35 = arith.constant 1.000000e+00 : f32
    %133 = vector.broadcast %cst_35 : f32 to vector<8x32xf32>
    %134 = arith.addf %133, %132 : vector<8x32xf32>
    %135 = arith.divf %133, %134 : vector<8x32xf32>
    %136 = arith.mulf %121, %106 : vector<8x32xf32>
    %137 = arith.mulf %129, %123 : vector<8x32xf32>
    %138 = arith.addf %136, %137 : vector<8x32xf32>
    %139 = math.tanh %138 : vector<8x32xf32>
    %140 = arith.mulf %135, %139 : vector<8x32xf32>
    %141 = vector.shape_cast %140 : vector<8x32xf32> to vector<8x1x32xf32>
    %c0_36 = arith.constant 0 : index
    %c3 = arith.constant 3 : index
    %c0_37 = arith.constant 0 : index
    %142 = vector.load %arg5[%c0_36, %c3, %c0_37] : memref<8x8x32xf32, #tpu.memory_space<vmem>>, vector<8x1x32xf32>
    tpu.vector_store %arg5[%c0_36, %c3, %c0_37], %141 {strides = array<i32>} : memref<8x8x32xf32, #tpu.memory_space<vmem>>, vector<8x1x32xf32>,
    %143 = vector.extract_strided_slice %11 {offsets = [0, 4, 0], sizes = [8, 1, 128], strides = [1, 1, 1]} : vector<8x8x128xf32> to vector<8x1x128xf32>
    %144 = vector.shape_cast %143 : vector<8x1x128xf32> to vector<8x128xf32>
    %145 = arith.truncf %140 : vector<8x32xf32> to vector<8x32xbf16>
    %cst_38 = arith.constant dense<0.000000e+00> : vector<8x128xf32>
    %146 = tpu.matmul %145, %12, %cst_38 {dimension_numbers = #tpu.dot_dimension_numbers<[1], [0], [0], [1], [0, 0, 1, 1], [], []>} : vector<8x32xbf16>, vector<32x128xbf16>, vector<8x128xf32> -> vector<8x128xf32>
    %147 = arith.addf %144, %146 : vector<8x128xf32>
    %148 = vector.extract_strided_slice %147 {offsets = [0, 0], sizes = [8, 32], strides = [1, 1]} : vector<8x128xf32> to vector<8x32xf32>
    %149 = arith.negf %148 : vector<8x32xf32>
    %150 = math.exp %149 : vector<8x32xf32>
    %cst_39 = arith.constant 1.000000e+00 : f32
    %151 = vector.broadcast %cst_39 : f32 to vector<8x32xf32>
    %152 = arith.addf %151, %150 : vector<8x32xf32>
    %153 = arith.divf %151, %152 : vector<8x32xf32>
    %154 = vector.extract_strided_slice %147 {offsets = [0, 32], sizes = [8, 32], strides = [1, 1]} : vector<8x128xf32> to vector<8x32xf32>
    %155 = math.tanh %154 : vector<8x32xf32>
    %156 = vector.extract_strided_slice %147 {offsets = [0, 64], sizes = [8, 32], strides = [1, 1]} : vector<8x128xf32> to vector<8x32xf32>
    %157 = arith.negf %156 : vector<8x32xf32>
    %158 = math.exp %157 : vector<8x32xf32>
    %cst_40 = arith.constant 1.000000e+00 : f32
    %159 = vector.broadcast %cst_40 : f32 to vector<8x32xf32>
    %160 = arith.addf %159, %158 : vector<8x32xf32>
    %161 = arith.divf %159, %160 : vector<8x32xf32>
    %162 = vector.extract_strided_slice %147 {offsets = [0, 96], sizes = [8, 32], strides = [1, 1]} : vector<8x128xf32> to vector<8x32xf32>
    %163 = arith.negf %162 : vector<8x32xf32>
    %164 = math.exp %163 : vector<8x32xf32>
    %cst_41 = arith.constant 1.000000e+00 : f32
    %165 = vector.broadcast %cst_41 : f32 to vector<8x32xf32>
    %166 = arith.addf %165, %164 : vector<8x32xf32>
    %167 = arith.divf %165, %166 : vector<8x32xf32>
    %168 = arith.mulf %153, %138 : vector<8x32xf32>
    %169 = arith.mulf %161, %155 : vector<8x32xf32>
    %170 = arith.addf %168, %169 : vector<8x32xf32>
    %171 = math.tanh %170 : vector<8x32xf32>
    %172 = arith.mulf %167, %171 : vector<8x32xf32>
    %173 = vector.shape_cast %172 : vector<8x32xf32> to vector<8x1x32xf32>
    %c0_42 = arith.constant 0 : index
    %c4 = arith.constant 4 : index
    %c0_43 = arith.constant 0 : index
    %174 = vector.load %arg5[%c0_42, %c4, %c0_43] : memref<8x8x32xf32, #tpu.memory_space<vmem>>, vector<8x1x32xf32>
    tpu.vector_store %arg5[%c0_42, %c4, %c0_43], %173 {strides = array<i32>} : memref<8x8x32xf32, #tpu.memory_space<vmem>>, vector<8x1x32xf32>,
    %175 = vector.extract_strided_slice %11 {offsets = [0, 5, 0], sizes = [8, 1, 128], strides = [1, 1, 1]} : vector<8x8x128xf32> to vector<8x1x128xf32>
    %176 = vector.shape_cast %175 : vector<8x1x128xf32> to vector<8x128xf32>
    %177 = arith.truncf %172 : vector<8x32xf32> to vector<8x32xbf16>
    %cst_44 = arith.constant dense<0.000000e+00> : vector<8x128xf32>
    %178 = tpu.matmul %177, %12, %cst_44 {dimension_numbers = #tpu.dot_dimension_numbers<[1], [0], [0], [1], [0, 0, 1, 1], [], []>} : vector<8x32xbf16>, vector<32x128xbf16>, vector<8x128xf32> -> vector<8x128xf32>
    %179 = arith.addf %176, %178 : vector<8x128xf32>
    %180 = vector.extract_strided_slice %179 {offsets = [0, 0], sizes = [8, 32], strides = [1, 1]} : vector<8x128xf32> to vector<8x32xf32>
    %181 = arith.negf %180 : vector<8x32xf32>
    %182 = math.exp %181 : vector<8x32xf32>
    %cst_45 = arith.constant 1.000000e+00 : f32
    %183 = vector.broadcast %cst_45 : f32 to vector<8x32xf32>
    %184 = arith.addf %183, %182 : vector<8x32xf32>
    %185 = arith.divf %183, %184 : vector<8x32xf32>
    %186 = vector.extract_strided_slice %179 {offsets = [0, 32], sizes = [8, 32], strides = [1, 1]} : vector<8x128xf32> to vector<8x32xf32>
    %187 = math.tanh %186 : vector<8x32xf32>
    %188 = vector.extract_strided_slice %179 {offsets = [0, 64], sizes = [8, 32], strides = [1, 1]} : vector<8x128xf32> to vector<8x32xf32>
    %189 = arith.negf %188 : vector<8x32xf32>
    %190 = math.exp %189 : vector<8x32xf32>
    %cst_46 = arith.constant 1.000000e+00 : f32
    %191 = vector.broadcast %cst_46 : f32 to vector<8x32xf32>
    %192 = arith.addf %191, %190 : vector<8x32xf32>
    %193 = arith.divf %191, %192 : vector<8x32xf32>
    %194 = vector.extract_strided_slice %179 {offsets = [0, 96], sizes = [8, 32], strides = [1, 1]} : vector<8x128xf32> to vector<8x32xf32>
    %195 = arith.negf %194 : vector<8x32xf32>
    %196 = math.exp %195 : vector<8x32xf32>
    %cst_47 = arith.constant 1.000000e+00 : f32
    %197 = vector.broadcast %cst_47 : f32 to vector<8x32xf32>
    %198 = arith.addf %197, %196 : vector<8x32xf32>
    %199 = arith.divf %197, %198 : vector<8x32xf32>
    %200 = arith.mulf %185, %170 : vector<8x32xf32>
    %201 = arith.mulf %193, %187 : vector<8x32xf32>
    %202 = arith.addf %200, %201 : vector<8x32xf32>
    %203 = math.tanh %202 : vector<8x32xf32>
    %204 = arith.mulf %199, %203 : vector<8x32xf32>
    %205 = vector.shape_cast %204 : vector<8x32xf32> to vector<8x1x32xf32>
    %c0_48 = arith.constant 0 : index
    %c5 = arith.constant 5 : index
    %c0_49 = arith.constant 0 : index
    %206 = vector.load %arg5[%c0_48, %c5, %c0_49] : memref<8x8x32xf32, #tpu.memory_space<vmem>>, vector<8x1x32xf32>
    tpu.vector_store %arg5[%c0_48, %c5, %c0_49], %205 {strides = array<i32>} : memref<8x8x32xf32, #tpu.memory_space<vmem>>, vector<8x1x32xf32>,
    %207 = vector.extract_strided_slice %11 {offsets = [0, 6, 0], sizes = [8, 1, 128], strides = [1, 1, 1]} : vector<8x8x128xf32> to vector<8x1x128xf32>
    %208 = vector.shape_cast %207 : vector<8x1x128xf32> to vector<8x128xf32>
    %209 = arith.truncf %204 : vector<8x32xf32> to vector<8x32xbf16>
    %cst_50 = arith.constant dense<0.000000e+00> : vector<8x128xf32>
    %210 = tpu.matmul %209, %12, %cst_50 {dimension_numbers = #tpu.dot_dimension_numbers<[1], [0], [0], [1], [0, 0, 1, 1], [], []>} : vector<8x32xbf16>, vector<32x128xbf16>, vector<8x128xf32> -> vector<8x128xf32>
    %211 = arith.addf %208, %210 : vector<8x128xf32>
    %212 = vector.extract_strided_slice %211 {offsets = [0, 0], sizes = [8, 32], strides = [1, 1]} : vector<8x128xf32> to vector<8x32xf32>
    %213 = arith.negf %212 : vector<8x32xf32>
    %214 = math.exp %213 : vector<8x32xf32>
    %cst_51 = arith.constant 1.000000e+00 : f32
    %215 = vector.broadcast %cst_51 : f32 to vector<8x32xf32>
    %216 = arith.addf %215, %214 : vector<8x32xf32>
    %217 = arith.divf %215, %216 : vector<8x32xf32>
    %218 = vector.extract_strided_slice %211 {offsets = [0, 32], sizes = [8, 32], strides = [1, 1]} : vector<8x128xf32> to vector<8x32xf32>
    %219 = math.tanh %218 : vector<8x32xf32>
    %220 = vector.extract_strided_slice %211 {offsets = [0, 64], sizes = [8, 32], strides = [1, 1]} : vector<8x128xf32> to vector<8x32xf32>
    %221 = arith.negf %220 : vector<8x32xf32>
    %222 = math.exp %221 : vector<8x32xf32>
    %cst_52 = arith.constant 1.000000e+00 : f32
    %223 = vector.broadcast %cst_52 : f32 to vector<8x32xf32>
    %224 = arith.addf %223, %222 : vector<8x32xf32>
    %225 = arith.divf %223, %224 : vector<8x32xf32>
    %226 = vector.extract_strided_slice %211 {offsets = [0, 96], sizes = [8, 32], strides = [1, 1]} : vector<8x128xf32> to vector<8x32xf32>
    %227 = arith.negf %226 : vector<8x32xf32>
    %228 = math.exp %227 : vector<8x32xf32>
    %cst_53 = arith.constant 1.000000e+00 : f32
    %229 = vector.broadcast %cst_53 : f32 to vector<8x32xf32>
    %230 = arith.addf %229, %228 : vector<8x32xf32>
    %231 = arith.divf %229, %230 : vector<8x32xf32>
    %232 = arith.mulf %217, %202 : vector<8x32xf32>
    %233 = arith.mulf %225, %219 : vector<8x32xf32>
    %234 = arith.addf %232, %233 : vector<8x32xf32>
    %235 = math.tanh %234 : vector<8x32xf32>
    %236 = arith.mulf %231, %235 : vector<8x32xf32>
    %237 = vector.shape_cast %236 : vector<8x32xf32> to vector<8x1x32xf32>
    %c0_54 = arith.constant 0 : index
    %c6 = arith.constant 6 : index
    %c0_55 = arith.constant 0 : index
    %238 = vector.load %arg5[%c0_54, %c6, %c0_55] : memref<8x8x32xf32, #tpu.memory_space<vmem>>, vector<8x1x32xf32>
    tpu.vector_store %arg5[%c0_54, %c6, %c0_55], %237 {strides = array<i32>} : memref<8x8x32xf32, #tpu.memory_space<vmem>>, vector<8x1x32xf32>,
    %239 = vector.extract_strided_slice %11 {offsets = [0, 7, 0], sizes = [8, 1, 128], strides = [1, 1, 1]} : vector<8x8x128xf32> to vector<8x1x128xf32>
    %240 = vector.shape_cast %239 : vector<8x1x128xf32> to vector<8x128xf32>
    %241 = arith.truncf %236 : vector<8x32xf32> to vector<8x32xbf16>
    %cst_56 = arith.constant dense<0.000000e+00> : vector<8x128xf32>
    %242 = tpu.matmul %241, %12, %cst_56 {dimension_numbers = #tpu.dot_dimension_numbers<[1], [0], [0], [1], [0, 0, 1, 1], [], []>} : vector<8x32xbf16>, vector<32x128xbf16>, vector<8x128xf32> -> vector<8x128xf32>
    %243 = arith.addf %240, %242 : vector<8x128xf32>
    %244 = vector.extract_strided_slice %243 {offsets = [0, 0], sizes = [8, 32], strides = [1, 1]} : vector<8x128xf32> to vector<8x32xf32>
    %245 = arith.negf %244 : vector<8x32xf32>
    %246 = math.exp %245 : vector<8x32xf32>
    %cst_57 = arith.constant 1.000000e+00 : f32
    %247 = vector.broadcast %cst_57 : f32 to vector<8x32xf32>
    %248 = arith.addf %247, %246 : vector<8x32xf32>
    %249 = arith.divf %247, %248 : vector<8x32xf32>
    %250 = vector.extract_strided_slice %243 {offsets = [0, 32], sizes = [8, 32], strides = [1, 1]} : vector<8x128xf32> to vector<8x32xf32>
    %251 = math.tanh %250 : vector<8x32xf32>
    %252 = vector.extract_strided_slice %243 {offsets = [0, 64], sizes = [8, 32], strides = [1, 1]} : vector<8x128xf32> to vector<8x32xf32>
    %253 = arith.negf %252 : vector<8x32xf32>
    %254 = math.exp %253 : vector<8x32xf32>
    %cst_58 = arith.constant 1.000000e+00 : f32
    %255 = vector.broadcast %cst_58 : f32 to vector<8x32xf32>
    %256 = arith.addf %255, %254 : vector<8x32xf32>
    %257 = arith.divf %255, %256 : vector<8x32xf32>
    %258 = vector.extract_strided_slice %243 {offsets = [0, 96], sizes = [8, 32], strides = [1, 1]} : vector<8x128xf32> to vector<8x32xf32>
    %259 = arith.negf %258 : vector<8x32xf32>
    %260 = math.exp %259 : vector<8x32xf32>
    %cst_59 = arith.constant 1.000000e+00 : f32
    %261 = vector.broadcast %cst_59 : f32 to vector<8x32xf32>
    %262 = arith.addf %261, %260 : vector<8x32xf32>
    %263 = arith.divf %261, %262 : vector<8x32xf32>
    %264 = arith.mulf %249, %234 : vector<8x32xf32>
    %265 = arith.mulf %257, %251 : vector<8x32xf32>
    %266 = arith.addf %264, %265 : vector<8x32xf32>
    %267 = math.tanh %266 : vector<8x32xf32>
    %268 = arith.mulf %263, %267 : vector<8x32xf32>
    %269 = vector.shape_cast %268 : vector<8x32xf32> to vector<8x1x32xf32>
    %c0_60 = arith.constant 0 : index
    %c7 = arith.constant 7 : index
    %c0_61 = arith.constant 0 : index
    %270 = vector.load %arg5[%c0_60, %c7, %c0_61] : memref<8x8x32xf32, #tpu.memory_space<vmem>>, vector<8x1x32xf32>
    tpu.vector_store %arg5[%c0_60, %c7, %c0_61], %269 {strides = array<i32>} : memref<8x8x32xf32, #tpu.memory_space<vmem>>, vector<8x1x32xf32>,
    %c0_62 = arith.constant 0 : index
    %c0_63 = arith.constant 0 : index
    %271 = vector.load %arg8[%c0_62, %c0_63] : memref<8x32xf32, #tpu.memory_space<vmem>>, vector<8x32xf32>
    tpu.vector_store %arg8[%c0_62, %c0_63], %268 {strides = array<i32>} : memref<8x32xf32, #tpu.memory_space<vmem>>, vector<8x32xf32>,
    %c0_64 = arith.constant 0 : index
    %c0_65 = arith.constant 0 : index
    %272 = vector.load %arg9[%c0_64, %c0_65] : memref<8x32xf32, #tpu.memory_space<vmem>>, vector<8x32xf32>
    tpu.vector_store %arg9[%c0_64, %c0_65], %266 {strides = array<i32>} : memref<8x32xf32, #tpu.memory_space<vmem>>, vector<8x32xf32>,
    %c0_i32_66 = arith.constant 0 : i32
    %273 = arith.cmpi eq, %arg0, %c0_i32_66 : i32
    %274 = arith.extui %273 : i1 to i32
    %c0_i32_67 = arith.constant 0 : i32
    %275 = arith.cmpi ne, %274, %c0_i32_67 : i32
    scf.if %275 {
      %c0_68 = arith.constant 0 : index
      %c0_69 = arith.constant 0 : index
      %276 = vector.load %arg6[%c0_68, %c0_69] : memref<8x32xf32, #tpu.memory_space<vmem>>, vector<8x32xf32>
      tpu.vector_store %arg6[%c0_68, %c0_69], %268 {strides = array<i32>} : memref<8x32xf32, #tpu.memory_space<vmem>>, vector<8x32xf32>,
      %c0_70 = arith.constant 0 : index
      %c0_71 = arith.constant 0 : index
      %277 = vector.load %arg7[%c0_70, %c0_71] : memref<8x32xf32, #tpu.memory_space<vmem>>, vector<8x32xf32>
      tpu.vector_store %arg7[%c0_70, %c0_71], %266 {strides = array<i32>} : memref<8x32xf32, #tpu.memory_space<vmem>>, vector<8x32xf32>,
    } else {
    }
    return
  }
  func.func @transform_0(%arg0: i32) -> (i32, i32, i32) {
    %c0_i32 = arith.constant 0 : i32
    %c0_i32_0 = arith.constant 0 : i32
    %c0_i32_1 = arith.constant 0 : i32
    return %c0_i32, %arg0, %c0_i32_0 : i32, i32, i32
  }
  func.func @transform_1(%arg0: i32) -> (i32, i32) {
    %c0_i32 = arith.constant 0 : i32
    %c0_i32_0 = arith.constant 0 : i32
    %c0_i32_1 = arith.constant 0 : i32
    return %c0_i32, %c0_i32_0 : i32, i32
  }
  func.func @transform_2(%arg0: i32) -> (i32, i32) {
    %c0_i32 = arith.constant 0 : i32
    %c0_i32_0 = arith.constant 0 : i32
    %c0_i32_1 = arith.constant 0 : i32
    return %c0_i32, %c0_i32_0 : i32, i32
  }
  func.func @transform_3(%arg0: i32) -> (i32, i32) {
    %c0_i32 = arith.constant 0 : i32
    %c0_i32_0 = arith.constant 0 : i32
    %c0_i32_1 = arith.constant 0 : i32
    return %c0_i32, %c0_i32_0 : i32, i32
  }
  func.func @transform_4(%arg0: i32) -> (i32, i32, i32) {
    %c0_i32 = arith.constant 0 : i32
    %c0_i32_0 = arith.constant 0 : i32
    %c0_i32_1 = arith.constant 0 : i32
    return %c0_i32, %arg0, %c0_i32_0 : i32, i32, i32
  }
  func.func @transform_5(%arg0: i32) -> (i32, i32) {
    %c0_i32 = arith.constant 0 : i32
    %c0_i32_0 = arith.constant 0 : i32
    %c0_i32_1 = arith.constant 0 : i32
    return %c0_i32, %c0_i32_0 : i32, i32
  }
  func.func @transform_6(%arg0: i32) -> (i32, i32) {
    %c0_i32 = arith.constant 0 : i32
    %c0_i32_0 = arith.constant 0 : i32
    %c0_i32_1 = arith.constant 0 : i32
    return %c0_i32, %c0_i32_0 : i32, i32
  }
}

module attributes {stable_mosaic.version = 11 : i64} {
  func.func @_lstm_layer_kernel(%arg0: i32, %arg1: memref<8x8x16xf32, #tpu.memory_space<vmem>>, %arg2: memref<16x128xbf16, #tpu.memory_space<vmem>>, %arg3: memref<32x128xbf16, #tpu.memory_space<vmem>>, %arg4: memref<1x128xf32, #tpu.memory_space<vmem>>, %arg5: memref<8x8x32xf32, #tpu.memory_space<vmem>>, %arg6: memref<8x32xf32, #tpu.memory_space<vmem>>, %arg7: memref<8x32xf32, #tpu.memory_space<vmem>>, %arg8: memref<8x32xf32, #tpu.memory_space<vmem>>, %arg9: memref<8x32xf32, #tpu.memory_space<vmem>>) attributes {dimension_semantics = [#tpu.dimension_semantics<arbitrary>], iteration_bounds = array<i64: 1>, scalar_prefetch = 0 : i64, scratch_operands = 2 : i64, tpu.core_type = #tpu.core_type<tc>, window_params = [{transform_indices = @transform_0, window_bounds = array<i64: 8, 8, 16>}, {pipeline_mode = #tpu.pipeline_mode<synchronous>, transform_indices = @transform_1, window_bounds = array<i64: 16, 128>}, {pipeline_mode = #tpu.pipeline_mode<synchronous>, transform_indices = @transform_2, window_bounds = array<i64: 32, 128>}, {pipeline_mode = #tpu.pipeline_mode<synchronous>, transform_indices = @transform_3, window_bounds = array<i64: 1, 128>}, {transform_indices = @transform_4, window_bounds = array<i64: 8, 8, 32>}, {pipeline_mode = #tpu.pipeline_mode<synchronous>, transform_indices = @transform_5, window_bounds = array<i64: 8, 32>}, {pipeline_mode = #tpu.pipeline_mode<synchronous>, transform_indices = @transform_6, window_bounds = array<i64: 8, 32>}]} {
    %c0_i32 = arith.constant 0 : i32
    %0 = arith.cmpi eq, %arg0, %c0_i32 : i32
    %1 = arith.extui %0 : i1 to i32
    %c0_i32_0 = arith.constant 0 : i32
    %2 = arith.cmpi ne, %1, %c0_i32_0 : i32
    scf.if %2 {
      %cst_68 = arith.constant 0.000000e+00 : f32
      %276 = vector.broadcast %cst_68 : f32 to vector<8x32xf32>
      %c0_69 = arith.constant 0 : index
      %c0_70 = arith.constant 0 : index
      %277 = vector.load %arg8[%c0_69, %c0_70] : memref<8x32xf32, #tpu.memory_space<vmem>>, vector<8x32xf32>
      tpu.vector_store %arg8[%c0_69, %c0_70], %276 {strides = array<i32>} : memref<8x32xf32, #tpu.memory_space<vmem>>, vector<8x32xf32>,
      %cst_71 = arith.constant 0.000000e+00 : f32
      %278 = vector.broadcast %cst_71 : f32 to vector<8x32xf32>
      %c0_72 = arith.constant 0 : index
      %c0_73 = arith.constant 0 : index
      %279 = vector.load %arg9[%c0_72, %c0_73] : memref<8x32xf32, #tpu.memory_space<vmem>>, vector<8x32xf32>
      tpu.vector_store %arg9[%c0_72, %c0_73], %278 {strides = array<i32>} : memref<8x32xf32, #tpu.memory_space<vmem>>, vector<8x32xf32>,
    } else {
    }
    %c0 = arith.constant 0 : index
    %c0_1 = arith.constant 0 : index
    %c0_2 = arith.constant 0 : index
    %3 = vector.load %arg1[%c0, %c0_1, %c0_2] : memref<8x8x16xf32, #tpu.memory_space<vmem>>, vector<8x8x16xf32>
    %4 = arith.truncf %3 : vector<8x8x16xf32> to vector<8x8x16xbf16>
    %5 = vector.shape_cast %4 : vector<8x8x16xbf16> to vector<64x16xbf16>
    %c0_3 = arith.constant 0 : index
    %c0_4 = arith.constant 0 : index
    %6 = vector.load %arg2[%c0_3, %c0_4] : memref<16x128xbf16, #tpu.memory_space<vmem>>, vector<16x128xbf16>
    %cst = arith.constant dense<0.000000e+00> : vector<64x128xf32>
    %7 = tpu.matmul %5, %6, %cst {dimension_numbers = #tpu.dot_dimension_numbers<[1], [0], [0], [1], [0, 0, 1, 1], [], []>} : vector<64x16xbf16>, vector<16x128xbf16>, vector<64x128xf32> -> vector<64x128xf32>
    %c0_5 = arith.constant 0 : index
    %c0_6 = arith.constant 0 : index
    %8 = vector.load %arg4[%c0_5, %c0_6] : memref<1x128xf32, #tpu.memory_space<vmem>>, vector<1x128xf32>
    %9 = vector.broadcast %8 : vector<1x128xf32> to vector<64x128xf32>
    %10 = arith.addf %7, %9 : vector<64x128xf32>
    %11 = vector.shape_cast %10 : vector<64x128xf32> to vector<8x8x128xf32>
    %c0_7 = arith.constant 0 : index
    %c0_8 = arith.constant 0 : index
    %12 = vector.load %arg3[%c0_7, %c0_8] : memref<32x128xbf16, #tpu.memory_space<vmem>>, vector<32x128xbf16>
    %c0_9 = arith.constant 0 : index
    %c0_10 = arith.constant 0 : index
    %13 = vector.load %arg8[%c0_9, %c0_10] : memref<8x32xf32, #tpu.memory_space<vmem>>, vector<8x32xf32>
    %c0_11 = arith.constant 0 : index
    %c0_12 = arith.constant 0 : index
    %14 = vector.load %arg9[%c0_11, %c0_12] : memref<8x32xf32, #tpu.memory_space<vmem>>, vector<8x32xf32>
    %15 = vector.extract_strided_slice %11 {offsets = [0, 0, 0], sizes = [8, 1, 128], strides = [1, 1, 1]} : vector<8x8x128xf32> to vector<8x1x128xf32>
    %16 = vector.shape_cast %15 : vector<8x1x128xf32> to vector<8x128xf32>
    %17 = arith.truncf %13 : vector<8x32xf32> to vector<8x32xbf16>
    %cst_13 = arith.constant dense<0.000000e+00> : vector<8x128xf32>
    %18 = tpu.matmul %17, %12, %cst_13 {dimension_numbers = #tpu.dot_dimension_numbers<[1], [0], [0], [1], [0, 0, 1, 1], [], []>} : vector<8x32xbf16>, vector<32x128xbf16>, vector<8x128xf32> -> vector<8x128xf32>
    %19 = arith.addf %16, %18 : vector<8x128xf32>
    %20 = vector.extract_strided_slice %19 {offsets = [0, 0], sizes = [8, 32], strides = [1, 1]} : vector<8x128xf32> to vector<8x32xf32>
    %21 = arith.negf %20 : vector<8x32xf32>
    %22 = math.exp %21 : vector<8x32xf32>
    %cst_14 = arith.constant 1.000000e+00 : f32
    %23 = vector.broadcast %cst_14 : f32 to vector<8x32xf32>
    %24 = arith.addf %23, %22 : vector<8x32xf32>
    %25 = arith.divf %23, %24 : vector<8x32xf32>
    %26 = vector.extract_strided_slice %19 {offsets = [0, 32], sizes = [8, 32], strides = [1, 1]} : vector<8x128xf32> to vector<8x32xf32>
    %27 = math.tanh %26 : vector<8x32xf32>
    %28 = vector.extract_strided_slice %19 {offsets = [0, 64], sizes = [8, 32], strides = [1, 1]} : vector<8x128xf32> to vector<8x32xf32>
    %29 = arith.negf %28 : vector<8x32xf32>
    %30 = math.exp %29 : vector<8x32xf32>
    %cst_15 = arith.constant 1.000000e+00 : f32
    %31 = vector.broadcast %cst_15 : f32 to vector<8x32xf32>
    %32 = arith.addf %31, %30 : vector<8x32xf32>
    %33 = arith.divf %31, %32 : vector<8x32xf32>
    %34 = vector.extract_strided_slice %19 {offsets = [0, 96], sizes = [8, 32], strides = [1, 1]} : vector<8x128xf32> to vector<8x32xf32>
    %35 = arith.negf %34 : vector<8x32xf32>
    %36 = math.exp %35 : vector<8x32xf32>
    %cst_16 = arith.constant 1.000000e+00 : f32
    %37 = vector.broadcast %cst_16 : f32 to vector<8x32xf32>
    %38 = arith.addf %37, %36 : vector<8x32xf32>
    %39 = arith.divf %37, %38 : vector<8x32xf32>
    %40 = arith.mulf %25, %14 : vector<8x32xf32>
    %41 = arith.mulf %33, %27 : vector<8x32xf32>
    %42 = arith.addf %40, %41 : vector<8x32xf32>
    %43 = math.tanh %42 : vector<8x32xf32>
    %44 = arith.mulf %39, %43 : vector<8x32xf32>
    %45 = vector.shape_cast %44 : vector<8x32xf32> to vector<8x1x32xf32>
    %c0_17 = arith.constant 0 : index
    %c0_18 = arith.constant 0 : index
    %c0_19 = arith.constant 0 : index
    %46 = vector.load %arg5[%c0_17, %c0_18, %c0_19] : memref<8x8x32xf32, #tpu.memory_space<vmem>>, vector<8x1x32xf32>
    tpu.vector_store %arg5[%c0_17, %c0_18, %c0_19], %45 {strides = array<i32>} : memref<8x8x32xf32, #tpu.memory_space<vmem>>, vector<8x1x32xf32>,
    %47 = vector.extract_strided_slice %11 {offsets = [0, 1, 0], sizes = [8, 1, 128], strides = [1, 1, 1]} : vector<8x8x128xf32> to vector<8x1x128xf32>
    %48 = vector.shape_cast %47 : vector<8x1x128xf32> to vector<8x128xf32>
    %49 = arith.truncf %44 : vector<8x32xf32> to vector<8x32xbf16>
    %cst_20 = arith.constant dense<0.000000e+00> : vector<8x128xf32>
    %50 = tpu.matmul %49, %12, %cst_20 {dimension_numbers = #tpu.dot_dimension_numbers<[1], [0], [0], [1], [0, 0, 1, 1], [], []>} : vector<8x32xbf16>, vector<32x128xbf16>, vector<8x128xf32> -> vector<8x128xf32>
    %51 = arith.addf %48, %50 : vector<8x128xf32>
    %52 = vector.extract_strided_slice %51 {offsets = [0, 0], sizes = [8, 32], strides = [1, 1]} : vector<8x128xf32> to vector<8x32xf32>
    %53 = arith.negf %52 : vector<8x32xf32>
    %54 = math.exp %53 : vector<8x32xf32>
    %cst_21 = arith.constant 1.000000e+00 : f32
    %55 = vector.broadcast %cst_21 : f32 to vector<8x32xf32>
    %56 = arith.addf %55, %54 : vector<8x32xf32>
    %57 = arith.divf %55, %56 : vector<8x32xf32>
    %58 = vector.extract_strided_slice %51 {offsets = [0, 32], sizes = [8, 32], strides = [1, 1]} : vector<8x128xf32> to vector<8x32xf32>
    %59 = math.tanh %58 : vector<8x32xf32>
    %60 = vector.extract_strided_slice %51 {offsets = [0, 64], sizes = [8, 32], strides = [1, 1]} : vector<8x128xf32> to vector<8x32xf32>
    %61 = arith.negf %60 : vector<8x32xf32>
    %62 = math.exp %61 : vector<8x32xf32>
    %cst_22 = arith.constant 1.000000e+00 : f32
    %63 = vector.broadcast %cst_22 : f32 to vector<8x32xf32>
    %64 = arith.addf %63, %62 : vector<8x32xf32>
    %65 = arith.divf %63, %64 : vector<8x32xf32>
    %66 = vector.extract_strided_slice %51 {offsets = [0, 96], sizes = [8, 32], strides = [1, 1]} : vector<8x128xf32> to vector<8x32xf32>
    %67 = arith.negf %66 : vector<8x32xf32>
    %68 = math.exp %67 : vector<8x32xf32>
    %cst_23 = arith.constant 1.000000e+00 : f32
    %69 = vector.broadcast %cst_23 : f32 to vector<8x32xf32>
    %70 = arith.addf %69, %68 : vector<8x32xf32>
    %71 = arith.divf %69, %70 : vector<8x32xf32>
    %72 = arith.mulf %57, %42 : vector<8x32xf32>
    %73 = arith.mulf %65, %59 : vector<8x32xf32>
    %74 = arith.addf %72, %73 : vector<8x32xf32>
    %75 = math.tanh %74 : vector<8x32xf32>
    %76 = arith.mulf %71, %75 : vector<8x32xf32>
    %77 = vector.shape_cast %76 : vector<8x32xf32> to vector<8x1x32xf32>
    %c0_24 = arith.constant 0 : index
    %c1 = arith.constant 1 : index
    %c0_25 = arith.constant 0 : index
    %78 = vector.load %arg5[%c0_24, %c1, %c0_25] : memref<8x8x32xf32, #tpu.memory_space<vmem>>, vector<8x1x32xf32>
    tpu.vector_store %arg5[%c0_24, %c1, %c0_25], %77 {strides = array<i32>} : memref<8x8x32xf32, #tpu.memory_space<vmem>>, vector<8x1x32xf32>,
    %79 = vector.extract_strided_slice %11 {offsets = [0, 2, 0], sizes = [8, 1, 128], strides = [1, 1, 1]} : vector<8x8x128xf32> to vector<8x1x128xf32>
    %80 = vector.shape_cast %79 : vector<8x1x128xf32> to vector<8x128xf32>
    %81 = arith.truncf %76 : vector<8x32xf32> to vector<8x32xbf16>
    %cst_26 = arith.constant dense<0.000000e+00> : vector<8x128xf32>
    %82 = tpu.matmul %81, %12, %cst_26 {dimension_numbers = #tpu.dot_dimension_numbers<[1], [0], [0], [1], [0, 0, 1, 1], [], []>} : vector<8x32xbf16>, vector<32x128xbf16>, vector<8x128xf32> -> vector<8x128xf32>
    %83 = arith.addf %80, %82 : vector<8x128xf32>
    %84 = vector.extract_strided_slice %83 {offsets = [0, 0], sizes = [8, 32], strides = [1, 1]} : vector<8x128xf32> to vector<8x32xf32>
    %85 = arith.negf %84 : vector<8x32xf32>
    %86 = math.exp %85 : vector<8x32xf32>
    %cst_27 = arith.constant 1.000000e+00 : f32
    %87 = vector.broadcast %cst_27 : f32 to vector<8x32xf32>
    %88 = arith.addf %87, %86 : vector<8x32xf32>
    %89 = arith.divf %87, %88 : vector<8x32xf32>
    %90 = vector.extract_strided_slice %83 {offsets = [0, 32], sizes = [8, 32], strides = [1, 1]} : vector<8x128xf32> to vector<8x32xf32>
    %91 = math.tanh %90 : vector<8x32xf32>
    %92 = vector.extract_strided_slice %83 {offsets = [0, 64], sizes = [8, 32], strides = [1, 1]} : vector<8x128xf32> to vector<8x32xf32>
    %93 = arith.negf %92 : vector<8x32xf32>
    %94 = math.exp %93 : vector<8x32xf32>
    %cst_28 = arith.constant 1.000000e+00 : f32
    %95 = vector.broadcast %cst_28 : f32 to vector<8x32xf32>
    %96 = arith.addf %95, %94 : vector<8x32xf32>
    %97 = arith.divf %95, %96 : vector<8x32xf32>
    %98 = vector.extract_strided_slice %83 {offsets = [0, 96], sizes = [8, 32], strides = [1, 1]} : vector<8x128xf32> to vector<8x32xf32>
    %99 = arith.negf %98 : vector<8x32xf32>
    %100 = math.exp %99 : vector<8x32xf32>
    %cst_29 = arith.constant 1.000000e+00 : f32
    %101 = vector.broadcast %cst_29 : f32 to vector<8x32xf32>
    %102 = arith.addf %101, %100 : vector<8x32xf32>
    %103 = arith.divf %101, %102 : vector<8x32xf32>
    %104 = arith.mulf %89, %74 : vector<8x32xf32>
    %105 = arith.mulf %97, %91 : vector<8x32xf32>
    %106 = arith.addf %104, %105 : vector<8x32xf32>
    %107 = math.tanh %106 : vector<8x32xf32>
    %108 = arith.mulf %103, %107 : vector<8x32xf32>
    %109 = vector.shape_cast %108 : vector<8x32xf32> to vector<8x1x32xf32>
    %c0_30 = arith.constant 0 : index
    %c2 = arith.constant 2 : index
    %c0_31 = arith.constant 0 : index
    %110 = vector.load %arg5[%c0_30, %c2, %c0_31] : memref<8x8x32xf32, #tpu.memory_space<vmem>>, vector<8x1x32xf32>
    tpu.vector_store %arg5[%c0_30, %c2, %c0_31], %109 {strides = array<i32>} : memref<8x8x32xf32, #tpu.memory_space<vmem>>, vector<8x1x32xf32>,
    %111 = vector.extract_strided_slice %11 {offsets = [0, 3, 0], sizes = [8, 1, 128], strides = [1, 1, 1]} : vector<8x8x128xf32> to vector<8x1x128xf32>
    %112 = vector.shape_cast %111 : vector<8x1x128xf32> to vector<8x128xf32>
    %113 = arith.truncf %108 : vector<8x32xf32> to vector<8x32xbf16>
    %cst_32 = arith.constant dense<0.000000e+00> : vector<8x128xf32>
    %114 = tpu.matmul %113, %12, %cst_32 {dimension_numbers = #tpu.dot_dimension_numbers<[1], [0], [0], [1], [0, 0, 1, 1], [], []>} : vector<8x32xbf16>, vector<32x128xbf16>, vector<8x128xf32> -> vector<8x128xf32>
    %115 = arith.addf %112, %114 : vector<8x128xf32>
    %116 = vector.extract_strided_slice %115 {offsets = [0, 0], sizes = [8, 32], strides = [1, 1]} : vector<8x128xf32> to vector<8x32xf32>
    %117 = arith.negf %116 : vector<8x32xf32>
    %118 = math.exp %117 : vector<8x32xf32>
    %cst_33 = arith.constant 1.000000e+00 : f32
    %119 = vector.broadcast %cst_33 : f32 to vector<8x32xf32>
    %120 = arith.addf %119, %118 : vector<8x32xf32>
    %121 = arith.divf %119, %120 : vector<8x32xf32>
    %122 = vector.extract_strided_slice %115 {offsets = [0, 32], sizes = [8, 32], strides = [1, 1]} : vector<8x128xf32> to vector<8x32xf32>
    %123 = math.tanh %122 : vector<8x32xf32>
    %124 = vector.extract_strided_slice %115 {offsets = [0, 64], sizes = [8, 32], strides = [1, 1]} : vector<8x128xf32> to vector<8x32xf32>
    %125 = arith.negf %124 : vector<8x32xf32>
    %126 = math.exp %125 : vector<8x32xf32>
    %cst_34 = arith.constant 1.000000e+00 : f32
    %127 = vector.broadcast %cst_34 : f32 to vector<8x32xf32>
    %128 = arith.addf %127, %126 : vector<8x32xf32>
    %129 = arith.divf %127, %128 : vector<8x32xf32>
    %130 = vector.extract_strided_slice %115 {offsets = [0, 96], sizes = [8, 32], strides = [1, 1]} : vector<8x128xf32> to vector<8x32xf32>
    %131 = arith.negf %130 : vector<8x32xf32>
    %132 = math.exp %131 : vector<8x32xf32>
    %cst_35 = arith.constant 1.000000e+00 : f32
    %133 = vector.broadcast %cst_35 : f32 to vector<8x32xf32>
    %134 = arith.addf %133, %132 : vector<8x32xf32>
    %135 = arith.divf %133, %134 : vector<8x32xf32>
    %136 = arith.mulf %121, %106 : vector<8x32xf32>
    %137 = arith.mulf %129, %123 : vector<8x32xf32>
    %138 = arith.addf %136, %137 : vector<8x32xf32>
    %139 = math.tanh %138 : vector<8x32xf32>
    %140 = arith.mulf %135, %139 : vector<8x32xf32>
    %141 = vector.shape_cast %140 : vector<8x32xf32> to vector<8x1x32xf32>
    %c0_36 = arith.constant 0 : index
    %c3 = arith.constant 3 : index
    %c0_37 = arith.constant 0 : index
    %142 = vector.load %arg5[%c0_36, %c3, %c0_37] : memref<8x8x32xf32, #tpu.memory_space<vmem>>, vector<8x1x32xf32>
    tpu.vector_store %arg5[%c0_36, %c3, %c0_37], %141 {strides = array<i32>} : memref<8x8x32xf32, #tpu.memory_space<vmem>>, vector<8x1x32xf32>,
    %143 = vector.extract_strided_slice %11 {offsets = [0, 4, 0], sizes = [8, 1, 128], strides = [1, 1, 1]} : vector<8x8x128xf32> to vector<8x1x128xf32>
    %144 = vector.shape_cast %143 : vector<8x1x128xf32> to vector<8x128xf32>
    %145 = arith.truncf %140 : vector<8x32xf32> to vector<8x32xbf16>
    %cst_38 = arith.constant dense<0.000000e+00> : vector<8x128xf32>
    %146 = tpu.matmul %145, %12, %cst_38 {dimension_numbers = #tpu.dot_dimension_numbers<[1], [0], [0], [1], [0, 0, 1, 1], [], []>} : vector<8x32xbf16>, vector<32x128xbf16>, vector<8x128xf32> -> vector<8x128xf32>
    %147 = arith.addf %144, %146 : vector<8x128xf32>
    %148 = vector.extract_strided_slice %147 {offsets = [0, 0], sizes = [8, 32], strides = [1, 1]} : vector<8x128xf32> to vector<8x32xf32>
    %149 = arith.negf %148 : vector<8x32xf32>
    %150 = math.exp %149 : vector<8x32xf32>
    %cst_39 = arith.constant 1.000000e+00 : f32
    %151 = vector.broadcast %cst_39 : f32 to vector<8x32xf32>
    %152 = arith.addf %151, %150 : vector<8x32xf32>
    %153 = arith.divf %151, %152 : vector<8x32xf32>
    %154 = vector.extract_strided_slice %147 {offsets = [0, 32], sizes = [8, 32], strides = [1, 1]} : vector<8x128xf32> to vector<8x32xf32>
    %155 = math.tanh %154 : vector<8x32xf32>
    %156 = vector.extract_strided_slice %147 {offsets = [0, 64], sizes = [8, 32], strides = [1, 1]} : vector<8x128xf32> to vector<8x32xf32>
    %157 = arith.negf %156 : vector<8x32xf32>
    %158 = math.exp %157 : vector<8x32xf32>
    %cst_40 = arith.constant 1.000000e+00 : f32
    %159 = vector.broadcast %cst_40 : f32 to vector<8x32xf32>
    %160 = arith.addf %159, %158 : vector<8x32xf32>
    %161 = arith.divf %159, %160 : vector<8x32xf32>
    %162 = vector.extract_strided_slice %147 {offsets = [0, 96], sizes = [8, 32], strides = [1, 1]} : vector<8x128xf32> to vector<8x32xf32>
    %163 = arith.negf %162 : vector<8x32xf32>
    %164 = math.exp %163 : vector<8x32xf32>
    %cst_41 = arith.constant 1.000000e+00 : f32
    %165 = vector.broadcast %cst_41 : f32 to vector<8x32xf32>
    %166 = arith.addf %165, %164 : vector<8x32xf32>
    %167 = arith.divf %165, %166 : vector<8x32xf32>
    %168 = arith.mulf %153, %138 : vector<8x32xf32>
    %169 = arith.mulf %161, %155 : vector<8x32xf32>
    %170 = arith.addf %168, %169 : vector<8x32xf32>
    %171 = math.tanh %170 : vector<8x32xf32>
    %172 = arith.mulf %167, %171 : vector<8x32xf32>
    %173 = vector.shape_cast %172 : vector<8x32xf32> to vector<8x1x32xf32>
    %c0_42 = arith.constant 0 : index
    %c4 = arith.constant 4 : index
    %c0_43 = arith.constant 0 : index
    %174 = vector.load %arg5[%c0_42, %c4, %c0_43] : memref<8x8x32xf32, #tpu.memory_space<vmem>>, vector<8x1x32xf32>
    tpu.vector_store %arg5[%c0_42, %c4, %c0_43], %173 {strides = array<i32>} : memref<8x8x32xf32, #tpu.memory_space<vmem>>, vector<8x1x32xf32>,
    %175 = vector.extract_strided_slice %11 {offsets = [0, 5, 0], sizes = [8, 1, 128], strides = [1, 1, 1]} : vector<8x8x128xf32> to vector<8x1x128xf32>
    %176 = vector.shape_cast %175 : vector<8x1x128xf32> to vector<8x128xf32>
    %177 = arith.truncf %172 : vector<8x32xf32> to vector<8x32xbf16>
    %cst_44 = arith.constant dense<0.000000e+00> : vector<8x128xf32>
    %178 = tpu.matmul %177, %12, %cst_44 {dimension_numbers = #tpu.dot_dimension_numbers<[1], [0], [0], [1], [0, 0, 1, 1], [], []>} : vector<8x32xbf16>, vector<32x128xbf16>, vector<8x128xf32> -> vector<8x128xf32>
    %179 = arith.addf %176, %178 : vector<8x128xf32>
    %180 = vector.extract_strided_slice %179 {offsets = [0, 0], sizes = [8, 32], strides = [1, 1]} : vector<8x128xf32> to vector<8x32xf32>
    %181 = arith.negf %180 : vector<8x32xf32>
    %182 = math.exp %181 : vector<8x32xf32>
    %cst_45 = arith.constant 1.000000e+00 : f32
    %183 = vector.broadcast %cst_45 : f32 to vector<8x32xf32>
    %184 = arith.addf %183, %182 : vector<8x32xf32>
    %185 = arith.divf %183, %184 : vector<8x32xf32>
    %186 = vector.extract_strided_slice %179 {offsets = [0, 32], sizes = [8, 32], strides = [1, 1]} : vector<8x128xf32> to vector<8x32xf32>
    %187 = math.tanh %186 : vector<8x32xf32>
    %188 = vector.extract_strided_slice %179 {offsets = [0, 64], sizes = [8, 32], strides = [1, 1]} : vector<8x128xf32> to vector<8x32xf32>
    %189 = arith.negf %188 : vector<8x32xf32>
    %190 = math.exp %189 : vector<8x32xf32>
    %cst_46 = arith.constant 1.000000e+00 : f32
    %191 = vector.broadcast %cst_46 : f32 to vector<8x32xf32>
    %192 = arith.addf %191, %190 : vector<8x32xf32>
    %193 = arith.divf %191, %192 : vector<8x32xf32>
    %194 = vector.extract_strided_slice %179 {offsets = [0, 96], sizes = [8, 32], strides = [1, 1]} : vector<8x128xf32> to vector<8x32xf32>
    %195 = arith.negf %194 : vector<8x32xf32>
    %196 = math.exp %195 : vector<8x32xf32>
    %cst_47 = arith.constant 1.000000e+00 : f32
    %197 = vector.broadcast %cst_47 : f32 to vector<8x32xf32>
    %198 = arith.addf %197, %196 : vector<8x32xf32>
    %199 = arith.divf %197, %198 : vector<8x32xf32>
    %200 = arith.mulf %185, %170 : vector<8x32xf32>
    %201 = arith.mulf %193, %187 : vector<8x32xf32>
    %202 = arith.addf %200, %201 : vector<8x32xf32>
    %203 = math.tanh %202 : vector<8x32xf32>
    %204 = arith.mulf %199, %203 : vector<8x32xf32>
    %205 = vector.shape_cast %204 : vector<8x32xf32> to vector<8x1x32xf32>
    %c0_48 = arith.constant 0 : index
    %c5 = arith.constant 5 : index
    %c0_49 = arith.constant 0 : index
    %206 = vector.load %arg5[%c0_48, %c5, %c0_49] : memref<8x8x32xf32, #tpu.memory_space<vmem>>, vector<8x1x32xf32>
    tpu.vector_store %arg5[%c0_48, %c5, %c0_49], %205 {strides = array<i32>} : memref<8x8x32xf32, #tpu.memory_space<vmem>>, vector<8x1x32xf32>,
    %207 = vector.extract_strided_slice %11 {offsets = [0, 6, 0], sizes = [8, 1, 128], strides = [1, 1, 1]} : vector<8x8x128xf32> to vector<8x1x128xf32>
    %208 = vector.shape_cast %207 : vector<8x1x128xf32> to vector<8x128xf32>
    %209 = arith.truncf %204 : vector<8x32xf32> to vector<8x32xbf16>
    %cst_50 = arith.constant dense<0.000000e+00> : vector<8x128xf32>
    %210 = tpu.matmul %209, %12, %cst_50 {dimension_numbers = #tpu.dot_dimension_numbers<[1], [0], [0], [1], [0, 0, 1, 1], [], []>} : vector<8x32xbf16>, vector<32x128xbf16>, vector<8x128xf32> -> vector<8x128xf32>
    %211 = arith.addf %208, %210 : vector<8x128xf32>
    %212 = vector.extract_strided_slice %211 {offsets = [0, 0], sizes = [8, 32], strides = [1, 1]} : vector<8x128xf32> to vector<8x32xf32>
    %213 = arith.negf %212 : vector<8x32xf32>
    %214 = math.exp %213 : vector<8x32xf32>
    %cst_51 = arith.constant 1.000000e+00 : f32
    %215 = vector.broadcast %cst_51 : f32 to vector<8x32xf32>
    %216 = arith.addf %215, %214 : vector<8x32xf32>
    %217 = arith.divf %215, %216 : vector<8x32xf32>
    %218 = vector.extract_strided_slice %211 {offsets = [0, 32], sizes = [8, 32], strides = [1, 1]} : vector<8x128xf32> to vector<8x32xf32>
    %219 = math.tanh %218 : vector<8x32xf32>
    %220 = vector.extract_strided_slice %211 {offsets = [0, 64], sizes = [8, 32], strides = [1, 1]} : vector<8x128xf32> to vector<8x32xf32>
    %221 = arith.negf %220 : vector<8x32xf32>
    %222 = math.exp %221 : vector<8x32xf32>
    %cst_52 = arith.constant 1.000000e+00 : f32
    %223 = vector.broadcast %cst_52 : f32 to vector<8x32xf32>
    %224 = arith.addf %223, %222 : vector<8x32xf32>
    %225 = arith.divf %223, %224 : vector<8x32xf32>
    %226 = vector.extract_strided_slice %211 {offsets = [0, 96], sizes = [8, 32], strides = [1, 1]} : vector<8x128xf32> to vector<8x32xf32>
    %227 = arith.negf %226 : vector<8x32xf32>
    %228 = math.exp %227 : vector<8x32xf32>
    %cst_53 = arith.constant 1.000000e+00 : f32
    %229 = vector.broadcast %cst_53 : f32 to vector<8x32xf32>
    %230 = arith.addf %229, %228 : vector<8x32xf32>
    %231 = arith.divf %229, %230 : vector<8x32xf32>
    %232 = arith.mulf %217, %202 : vector<8x32xf32>
    %233 = arith.mulf %225, %219 : vector<8x32xf32>
    %234 = arith.addf %232, %233 : vector<8x32xf32>
    %235 = math.tanh %234 : vector<8x32xf32>
    %236 = arith.mulf %231, %235 : vector<8x32xf32>
    %237 = vector.shape_cast %236 : vector<8x32xf32> to vector<8x1x32xf32>
    %c0_54 = arith.constant 0 : index
    %c6 = arith.constant 6 : index
    %c0_55 = arith.constant 0 : index
    %238 = vector.load %arg5[%c0_54, %c6, %c0_55] : memref<8x8x32xf32, #tpu.memory_space<vmem>>, vector<8x1x32xf32>
    tpu.vector_store %arg5[%c0_54, %c6, %c0_55], %237 {strides = array<i32>} : memref<8x8x32xf32, #tpu.memory_space<vmem>>, vector<8x1x32xf32>,
    %239 = vector.extract_strided_slice %11 {offsets = [0, 7, 0], sizes = [8, 1, 128], strides = [1, 1, 1]} : vector<8x8x128xf32> to vector<8x1x128xf32>
    %240 = vector.shape_cast %239 : vector<8x1x128xf32> to vector<8x128xf32>
    %241 = arith.truncf %236 : vector<8x32xf32> to vector<8x32xbf16>
    %cst_56 = arith.constant dense<0.000000e+00> : vector<8x128xf32>
    %242 = tpu.matmul %241, %12, %cst_56 {dimension_numbers = #tpu.dot_dimension_numbers<[1], [0], [0], [1], [0, 0, 1, 1], [], []>} : vector<8x32xbf16>, vector<32x128xbf16>, vector<8x128xf32> -> vector<8x128xf32>
    %243 = arith.addf %240, %242 : vector<8x128xf32>
    %244 = vector.extract_strided_slice %243 {offsets = [0, 0], sizes = [8, 32], strides = [1, 1]} : vector<8x128xf32> to vector<8x32xf32>
    %245 = arith.negf %244 : vector<8x32xf32>
    %246 = math.exp %245 : vector<8x32xf32>
    %cst_57 = arith.constant 1.000000e+00 : f32
    %247 = vector.broadcast %cst_57 : f32 to vector<8x32xf32>
    %248 = arith.addf %247, %246 : vector<8x32xf32>
    %249 = arith.divf %247, %248 : vector<8x32xf32>
    %250 = vector.extract_strided_slice %243 {offsets = [0, 32], sizes = [8, 32], strides = [1, 1]} : vector<8x128xf32> to vector<8x32xf32>
    %251 = math.tanh %250 : vector<8x32xf32>
    %252 = vector.extract_strided_slice %243 {offsets = [0, 64], sizes = [8, 32], strides = [1, 1]} : vector<8x128xf32> to vector<8x32xf32>
    %253 = arith.negf %252 : vector<8x32xf32>
    %254 = math.exp %253 : vector<8x32xf32>
    %cst_58 = arith.constant 1.000000e+00 : f32
    %255 = vector.broadcast %cst_58 : f32 to vector<8x32xf32>
    %256 = arith.addf %255, %254 : vector<8x32xf32>
    %257 = arith.divf %255, %256 : vector<8x32xf32>
    %258 = vector.extract_strided_slice %243 {offsets = [0, 96], sizes = [8, 32], strides = [1, 1]} : vector<8x128xf32> to vector<8x32xf32>
    %259 = arith.negf %258 : vector<8x32xf32>
    %260 = math.exp %259 : vector<8x32xf32>
    %cst_59 = arith.constant 1.000000e+00 : f32
    %261 = vector.broadcast %cst_59 : f32 to vector<8x32xf32>
    %262 = arith.addf %261, %260 : vector<8x32xf32>
    %263 = arith.divf %261, %262 : vector<8x32xf32>
    %264 = arith.mulf %249, %234 : vector<8x32xf32>
    %265 = arith.mulf %257, %251 : vector<8x32xf32>
    %266 = arith.addf %264, %265 : vector<8x32xf32>
    %267 = math.tanh %266 : vector<8x32xf32>
    %268 = arith.mulf %263, %267 : vector<8x32xf32>
    %269 = vector.shape_cast %268 : vector<8x32xf32> to vector<8x1x32xf32>
    %c0_60 = arith.constant 0 : index
    %c7 = arith.constant 7 : index
    %c0_61 = arith.constant 0 : index
    %270 = vector.load %arg5[%c0_60, %c7, %c0_61] : memref<8x8x32xf32, #tpu.memory_space<vmem>>, vector<8x1x32xf32>
    tpu.vector_store %arg5[%c0_60, %c7, %c0_61], %269 {strides = array<i32>} : memref<8x8x32xf32, #tpu.memory_space<vmem>>, vector<8x1x32xf32>,
    %c0_62 = arith.constant 0 : index
    %c0_63 = arith.constant 0 : index
    %271 = vector.load %arg8[%c0_62, %c0_63] : memref<8x32xf32, #tpu.memory_space<vmem>>, vector<8x32xf32>
    tpu.vector_store %arg8[%c0_62, %c0_63], %268 {strides = array<i32>} : memref<8x32xf32, #tpu.memory_space<vmem>>, vector<8x32xf32>,
    %c0_64 = arith.constant 0 : index
    %c0_65 = arith.constant 0 : index
    %272 = vector.load %arg9[%c0_64, %c0_65] : memref<8x32xf32, #tpu.memory_space<vmem>>, vector<8x32xf32>
    tpu.vector_store %arg9[%c0_64, %c0_65], %266 {strides = array<i32>} : memref<8x32xf32, #tpu.memory_space<vmem>>, vector<8x32xf32>,
    %c0_i32_66 = arith.constant 0 : i32
    %273 = arith.cmpi eq, %arg0, %c0_i32_66 : i32
    %274 = arith.extui %273 : i1 to i32
    %c0_i32_67 = arith.constant 0 : i32
    %275 = arith.cmpi ne, %274, %c0_i32_67 : i32
    scf.if %275 {
      %c0_68 = arith.constant 0 : index
      %c0_69 = arith.constant 0 : index
      %276 = vector.load %arg6[%c0_68, %c0_69] : memref<8x32xf32, #tpu.memory_space<vmem>>, vector<8x32xf32>
      tpu.vector_store %arg6[%c0_68, %c0_69], %268 {strides = array<i32>} : memref<8x32xf32, #tpu.memory_space<vmem>>, vector<8x32xf32>,
      %c0_70 = arith.constant 0 : index
      %c0_71 = arith.constant 0 : index
      %277 = vector.load %arg7[%c0_70, %c0_71] : memref<8x32xf32, #tpu.memory_space<vmem>>, vector<8x32xf32>
      tpu.vector_store %arg7[%c0_70, %c0_71], %266 {strides = array<i32>} : memref<8x32xf32, #tpu.memory_space<vmem>>, vector<8x32xf32>,
    } else {
    }
    return
  }
  func.func @transform_0(%arg0: i32) -> (i32, i32, i32) {
    %c0_i32 = arith.constant 0 : i32
    %c0_i32_0 = arith.constant 0 : i32
    %c0_i32_1 = arith.constant 0 : i32
    return %c0_i32, %arg0, %c0_i32_0 : i32, i32, i32
  }
  func.func @transform_1(%arg0: i32) -> (i32, i32) {
    %c0_i32 = arith.constant 0 : i32
    %c0_i32_0 = arith.constant 0 : i32
    %c0_i32_1 = arith.constant 0 : i32
    return %c0_i32, %c0_i32_0 : i32, i32
  }
  func.func @transform_2(%arg0: i32) -> (i32, i32) {
    %c0_i32 = arith.constant 0 : i32
    %c0_i32_0 = arith.constant 0 : i32
    %c0_i32_1 = arith.constant 0 : i32
    return %c0_i32, %c0_i32_0 : i32, i32
  }
  func.func @transform_3(%arg0: i32) -> (i32, i32) {
    %c0_i32 = arith.constant 0 : i32
    %c0_i32_0 = arith.constant 0 : i32
    %c0_i32_1 = arith.constant 0 : i32
    return %c0_i32, %c0_i32_0 : i32, i32
  }
  func.func @transform_4(%arg0: i32) -> (i32, i32, i32) {
    %c0_i32 = arith.constant 0 : i32
    %c0_i32_0 = arith.constant 0 : i32
    %c0_i32_1 = arith.constant 0 : i32
    return %c0_i32, %arg0, %c0_i32_0 : i32, i32, i32
  }
  func.func @transform_5(%arg0: i32) -> (i32, i32) {
    %c0_i32 = arith.constant 0 : i32
    %c0_i32_0 = arith.constant 0 : i32
    %c0_i32_1 = arith.constant 0 : i32
    return %c0_i32, %c0_i32_0 : i32, i32
  }
  func.func @transform_6(%arg0: i32) -> (i32, i32) {
    %c0_i32 = arith.constant 0 : i32
    %c0_i32_0 = arith.constant 0 : i32
    %c0_i32_1 = arith.constant 0 : i32
    return %c0_i32, %c0_i32_0 : i32, i32
  }
}

</mosaic_0001>

<llo_original>
// kernel: lstm_forward.3
$region0: #{lstm_forward.3}
  #allocation0 [shape = 'u32[]', space=smem, size = 0x4, offset = 0x4, fixed_abs, tag = 'smem constant byte address 0x4 - core index']
  #allocation1 [shape = 'u32[144,128]{1,0:T(1,128)}', space=vmem, size = 0x12000, scoped, tag = 'internal scratch']
  #allocation2 [shape = 'f32[8,32]{1,0:T(8,128)}', space=vmem, size = 0x1000, scoped, tag = 'scratch operand']
  #allocation3 [shape = 'f32[8,32]{1,0:T(8,128)}', space=vmem, size = 0x1000, scoped, tag = 'scratch operand']
  %s0 = inlined_call_operand.vmem [shape: f32[8,8,32], index: 0, kind: input, shape index: {}]
  %s1 = inlined_call_operand.vmem [shape: bf16[32,128], index: 1, kind: input, shape index: {}]
  %s2 = inlined_call_operand.vmem [shape: bf16[32,128], index: 2, kind: input, shape index: {}]
  %s3 = inlined_call_operand.vmem [shape: f32[1,128], index: 3, kind: input, shape index: {}]
  %s4 = inlined_call_operand.vmem [shape: f32[8,8,32], index: 4, kind: output, shape index: {0}]
  %s5 = inlined_call_operand.vmem [shape: f32[8,32], index: 5, kind: output, shape index: {1}]
  %s6 = inlined_call_operand.vmem [shape: f32[8,32], index: 6, kind: output, shape index: {2}]
  %7 = xla_tuple %s4, %s5, %s6
  %s8 = sld [smem:[#allocation0]]
  $region50: #{lstm_forward.3} parent=0
    _
  %s10 = ssub.s32 1, %s8
  %s11 = scalar_select 0, %s10, %s8
  // Predicated region
  $region2: #{lstm_forward.3} parent=0 // pred_check
    _
  $region3: #{lstm_forward.3} parent=0 // pred_check_branch
    %13 = sbr.rel (0) target = $region5
  $region4: #{lstm_forward.3} parent=0 // pred_region
    _
  $region5: #{lstm_forward.3} parent=0 // pred_fallthru
    _
  // Predicated region
  $region6: #{lstm_forward.3} parent=0 // pred_check
    _
  $region7: #{lstm_forward.3} parent=0 // pred_check_branch
    %15 = sbr.rel (0) target = $region9
  $region8: #{lstm_forward.3} parent=0 // pred_region
    _
  $region9: #{lstm_forward.3} parent=0 // pred_fallthru
    _
  // Predicated region
  $region10: #{lstm_forward.3} parent=0 // pred_check
    _
  $region11: #{lstm_forward.3} parent=0 // pred_check_branch
    %17 = sbr.rel (0) target = $region13
  $region12: #{lstm_forward.3} parent=0 // pred_region
    _
  $region13: #{lstm_forward.3} parent=0 // pred_fallthru
    _
  // Predicated region
  $region14: #{lstm_forward.3} parent=0 // pred_check
    _
  $region15: #{lstm_forward.3} parent=0 // pred_check_branch
    %19 = sbr.rel (0) target = $region17
  $region16: #{lstm_forward.3} parent=0 // pred_region
    _
  $region17: #{lstm_forward.3} parent=0 // pred_fallthru
    _
  %p21 = scmp.eq.s32.totalorder 0, 0
  // Predicated region
  $region18: #{lstm_forward.3} parent=0 // pred_check
    %p22 = pneg %p21
  $region19: #{lstm_forward.3} parent=0 // pred_check_branch
    %24 = sbr.rel (%p22) target = $region21
  $region20: #{lstm_forward.3} parent=0 // pred_region
    %vm25 = vcmask 261120
    %26 = vst.msk [vmem:[#allocation2] sm:$0xff] %vm25, 0.0
    %27 = vst.msk [vmem:[#allocation3] sm:$0xff] %vm25, 0.0
  $region21: #{lstm_forward.3} parent=0 // pred_fallthru
    _
  %v28 = vld [vmem:[%s0] sm:$0xff]
  %v29 = vld [vmem:[%s0 + $0x8] sm:$0xff]
  %v30 = vld [vmem:[%s0 + $0x10] sm:$0xff]
  %v31 = vld [vmem:[%s0 + $0x18] sm:$0xff]
  %v32 = vld [vmem:[%s0 + $0x20] sm:$0xff]
  %v33 = vld [vmem:[%s0 + $0x28] sm:$0xff]
  %v34 = vld [vmem:[%s0 + $0x30] sm:$0xff]
  %v35 = vld [vmem:[%s0 + $0x38] sm:$0xff]
  %v36 = vpack.c.bf16 %v28, %v28
  %v37 = vpack.c.bf16 %v29, %v29
  %v38 = vpack.c.bf16 %v30, %v30
  %v39 = vpack.c.bf16 %v31, %v31
  %v40 = vpack.c.bf16 %v32, %v32
  %v41 = vpack.c.bf16 %v33, %v33
  %v42 = vpack.c.bf16 %v34, %v34
  %v43 = vpack.c.bf16 %v35, %v35
  %v44 = vld [vmem:[%s1] sm:$0xf]
  %v45 = vld [vmem:[%s1 + $0x4] sm:$0xf]
  %v46 = vld [vmem:[%s1 + $0x8] sm:$0xf]
  %v47 = vld [vmem:[%s1 + $0xc] sm:$0xf]
  %v48 = vld [vmem:[%s3] sm:$0x1]
  %v50 = vlaneseq
  %v51 = vshrl.u32 %v50, 7
  %v52 = vsub.s32 0, %v51
  %v53 = vrot.slane %v48, %v52
  %v63 = vunpack.c.l.b16 %v36
  %v64 = vunpack.c.l.b16 %v37
  %v65 = vunpack.c.l.b16 %v38
  %v66 = vunpack.c.l.b16 %v39
  %v67 = vunpack.c.l.b16 %v40
  %v68 = vunpack.c.l.b16 %v41
  %v69 = vunpack.c.l.b16 %v42
  %v70 = vunpack.c.l.b16 %v43
  %v71 = vpack.c.b16 %v64, %v63
  %v72 = vpack.c.b16 %v66, %v65
  %v73 = vpack.c.b16 %v68, %v67
  %v74 = vpack.c.b16 %v70, %v69
  %v79 = vunpack.c.l.b16 %v44
  %v80 = vunpack.c.l.b16 %v45
  %v81 = vunpack.c.l.b16 %v46
  %v82 = vunpack.c.l.b16 %v47
  %v83 = vpack.c.b16 %v80, %v79
  %v84 = vpack.c.b16 %v82, %v81
  %vm87 = vcmask 261120
  %v89 = vsel %vm87, %v71, 0
  %v92 = vsel %vm87, %v72, 0
  %v95 = vsel %vm87, %v73, 0
  %v98 = vsel %vm87, %v74, 0
  %100 = vmatprep.subr.bf16.mxu0 0
  %101 = vmatpush1.bf16.msra.mxu0 %v83
  %102 = vmatprep.subr.bf16.mxu0 0
  %103 = vmatpush1.bf16.msra.mxu0 %v84
  %104 = vmatprep.subr.bf16.mxu0 0
  %105 = vmatpush1.bf16.msra.mxu0 0
  %106 = vmatprep.subr.bf16.mxu0 0
  %107 = vmatpush1.bf16.msra.mxu0 0
  %108 = vmatprep.subr.bf16.mxu0 0
  %109 = vmatpush1.bf16.msra.mxu0 0
  %110 = vmatprep.subr.bf16.mxu0 0
  %111 = vmatpush1.bf16.msra.mxu0 0
  %112 = vmatprep.subr.bf16.mxu0 0
  %113 = vmatpush1.bf16.msra.mxu0 0
  %114 = vmatprep.subr.bf16.mxu0 0
  %115 = vmatpush1.bf16.msra.mxu0 0
  %116 = vmatprep.subr.bf16.mxu0 0
  %117 = vmatpush1.bf16.msra.mxu0 0
  %118 = vmatprep.subr.bf16.mxu0 0
  %119 = vmatpush1.bf16.msra.mxu0 0
  %120 = vmatprep.subr.bf16.mxu0 0
  %121 = vmatpush1.bf16.msra.mxu0 0
  %122 = vmatprep.subr.bf16.mxu0 0
  %123 = vmatpush1.bf16.msra.mxu0 0
  %124 = vmatprep.subr.bf16.mxu0 0
  %125 = vmatpush1.bf16.msra.mxu0 0
  %126 = vmatprep.subr.bf16.mxu0 0
  %127 = vmatpush1.bf16.msra.mxu0 0
  %128 = vmatprep.subr.bf16.mxu0 0
  %129 = vmatpush1.bf16.msra.mxu0 0
  %130 = vmatprep.subr.bf16.mxu0 0
  %131 = vmatpush1.bf16.msra.mxu0 0
  %132 = vmatprep.mubr.bf16.mxu0 0
  %133 = vmatmul.mubr.bf16.gmra.mrb[0].mxu0 %v89
  %v134 = vpop.f32.mrb[0].mxu0
  %v135 = vadd.f32 %v53, %v134
  %v136 = vpop.f32.mrb[0].mxu0
  %v137 = vpop.f32.mrb[0].mxu0
  %v138 = vadd.f32 %v53, %v137
  %v139 = vpop.f32.mrb[0].mxu0
  %140 = vmatprep.mubr.bf16.mxu0 0
  %141 = vmatmul.mubr.bf16.gmra.mrb[0].mxu0 %v92
  %v142 = vpop.f32.mrb[0].mxu0
  %v143 = vadd.f32 %v53, %v142
  %v144 = vpop.f32.mrb[0].mxu0
  %v145 = vpop.f32.mrb[0].mxu0
  %v146 = vadd.f32 %v53, %v145
  %v147 = vpop.f32.mrb[0].mxu0
  %148 = vmatprep.mubr.bf16.mxu0 0
  %149 = vmatmul.mubr.bf16.gmra.mrb[0].mxu0 %v95
  %v150 = vpop.f32.mrb[0].mxu0
  %v151 = vadd.f32 %v53, %v150
  %v152 = vpop.f32.mrb[0].mxu0
  %v153 = vpop.f32.mrb[0].mxu0
  %v154 = vadd.f32 %v53, %v153
  %v155 = vpop.f32.mrb[0].mxu0
  %156 = vmatprep.mubr.bf16.mxu0 0
  %157 = vmatmul.mubr.bf16.gmra.mrb[0].mxu0 %v98
  %v158 = vpop.f32.mrb[0].mxu0
  %v159 = vadd.f32 %v53, %v158
  %v160 = vpop.f32.mrb[0].mxu0
  %v161 = vpop.f32.mrb[0].mxu0
  %v162 = vadd.f32 %v53, %v161
  %v163 = vpop.f32.mrb[0].mxu0
  %164 = vdwg.mxu0
  %v165 = vld [vmem:[%s2] sm:$0xf]
  %v166 = vld [vmem:[%s2 + $0x4] sm:$0xf]
  %v167 = vld [vmem:[%s2 + $0x8] sm:$0xf]
  %v168 = vld [vmem:[%s2 + $0xc] sm:$0xf]
  %v169 = vld [vmem:[#allocation2] sm:$0xff]
  %v170 = vld [vmem:[#allocation3] sm:$0xff]
  %v171 = vpack.c.bf16 %v169, %v169
  %v176 = vunpack.c.l.b16 %v165
  %v177 = vunpack.c.l.b16 %v166
  %v178 = vunpack.c.l.b16 %v167
  %v179 = vunpack.c.l.b16 %v168
  %v180 = vpack.c.b16 %v177, %v176
  %v181 = vpack.c.b16 %v179, %v178
  %v185 = vsel %vm87, %v171, 0
  %187 = vmatprep.subr.bf16.mxu0 0
  %188 = vmatpush1.bf16.msra.mxu0 %v180
  %189 = vmatprep.subr.bf16.mxu0 0
  %190 = vmatpush1.bf16.msra.mxu0 %v181
  %191 = vmatprep.subr.bf16.mxu0 0
  %192 = vmatpush1.bf16.msra.mxu0 0
  %193 = vmatprep.subr.bf16.mxu0 0
  %194 = vmatpush1.bf16.msra.mxu0 0
  %195 = vmatprep.subr.bf16.mxu0 0
  %196 = vmatpush1.bf16.msra.mxu0 0
  %197 = vmatprep.subr.bf16.mxu0 0
  %198 = vmatpush1.bf16.msra.mxu0 0
  %199 = vmatprep.subr.bf16.mxu0 0
  %200 = vmatpush1.bf16.msra.mxu0 0
  %201 = vmatprep.subr.bf16.mxu0 0
  %202 = vmatpush1.bf16.msra.mxu0 0
  %203 = vmatprep.subr.bf16.mxu0 0
  %204 = vmatpush1.bf16.msra.mxu0 0
  %205 = vmatprep.subr.bf16.mxu0 0
  %206 = vmatpush1.bf16.msra.mxu0 0
  %207 = vmatprep.subr.bf16.mxu0 0
  %208 = vmatpush1.bf16.msra.mxu0 0
  %209 = vmatprep.subr.bf16.mxu0 0
  %210 = vmatpush1.bf16.msra.mxu0 0
  %211 = vmatprep.subr.bf16.mxu0 0
  %212 = vmatpush1.bf16.msra.mxu0 0
  %213 = vmatprep.subr.bf16.mxu0 0
  %214 = vmatpush1.bf16.msra.mxu0 0
  %215 = vmatprep.subr.bf16.mxu0 0
  %216 = vmatpush1.bf16.msra.mxu0 0
  %217 = vmatprep.subr.bf16.mxu0 0
  %218 = vmatpush1.bf16.msra.mxu0 0
  %219 = vmatprep.mubr.bf16.mxu0 0
  %220 = vmatmul.mubr.bf16.gmra.mrb[0].mxu0 %v185
  %v221 = vpop.f32.mrb[0].mxu0
  %v222 = vadd.f32 0.0, %v221
  %v223 = vpop.f32.mrb[0].mxu0
  %v224 = vpop.f32.mrb[0].mxu0
  %v225 = vpop.f32.mrb[0].mxu0
  %226 = vdwg.mxu0
  %v228 = vrot.slane %v222, 1
  %v229 = vrot.slane %v222, 2
  %v230 = vrot.slane %v222, 3
  %v231 = vrot.slane %v222, 4
  %v232 = vrot.slane %v222, 5
  %v233 = vrot.slane %v222, 6
  %v234 = vrot.slane %v222, 7
  %v243 = vadd.f32 %v135, %v222
  %v244 = vadd.f32 %v138, %v228
  %v245 = vadd.f32 %v143, %v229
  %v246 = vadd.f32 %v146, %v230
  %v247 = vadd.f32 %v151, %v231
  %v248 = vadd.f32 %v154, %v232
  %v249 = vadd.f32 %v159, %v233
  %v250 = vadd.f32 %v162, %v234
  %v251 = vxor.u32 %v243, 2147483648
  %v252 = vxor.u32 %v244, 2147483648
  %v253 = vxor.u32 %v245, 2147483648
  %v254 = vxor.u32 %v246, 2147483648
  %v255 = vxor.u32 %v247, 2147483648
  %v256 = vxor.u32 %v248, 2147483648
  %v257 = vxor.u32 %v249, 2147483648
  %v258 = vxor.u32 %v250, 2147483648
  %v259 = vmul.f32 %v251, 1.442695
  %v260 = vpow.pop %v259
  %v261 = vmul.f32 %v252, 1.442695
  %v262 = vpow.pop %v261
  %v263 = vmul.f32 %v253, 1.442695
  %v264 = vpow.pop %v263
  %v265 = vmul.f32 %v254, 1.442695
  %v266 = vpow.pop %v265
  %v267 = vmul.f32 %v255, 1.442695
  %v268 = vpow.pop %v267
  %v269 = vmul.f32 %v256, 1.442695
  %v270 = vpow.pop %v269
  %v271 = vmul.f32 %v257, 1.442695
  %v272 = vpow.pop %v271
  %v273 = vmul.f32 %v258, 1.442695
  %v274 = vpow.pop %v273
  %v275 = vadd.f32 %v260, 1.0
  %v276 = vadd.f32 %v262, 1.0
  %v277 = vadd.f32 %v264, 1.0
  %v278 = vadd.f32 %v266, 1.0
  %v279 = vadd.f32 %v268, 1.0
  %v280 = vadd.f32 %v270, 1.0
  %v281 = vadd.f32 %v272, 1.0
  %v282 = vadd.f32 %v274, 1.0
  %v283 = vrcp.pop %v275
  %v284 = vmul.f32 1.0, %v283
  %v285 = vrcp.pop %v276
  %v286 = vmul.f32 1.0, %v285
  %v287 = vrcp.pop %v277
  %v288 = vmul.f32 1.0, %v287
  %v289 = vrcp.pop %v278
  %v290 = vmul.f32 1.0, %v289
  %v291 = vrcp.pop %v279
  %v292 = vmul.f32 1.0, %v291
  %v293 = vrcp.pop %v280
  %v294 = vmul.f32 1.0, %v293
  %v295 = vrcp.pop %v281
  %v296 = vmul.f32 1.0, %v295
  %v297 = vrcp.pop %v282
  %v298 = vmul.f32 1.0, %v297
  %v299 = vtanh.pop %v243
  %v300 = vtanh.pop %v244
  %v301 = vtanh.pop %v245
  %v302 = vtanh.pop %v246
  %v303 = vtanh.pop %v247
  %v304 = vtanh.pop %v248
  %v305 = vtanh.pop %v249
  %v306 = vtanh.pop %v250
  %v308 = vrot.slane %v170, 1
  %v309 = vrot.slane %v170, 2
  %v310 = vrot.slane %v170, 3
  %v311 = vrot.slane %v170, 4
  %v312 = vrot.slane %v170, 5
  %v313 = vrot.slane %v170, 6
  %v314 = vrot.slane %v170, 7
  %v323 = vmul.f32 %v284, %v170
  %v324 = vmul.f32 %v286, %v308
  %v325 = vmul.f32 %v288, %v309
  %v326 = vmul.f32 %v290, %v310
  %v327 = vmul.f32 %v292, %v311
  %v328 = vmul.f32 %v294, %v312
  %v329 = vmul.f32 %v296, %v313
  %v330 = vmul.f32 %v298, %v314
  %339 = vrot.lane.b32.xlu0 %v299, 32
  %v340 = vpop.permute.xlu0 %339
  %341 = vrot.lane.b32.xlu0 %v300, 32
  %v342 = vpop.permute.xlu0 %341
  %343 = vrot.lane.b32.xlu0 %v301, 32
  %v344 = vpop.permute.xlu0 %343
  %345 = vrot.lane.b32.xlu0 %v302, 32
  %v346 = vpop.permute.xlu0 %345
  %347 = vrot.lane.b32.xlu0 %v303, 32
  %v348 = vpop.permute.xlu0 %347
  %349 = vrot.lane.b32.xlu0 %v304, 32
  %v350 = vpop.permute.xlu0 %349
  %351 = vrot.lane.b32.xlu0 %v305, 32
  %v352 = vpop.permute.xlu0 %351
  %353 = vrot.lane.b32.xlu0 %v306, 32
  %v354 = vpop.permute.xlu0 %353
  %v363 = vmul.f32 %v284, %v340
  %v364 = vmul.f32 %v286, %v342
  %v365 = vmul.f32 %v288, %v344
  %v366 = vmul.f32 %v290, %v346
  %v367 = vmul.f32 %v292, %v348
  %v368 = vmul.f32 %v294, %v350
  %v369 = vmul.f32 %v296, %v352
  %v370 = vmul.f32 %v298, %v354
  %379 = vrot.lane.b32.xlu0 %v363, 64
  %v380 = vpop.permute.xlu0 %379
  %381 = vrot.lane.b32.xlu0 %v364, 64
  %v382 = vpop.permute.xlu0 %381
  %383 = vrot.lane.b32.xlu0 %v365, 64
  %v384 = vpop.permute.xlu0 %383
  %385 = vrot.lane.b32.xlu0 %v366, 64
  %v386 = vpop.permute.xlu0 %385
  %387 = vrot.lane.b32.xlu0 %v367, 64
  %v388 = vpop.permute.xlu0 %387
  %389 = vrot.lane.b32.xlu0 %v368, 64
  %v390 = vpop.permute.xlu0 %389
  %391 = vrot.lane.b32.xlu0 %v369, 64
  %v392 = vpop.permute.xlu0 %391
  %393 = vrot.lane.b32.xlu0 %v370, 64
  %v394 = vpop.permute.xlu0 %393
  %v403 = vadd.f32 %v323, %v380
  %v404 = vadd.f32 %v324, %v382
  %v405 = vadd.f32 %v325, %v384
  %v406 = vadd.f32 %v326, %v386
  %v407 = vadd.f32 %v327, %v388
  %v408 = vadd.f32 %v328, %v390
  %v409 = vadd.f32 %v329, %v392
  %v410 = vadd.f32 %v330, %v394
  %v411 = vtanh.pop %v403
  %v412 = vtanh.pop %v404
  %v413 = vtanh.pop %v405
  %v414 = vtanh.pop %v406
  %v415 = vtanh.pop %v407
  %v416 = vtanh.pop %v408
  %v417 = vtanh.pop %v409
  %v418 = vtanh.pop %v410
  %427 = vrot.lane.b32.xlu0 %v411, 96
  %v428 = vpop.permute.xlu0 %427
  %429 = vrot.lane.b32.xlu0 %v412, 96
  %v430 = vpop.permute.xlu0 %429
  %431 = vrot.lane.b32.xlu0 %v413, 96
  %v432 = vpop.permute.xlu0 %431
  %433 = vrot.lane.b32.xlu0 %v414, 96
  %v434 = vpop.permute.xlu0 %433
  %435 = vrot.lane.b32.xlu0 %v415, 96
  %v436 = vpop.permute.xlu0 %435
  %437 = vrot.lane.b32.xlu0 %v416, 96
  %v438 = vpop.permute.xlu0 %437
  %439 = vrot.lane.b32.xlu0 %v417, 96
  %v440 = vpop.permute.xlu0 %439
  %441 = vrot.lane.b32.xlu0 %v418, 96
  %v442 = vpop.permute.xlu0 %441
  %v451 = vmul.f32 %v284, %v428
  %v452 = vmul.f32 %v286, %v430
  %v453 = vmul.f32 %v288, %v432
  %v454 = vmul.f32 %v290, %v434
  %v455 = vmul.f32 %v292, %v436
  %v456 = vmul.f32 %v294, %v438
  %v457 = vmul.f32 %v296, %v440
  %v458 = vmul.f32 %v298, %v442
  %467 = vrot.lane.b32.xlu0 %v451, 32
  %v468 = vpop.permute.xlu0 %467
  %469 = vrot.lane.b32.xlu0 %v452, 32
  %v470 = vpop.permute.xlu0 %469
  %471 = vrot.lane.b32.xlu0 %v453, 32
  %v472 = vpop.permute.xlu0 %471
  %473 = vrot.lane.b32.xlu0 %v454, 32
  %v474 = vpop.permute.xlu0 %473
  %475 = vrot.lane.b32.xlu0 %v455, 32
  %v476 = vpop.permute.xlu0 %475
  %477 = vrot.lane.b32.xlu0 %v456, 32
  %v478 = vpop.permute.xlu0 %477
  %479 = vrot.lane.b32.xlu0 %v457, 32
  %v480 = vpop.permute.xlu0 %479
  %481 = vrot.lane.b32.xlu0 %v458, 32
  %v482 = vpop.permute.xlu0 %481
  %vm491 = vcmask 253952
  %492 = vst.msk [vmem:[%s4] sm:$0x1] %vm491, %v468
  %493 = vst.msk [vmem:[%s4 + $0x8] sm:$0x1] %vm491, %v470
  %494 = vst.msk [vmem:[%s4 + $0x10] sm:$0x1] %vm491, %v472
  %495 = vst.msk [vmem:[%s4 + $0x18] sm:$0x1] %vm491, %v474
  %496 = vst.msk [vmem:[%s4 + $0x20] sm:$0x1] %vm491, %v476
  %497 = vst.msk [vmem:[%s4 + $0x28] sm:$0x1] %vm491, %v478
  %498 = vst.msk [vmem:[%s4 + $0x30] sm:$0x1] %vm491, %v480
  %499 = vst.msk [vmem:[%s4 + $0x38] sm:$0x1] %vm491, %v482
  %v500 = vpack.c.bf16 %v451, %v451
  %v501 = vpack.c.bf16 %v452, %v452
  %v502 = vpack.c.bf16 %v453, %v453
  %v503 = vpack.c.bf16 %v454, %v454
  %v504 = vpack.c.bf16 %v455, %v455
  %v505 = vpack.c.bf16 %v456, %v456
  %v506 = vpack.c.bf16 %v457, %v457
  %v507 = vpack.c.bf16 %v458, %v458
  %v516 = vunpack.c.l.b16 %v500
  %v517 = vunpack.c.l.b16 %v501
  %v518 = vunpack.c.l.b16 %v502
  %v519 = vunpack.c.l.b16 %v503
  %v520 = vunpack.c.l.b16 %v504
  %v521 = vunpack.c.l.b16 %v505
  %v522 = vunpack.c.l.b16 %v506
  %v523 = vunpack.c.l.b16 %v507
  %v524 = vrot.slane %v517, 7
  %vm525 = vcmask 1041409
  %v526 = vsel %vm525, %v524, %v516
  %v527 = vrot.slane %v518, 6
  %vm528 = vcmask 1042434
  %v529 = vsel %vm528, %v527, %v526
  %v530 = vrot.slane %v519, 5
  %vm531 = vcmask 1043459
  %v532 = vsel %vm531, %v530, %v529
  %v533 = vrot.slane %v520, 4
  %vm534 = vcmask 1044484
  %v535 = vsel %vm534, %v533, %v532
  %v536 = vrot.slane %v521, 3
  %vm537 = vcmask 1045509
  %v538 = vsel %vm537, %v536, %v535
  %v539 = vrot.slane %v522, 2
  %vm540 = vcmask 1046534
  %v541 = vsel %vm540, %v539, %v538
  %v542 = vrot.slane %v523, 1
  %vm543 = vcmask 1047559
  %v544 = vsel %vm543, %v542, %v541
  %v545 = vpack.c.b16 %v544, %v544
  %546 = vrot.lane.b32.xlu0 %v545, 32
  %v547 = vpop.permute.xlu0 %546
  %v549 = vsel %vm87, %v547, 0
  %551 = vmatprep.subr.bf16.mxu0 0
  %552 = vmatpush1.bf16.msra.mxu0 %v180
  %553 = vmatprep.subr.bf16.mxu0 0
  %554 = vmatpush1.bf16.msra.mxu0 %v181
  %555 = vmatprep.subr.bf16.mxu0 0
  %556 = vmatpush1.bf16.msra.mxu0 0
  %557 = vmatprep.subr.bf16.mxu0 0
  %558 = vmatpush1.bf16.msra.mxu0 0
  %559 = vmatprep.subr.bf16.mxu0 0
  %560 = vmatpush1.bf16.msra.mxu0 0
  %561 = vmatprep.subr.bf16.mxu0 0
  %562 = vmatpush1.bf16.msra.mxu0 0
  %563 = vmatprep.subr.bf16.mxu0 0
  %564 = vmatpush1.bf16.msra.mxu0 0
  %565 = vmatprep.subr.bf16.mxu0 0
  %566 = vmatpush1.bf16.msra.mxu0 0
  %567 = vmatprep.subr.bf16.mxu0 0
  %568 = vmatpush1.bf16.msra.mxu0 0
  %569 = vmatprep.subr.bf16.mxu0 0
  %570 = vmatpush1.bf16.msra.mxu0 0
  %571 = vmatprep.subr.bf16.mxu0 0
  %572 = vmatpush1.bf16.msra.mxu0 0
  %573 = vmatprep.subr.bf16.mxu0 0
  %574 = vmatpush1.bf16.msra.mxu0 0
  %575 = vmatprep.subr.bf16.mxu0 0
  %576 = vmatpush1.bf16.msra.mxu0 0
  %577 = vmatprep.subr.bf16.mxu0 0
  %578 = vmatpush1.bf16.msra.mxu0 0
  %579 = vmatprep.subr.bf16.mxu0 0
  %580 = vmatpush1.bf16.msra.mxu0 0
  %581 = vmatprep.subr.bf16.mxu0 0
  %582 = vmatpush1.bf16.msra.mxu0 0
  %583 = vmatprep.mubr.bf16.mxu0 0
  %584 = vmatmul.mubr.bf16.gmra.mrb[0].mxu0 %v549
  %v585 = vpop.f32.mrb[0].mxu0
  %v586 = vadd.f32 0.0, %v585
  %v587 = vpop.f32.mrb[0].mxu0
  %v588 = vpop.f32.mrb[0].mxu0
  %v589 = vpop.f32.mrb[0].mxu0
  %590 = vdwg.mxu0
  %v592 = vrot.slane %v586, 7
  %v593 = vrot.slane %v586, 1
  %v594 = vrot.slane %v586, 2
  %v595 = vrot.slane %v586, 3
  %v596 = vrot.slane %v586, 4
  %v597 = vrot.slane %v586, 5
  %v598 = vrot.slane %v586, 6
  %v607 = vadd.f32 %v135, %v592
  %v608 = vadd.f32 %v138, %v586
  %v609 = vadd.f32 %v143, %v593
  %v610 = vadd.f32 %v146, %v594
  %v611 = vadd.f32 %v151, %v595
  %v612 = vadd.f32 %v154, %v596
  %v613 = vadd.f32 %v159, %v597
  %v614 = vadd.f32 %v162, %v598
  %v615 = vxor.u32 %v607, 2147483648
  %v616 = vxor.u32 %v608, 2147483648
  %v617 = vxor.u32 %v609, 2147483648
  %v618 = vxor.u32 %v610, 2147483648
  %v619 = vxor.u32 %v611, 2147483648
  %v620 = vxor.u32 %v612, 2147483648
  %v621 = vxor.u32 %v613, 2147483648
  %v622 = vxor.u32 %v614, 2147483648
  %v623 = vmul.f32 %v615, 1.442695
  %v624 = vpow.pop %v623
  %v625 = vmul.f32 %v616, 1.442695
  %v626 = vpow.pop %v625
  %v627 = vmul.f32 %v617, 1.442695
  %v628 = vpow.pop %v627
  %v629 = vmul.f32 %v618, 1.442695
  %v630 = vpow.pop %v629
  %v631 = vmul.f32 %v619, 1.442695
  %v632 = vpow.pop %v631
  %v633 = vmul.f32 %v620, 1.442695
  %v634 = vpow.pop %v633
  %v635 = vmul.f32 %v621, 1.442695
  %v636 = vpow.pop %v635
  %v637 = vmul.f32 %v622, 1.442695
  %v638 = vpow.pop %v637
  %v639 = vadd.f32 %v624, 1.0
  %v640 = vadd.f32 %v626, 1.0
  %v641 = vadd.f32 %v628, 1.0
  %v642 = vadd.f32 %v630, 1.0
  %v643 = vadd.f32 %v632, 1.0
  %v644 = vadd.f32 %v634, 1.0
  %v645 = vadd.f32 %v636, 1.0
  %v646 = vadd.f32 %v638, 1.0
  %v647 = vrcp.pop %v639
  %v648 = vmul.f32 1.0, %v647
  %v649 = vrcp.pop %v640
  %v650 = vmul.f32 1.0, %v649
  %v651 = vrcp.pop %v641
  %v652 = vmul.f32 1.0, %v651
  %v653 = vrcp.pop %v642
  %v654 = vmul.f32 1.0, %v653
  %v655 = vrcp.pop %v643
  %v656 = vmul.f32 1.0, %v655
  %v657 = vrcp.pop %v644
  %v658 = vmul.f32 1.0, %v657
  %v659 = vrcp.pop %v645
  %v660 = vmul.f32 1.0, %v659
  %v661 = vrcp.pop %v646
  %v662 = vmul.f32 1.0, %v661
  %v663 = vtanh.pop %v607
  %v664 = vtanh.pop %v608
  %v665 = vtanh.pop %v609
  %v666 = vtanh.pop %v610
  %v667 = vtanh.pop %v611
  %v668 = vtanh.pop %v612
  %v669 = vtanh.pop %v613
  %v670 = vtanh.pop %v614
  %v679 = vrot.slane %v403, 7
  %v680 = vrot.slane %v404, 7
  %v681 = vrot.slane %v405, 7
  %v682 = vrot.slane %v406, 7
  %v683 = vrot.slane %v407, 7
  %v684 = vrot.slane %v408, 7
  %v685 = vrot.slane %v409, 7
  %v686 = vrot.slane %v410, 7
  %v695 = vmul.f32 %v648, %v679
  %v696 = vmul.f32 %v650, %v680
  %v697 = vmul.f32 %v652, %v681
  %v698 = vmul.f32 %v654, %v682
  %v699 = vmul.f32 %v656, %v683
  %v700 = vmul.f32 %v658, %v684
  %v701 = vmul.f32 %v660, %v685
  %v702 = vmul.f32 %v662, %v686
  %711 = vrot.lane.b32.xlu0 %v663, 32
  %v712 = vpop.permute.xlu0 %711
  %713 = vrot.lane.b32.xlu0 %v664, 32
  %v714 = vpop.permute.xlu0 %713
  %715 = vrot.lane.b32.xlu0 %v665, 32
  %v716 = vpop.permute.xlu0 %715
  %717 = vrot.lane.b32.xlu0 %v666, 32
  %v718 = vpop.permute.xlu0 %717
  %719 = vrot.lane.b32.xlu0 %v667, 32
  %v720 = vpop.permute.xlu0 %719
  %721 = vrot.lane.b32.xlu0 %v668, 32
  %v722 = vpop.permute.xlu0 %721
  %723 = vrot.lane.b32.xlu0 %v669, 32
  %v724 = vpop.permute.xlu0 %723
  %725 = vrot.lane.b32.xlu0 %v670, 32
  %v726 = vpop.permute.xlu0 %725
  %v735 = vmul.f32 %v648, %v712
  %v736 = vmul.f32 %v650, %v714
  %v737 = vmul.f32 %v652, %v716
  %v738 = vmul.f32 %v654, %v718
  %v739 = vmul.f32 %v656, %v720
  %v740 = vmul.f32 %v658, %v722
  %v741 = vmul.f32 %v660, %v724
  %v742 = vmul.f32 %v662, %v726
  %751 = vrot.lane.b32.xlu0 %v735, 64
  %v752 = vpop.permute.xlu0 %751
  %753 = vrot.lane.b32.xlu0 %v736, 64
  %v754 = vpop.permute.xlu0 %753
  %755 = vrot.lane.b32.xlu0 %v737, 64
  %v756 = vpop.permute.xlu0 %755
  %757 = vrot.lane.b32.xlu0 %v738, 64
  %v758 = vpop.permute.xlu0 %757
  %759 = vrot.lane.b32.xlu0 %v739, 64
  %v760 = vpop.permute.xlu0 %759
  %761 = vrot.lane.b32.xlu0 %v740, 64
  %v762 = vpop.permute.xlu0 %761
  %763 = vrot.lane.b32.xlu0 %v741, 64
  %v764 = vpop.permute.xlu0 %763
  %765 = vrot.lane.b32.xlu0 %v742, 64
  %v766 = vpop.permute.xlu0 %765
  %v775 = vadd.f32 %v695, %v752
  %v776 = vadd.f32 %v696, %v754
  %v777 = vadd.f32 %v697, %v756
  %v778 = vadd.f32 %v698, %v758
  %v779 = vadd.f32 %v699, %v760
  %v780 = vadd.f32 %v700, %v762
  %v781 = vadd.f32 %v701, %v764
  %v782 = vadd.f32 %v702, %v766
  %v783 = vtanh.pop %v775
  %v784 = vtanh.pop %v776
  %v785 = vtanh.pop %v777
  %v786 = vtanh.pop %v778
  %v787 = vtanh.pop %v779
  %v788 = vtanh.pop %v780
  %v789 = vtanh.pop %v781
  %v790 = vtanh.pop %v782
  %799 = vrot.lane.b32.xlu0 %v783, 96
  %v800 = vpop.permute.xlu0 %799
  %801 = vrot.lane.b32.xlu0 %v784, 96
  %v802 = vpop.permute.xlu0 %801
  %803 = vrot.lane.b32.xlu0 %v785, 96
  %v804 = vpop.permute.xlu0 %803
  %805 = vrot.lane.b32.xlu0 %v786, 96
  %v806 = vpop.permute.xlu0 %805
  %807 = vrot.lane.b32.xlu0 %v787, 96
  %v808 = vpop.permute.xlu0 %807
  %809 = vrot.lane.b32.xlu0 %v788, 96
  %v810 = vpop.permute.xlu0 %809
  %811 = vrot.lane.b32.xlu0 %v789, 96
  %v812 = vpop.permute.xlu0 %811
  %813 = vrot.lane.b32.xlu0 %v790, 96
  %v814 = vpop.permute.xlu0 %813
  %v823 = vmul.f32 %v648, %v800
  %v824 = vmul.f32 %v650, %v802
  %v825 = vmul.f32 %v652, %v804
  %v826 = vmul.f32 %v654, %v806
  %v827 = vmul.f32 %v656, %v808
  %v828 = vmul.f32 %v658, %v810
  %v829 = vmul.f32 %v660, %v812
  %v830 = vmul.f32 %v662, %v814
  %839 = vrot.lane.b32.xlu0 %v823, 32
  %v840 = vpop.permute.xlu0 %839
  %841 = vrot.lane.b32.xlu0 %v824, 32
  %v842 = vpop.permute.xlu0 %841
  %843 = vrot.lane.b32.xlu0 %v825, 32
  %v844 = vpop.permute.xlu0 %843
  %845 = vrot.lane.b32.xlu0 %v826, 32
  %v846 = vpop.permute.xlu0 %845
  %847 = vrot.lane.b32.xlu0 %v827, 32
  %v848 = vpop.permute.xlu0 %847
  %849 = vrot.lane.b32.xlu0 %v828, 32
  %v850 = vpop.permute.xlu0 %849
  %851 = vrot.lane.b32.xlu0 %v829, 32
  %v852 = vpop.permute.xlu0 %851
  %853 = vrot.lane.b32.xlu0 %v830, 32
  %v854 = vpop.permute.xlu0 %853
  %vm863 = vcmask 254977
  %864 = vst.msk [vmem:[%s4] sm:$0x2] %vm863, %v840
  %865 = vst.msk [vmem:[%s4 + $0x8] sm:$0x2] %vm863, %v842
  %866 = vst.msk [vmem:[%s4 + $0x10] sm:$0x2] %vm863, %v844
  %867 = vst.msk [vmem:[%s4 + $0x18] sm:$0x2] %vm863, %v846
  %868 = vst.msk [vmem:[%s4 + $0x20] sm:$0x2] %vm863, %v848
  %869 = vst.msk [vmem:[%s4 + $0x28] sm:$0x2] %vm863, %v850
  %870 = vst.msk [vmem:[%s4 + $0x30] sm:$0x2] %vm863, %v852
  %871 = vst.msk [vmem:[%s4 + $0x38] sm:$0x2] %vm863, %v854
  %v872 = vpack.c.bf16 %v823, %v823
  %v873 = vpack.c.bf16 %v824, %v824
  %v874 = vpack.c.bf16 %v825, %v825
  %v875 = vpack.c.bf16 %v826, %v826
  %v876 = vpack.c.bf16 %v827, %v827
  %v877 = vpack.c.bf16 %v828, %v828
  %v878 = vpack.c.bf16 %v829, %v829
  %v879 = vpack.c.bf16 %v830, %v830
  %v888 = vunpack.c.l.b16 %v872
  %v889 = vunpack.c.l.b16 %v873
  %v890 = vunpack.c.l.b16 %v874
  %v891 = vunpack.c.l.b16 %v875
  %v892 = vunpack.c.l.b16 %v876
  %v893 = vunpack.c.l.b16 %v877
  %v894 = vunpack.c.l.b16 %v878
  %v895 = vunpack.c.l.b16 %v879
  %v896 = vrot.slane %v888, 1
  %v897 = vsel %vm525, %v889, %v896
  %v898 = vrot.slane %v890, 7
  %v899 = vsel %vm528, %v898, %v897
  %v900 = vrot.slane %v891, 6
  %v901 = vsel %vm531, %v900, %v899
  %v902 = vrot.slane %v892, 5
  %v903 = vsel %vm534, %v902, %v901
  %v904 = vrot.slane %v893, 4
  %v905 = vsel %vm537, %v904, %v903
  %v906 = vrot.slane %v894, 3
  %v907 = vsel %vm540, %v906, %v905
  %v908 = vrot.slane %v895, 2
  %v909 = vsel %vm543, %v908, %v907
  %v910 = vpack.c.b16 %v909, %v909
  %911 = vrot.lane.b32.xlu0 %v910, 32
  %v912 = vpop.permute.xlu0 %911
  %v914 = vsel %vm87, %v912, 0
  %916 = vmatprep.subr.bf16.mxu0 0
  %917 = vmatpush1.bf16.msra.mxu0 %v180
  %918 = vmatprep.subr.bf16.mxu0 0
  %919 = vmatpush1.bf16.msra.mxu0 %v181
  %920 = vmatprep.subr.bf16.mxu0 0
  %921 = vmatpush1.bf16.msra.mxu0 0
  %922 = vmatprep.subr.bf16.mxu0 0
  %923 = vmatpush1.bf16.msra.mxu0 0
  %924 = vmatprep.subr.bf16.mxu0 0
  %925 = vmatpush1.bf16.msra.mxu0 0
  %926 = vmatprep.subr.bf16.mxu0 0
  %927 = vmatpush1.bf16.msra.mxu0 0
  %928 = vmatprep.subr.bf16.mxu0 0
  %929 = vmatpush1.bf16.msra.mxu0 0
  %930 = vmatprep.subr.bf16.mxu0 0
  %931 = vmatpush1.bf16.msra.mxu0 0
  %932 = vmatprep.subr.bf16.mxu0 0
  %933 = vmatpush1.bf16.msra.mxu0 0
  %934 = vmatprep.subr.bf16.mxu0 0
  %935 = vmatpush1.bf16.msra.mxu0 0
  %936 = vmatprep.subr.bf16.mxu0 0
  %937 = vmatpush1.bf16.msra.mxu0 0
  %938 = vmatprep.subr.bf16.mxu0 0
  %939 = vmatpush1.bf16.msra.mxu0 0
  %940 = vmatprep.subr.bf16.mxu0 0
  %941 = vmatpush1.bf16.msra.mxu0 0
  %942 = vmatprep.subr.bf16.mxu0 0
  %943 = vmatpush1.bf16.msra.mxu0 0
  %944 = vmatprep.subr.bf16.mxu0 0
  %945 = vmatpush1.bf16.msra.mxu0 0
  %946 = vmatprep.subr.bf16.mxu0 0
  %947 = vmatpush1.bf16.msra.mxu0 0
  %948 = vmatprep.mubr.bf16.mxu0 0
  %949 = vmatmul.mubr.bf16.gmra.mrb[0].mxu0 %v914
  %v950 = vpop.f32.mrb[0].mxu0
  %v951 = vadd.f32 0.0, %v950
  %v952 = vpop.f32.mrb[0].mxu0
  %v953 = vpop.f32.mrb[0].mxu0
  %v954 = vpop.f32.mrb[0].mxu0
  %955 = vdwg.mxu0
  %v957 = vrot.slane %v951, 6
  %v958 = vrot.slane %v951, 7
  %v959 = vrot.slane %v951, 1
  %v960 = vrot.slane %v951, 2
  %v961 = vrot.slane %v951, 3
  %v962 = vrot.slane %v951, 4
  %v963 = vrot.slane %v951, 5
  %v972 = vadd.f32 %v135, %v957
  %v973 = vadd.f32 %v138, %v958
  %v974 = vadd.f32 %v143, %v951
  %v975 = vadd.f32 %v146, %v959
  %v976 = vadd.f32 %v151, %v960
  %v977 = vadd.f32 %v154, %v961
  %v978 = vadd.f32 %v159, %v962
  %v979 = vadd.f32 %v162, %v963
  %v980 = vxor.u32 %v972, 2147483648
  %v981 = vxor.u32 %v973, 2147483648
  %v982 = vxor.u32 %v974, 2147483648
  %v983 = vxor.u32 %v975, 2147483648
  %v984 = vxor.u32 %v976, 2147483648
  %v985 = vxor.u32 %v977, 2147483648
  %v986 = vxor.u32 %v978, 2147483648
  %v987 = vxor.u32 %v979, 2147483648
  %v988 = vmul.f32 %v980, 1.442695
  %v989 = vpow.pop %v988
  %v990 = vmul.f32 %v981, 1.442695
  %v991 = vpow.pop %v990
  %v992 = vmul.f32 %v982, 1.442695
  %v993 = vpow.pop %v992
  %v994 = vmul.f32 %v983, 1.442695
  %v995 = vpow.pop %v994
  %v996 = vmul.f32 %v984, 1.442695
  %v997 = vpow.pop %v996
  %v998 = vmul.f32 %v985, 1.442695
  %v999 = vpow.pop %v998
  %v1000 = vmul.f32 %v986, 1.442695
  %v1001 = vpow.pop %v1000
  %v1002 = vmul.f32 %v987, 1.442695
  %v1003 = vpow.pop %v1002
  %v1004 = vadd.f32 %v989, 1.0
  %v1005 = vadd.f32 %v991, 1.0
  %v1006 = vadd.f32 %v993, 1.0
  %v1007 = vadd.f32 %v995, 1.0
  %v1008 = vadd.f32 %v997, 1.0
  %v1009 = vadd.f32 %v999, 1.0
  %v1010 = vadd.f32 %v1001, 1.0
  %v1011 = vadd.f32 %v1003, 1.0
  %v1012 = vrcp.pop %v1004
  %v1013 = vmul.f32 1.0, %v1012
  %v1014 = vrcp.pop %v1005
  %v1015 = vmul.f32 1.0, %v1014
  %v1016 = vrcp.pop %v1006
  %v1017 = vmul.f32 1.0, %v1016
  %v1018 = vrcp.pop %v1007
  %v1019 = vmul.f32 1.0, %v1018
  %v1020 = vrcp.pop %v1008
  %v1021 = vmul.f32 1.0, %v1020
  %v1022 = vrcp.pop %v1009
  %v1023 = vmul.f32 1.0, %v1022
  %v1024 = vrcp.pop %v1010
  %v1025 = vmul.f32 1.0, %v1024
  %v1026 = vrcp.pop %v1011
  %v1027 = vmul.f32 1.0, %v1026
  %v1028 = vtanh.pop %v972
  %v1029 = vtanh.pop %v973
  %v1030 = vtanh.pop %v974
  %v1031 = vtanh.pop %v975
  %v1032 = vtanh.pop %v976
  %v1033 = vtanh.pop %v977
  %v1034 = vtanh.pop %v978
  %v1035 = vtanh.pop %v979
  %v1044 = vrot.slane %v775, 7
  %v1045 = vrot.slane %v776, 7
  %v1046 = vrot.slane %v777, 7
  %v1047 = vrot.slane %v778, 7
  %v1048 = vrot.slane %v779, 7
  %v1049 = vrot.slane %v780, 7
  %v1050 = vrot.slane %v781, 7
  %v1051 = vrot.slane %v782, 7
  %v1060 = vmul.f32 %v1013, %v1044
  %v1061 = vmul.f32 %v1015, %v1045
  %v1062 = vmul.f32 %v1017, %v1046
  %v1063 = vmul.f32 %v1019, %v1047
  %v1064 = vmul.f32 %v1021, %v1048
  %v1065 = vmul.f32 %v1023, %v1049
  %v1066 = vmul.f32 %v1025, %v1050
  %v1067 = vmul.f32 %v1027, %v1051
  %1076 = vrot.lane.b32.xlu0 %v1028, 32
  %v1077 = vpop.permute.xlu0 %1076
  %1078 = vrot.lane.b32.xlu0 %v1029, 32
  %v1079 = vpop.permute.xlu0 %1078
  %1080 = vrot.lane.b32.xlu0 %v1030, 32
  %v1081 = vpop.permute.xlu0 %1080
  %1082 = vrot.lane.b32.xlu0 %v1031, 32
  %v1083 = vpop.permute.xlu0 %1082
  %1084 = vrot.lane.b32.xlu0 %v1032, 32
  %v1085 = vpop.permute.xlu0 %1084
  %1086 = vrot.lane.b32.xlu0 %v1033, 32
  %v1087 = vpop.permute.xlu0 %1086
  %1088 = vrot.lane.b32.xlu0 %v1034, 32
  %v1089 = vpop.permute.xlu0 %1088
  %1090 = vrot.lane.b32.xlu0 %v1035, 32
  %v1091 = vpop.permute.xlu0 %1090
  %v1100 = vmul.f32 %v1013, %v1077
  %v1101 = vmul.f32 %v1015, %v1079
  %v1102 = vmul.f32 %v1017, %v1081
  %v1103 = vmul.f32 %v1019, %v1083
  %v1104 = vmul.f32 %v1021, %v1085
  %v1105 = vmul.f32 %v1023, %v1087
  %v1106 = vmul.f32 %v1025, %v1089
  %v1107 = vmul.f32 %v1027, %v1091
  %1116 = vrot.lane.b32.xlu0 %v1100, 64
  %v1117 = vpop.permute.xlu0 %1116
  %1118 = vrot.lane.b32.xlu0 %v1101, 64
  %v1119 = vpop.permute.xlu0 %1118
  %1120 = vrot.lane.b32.xlu0 %v1102, 64
  %v1121 = vpop.permute.xlu0 %1120
  %1122 = vrot.lane.b32.xlu0 %v1103, 64
  %v1123 = vpop.permute.xlu0 %1122
  %1124 = vrot.lane.b32.xlu0 %v1104, 64
  %v1125 = vpop.permute.xlu0 %1124
  %1126 = vrot.lane.b32.xlu0 %v1105, 64
  %v1127 = vpop.permute.xlu0 %1126
  %1128 = vrot.lane.b32.xlu0 %v1106, 64
  %v1129 = vpop.permute.xlu0 %1128
  %1130 = vrot.lane.b32.xlu0 %v1107, 64
  %v1131 = vpop.permute.xlu0 %1130
  %v1140 = vadd.f32 %v1060, %v1117
  %v1141 = vadd.f32 %v1061, %v1119
  %v1142 = vadd.f32 %v1062, %v1121
  %v1143 = vadd.f32 %v1063, %v1123
  %v1144 = vadd.f32 %v1064, %v1125
  %v1145 = vadd.f32 %v1065, %v1127
  %v1146 = vadd.f32 %v1066, %v1129
  %v1147 = vadd.f32 %v1067, %v1131
  %v1148 = vtanh.pop %v1140
  %v1149 = vtanh.pop %v1141
  %v1150 = vtanh.pop %v1142
  %v1151 = vtanh.pop %v1143
  %v1152 = vtanh.pop %v1144
  %v1153 = vtanh.pop %v1145
  %v1154 = vtanh.pop %v1146
  %v1155 = vtanh.pop %v1147
  %1164 = vrot.lane.b32.xlu0 %v1148, 96
  %v1165 = vpop.permute.xlu0 %1164
  %1166 = vrot.lane.b32.xlu0 %v1149, 96
  %v1167 = vpop.permute.xlu0 %1166
  %1168 = vrot.lane.b32.xlu0 %v1150, 96
  %v1169 = vpop.permute.xlu0 %1168
  %1170 = vrot.lane.b32.xlu0 %v1151, 96
  %v1171 = vpop.permute.xlu0 %1170
  %1172 = vrot.lane.b32.xlu0 %v1152, 96
  %v1173 = vpop.permute.xlu0 %1172
  %1174 = vrot.lane.b32.xlu0 %v1153, 96
  %v1175 = vpop.permute.xlu0 %1174
  %1176 = vrot.lane.b32.xlu0 %v1154, 96
  %v1177 = vpop.permute.xlu0 %1176
  %1178 = vrot.lane.b32.xlu0 %v1155, 96
  %v1179 = vpop.permute.xlu0 %1178
  %v1188 = vmul.f32 %v1013, %v1165
  %v1189 = vmul.f32 %v1015, %v1167
  %v1190 = vmul.f32 %v1017, %v1169
  %v1191 = vmul.f32 %v1019, %v1171
  %v1192 = vmul.f32 %v1021, %v1173
  %v1193 = vmul.f32 %v1023, %v1175
  %v1194 = vmul.f32 %v1025, %v1177
  %v1195 = vmul.f32 %v1027, %v1179
  %1204 = vrot.lane.b32.xlu0 %v1188, 32
  %v1205 = vpop.permute.xlu0 %1204
  %1206 = vrot.lane.b32.xlu0 %v1189, 32
  %v1207 = vpop.permute.xlu0 %1206
  %1208 = vrot.lane.b32.xlu0 %v1190, 32
  %v1209 = vpop.permute.xlu0 %1208
  %1210 = vrot.lane.b32.xlu0 %v1191, 32
  %v1211 = vpop.permute.xlu0 %1210
  %1212 = vrot.lane.b32.xlu0 %v1192, 32
  %v1213 = vpop.permute.xlu0 %1212
  %1214 = vrot.lane.b32.xlu0 %v1193, 32
  %v1215 = vpop.permute.xlu0 %1214
  %1216 = vrot.lane.b32.xlu0 %v1194, 32
  %v1217 = vpop.permute.xlu0 %1216
  %1218 = vrot.lane.b32.xlu0 %v1195, 32
  %v1219 = vpop.permute.xlu0 %1218
  %vm1228 = vcmask 256002
  %1229 = vst.msk [vmem:[%s4] sm:$0x4] %vm1228, %v1205
  %1230 = vst.msk [vmem:[%s4 + $0x8] sm:$0x4] %vm1228, %v1207
  %1231 = vst.msk [vmem:[%s4 + $0x10] sm:$0x4] %vm1228, %v1209
  %1232 = vst.msk [vmem:[%s4 + $0x18] sm:$0x4] %vm1228, %v1211
  %1233 = vst.msk [vmem:[%s4 + $0x20] sm:$0x4] %vm1228, %v1213
  %1234 = vst.msk [vmem:[%s4 + $0x28] sm:$0x4] %vm1228, %v1215
  %1235 = vst.msk [vmem:[%s4 + $0x30] sm:$0x4] %vm1228, %v1217
  %1236 = vst.msk [vmem:[%s4 + $0x38] sm:$0x4] %vm1228, %v1219
  %v1237 = vpack.c.bf16 %v1188, %v1188
  %v1238 = vpack.c.bf16 %v1189, %v1189
  %v1239 = vpack.c.bf16 %v1190, %v1190
  %v1240 = vpack.c.bf16 %v1191, %v1191
  %v1241 = vpack.c.bf16 %v1192, %v1192
  %v1242 = vpack.c.bf16 %v1193, %v1193
  %v1243 = vpack.c.bf16 %v1194, %v1194
  %v1244 = vpack.c.bf16 %v1195, %v1195
  %v1253 = vunpack.c.l.b16 %v1237
  %v1254 = vunpack.c.l.b16 %v1238
  %v1255 = vunpack.c.l.b16 %v1239
  %v1256 = vunpack.c.l.b16 %v1240
  %v1257 = vunpack.c.l.b16 %v1241
  %v1258 = vunpack.c.l.b16 %v1242
  %v1259 = vunpack.c.l.b16 %v1243
  %v1260 = vunpack.c.l.b16 %v1244
  %v1261 = vrot.slane %v1253, 2
  %v1262 = vrot.slane %v1254, 1
  %v1263 = vsel %vm525, %v1262, %v1261
  %v1264 = vsel %vm528, %v1255, %v1263
  %v1265 = vrot.slane %v1256, 7
  %v1266 = vsel %vm531, %v1265, %v1264
  %v1267 = vrot.slane %v1257, 6
  %v1268 = vsel %vm534, %v1267, %v1266
  %v1269 = vrot.slane %v1258, 5
  %v1270 = vsel %vm537, %v1269, %v1268
  %v1271 = vrot.slane %v1259, 4
  %v1272 = vsel %vm540, %v1271, %v1270
  %v1273 = vrot.slane %v1260, 3
  %v1274 = vsel %vm543, %v1273, %v1272
  %v1275 = vpack.c.b16 %v1274, %v1274
  %1276 = vrot.lane.b32.xlu0 %v1275, 32
  %v1277 = vpop.permute.xlu0 %1276
  %v1279 = vsel %vm87, %v1277, 0
  %1281 = vmatprep.subr.bf16.mxu0 0
  %1282 = vmatpush1.bf16.msra.mxu0 %v180
  %1283 = vmatprep.subr.bf16.mxu0 0
  %1284 = vmatpush1.bf16.msra.mxu0 %v181
  %1285 = vmatprep.subr.bf16.mxu0 0
  %1286 = vmatpush1.bf16.msra.mxu0 0
  %1287 = vmatprep.subr.bf16.mxu0 0
  %1288 = vmatpush1.bf16.msra.mxu0 0
  %1289 = vmatprep.subr.bf16.mxu0 0
  %1290 = vmatpush1.bf16.msra.mxu0 0
  %1291 = vmatprep.subr.bf16.mxu0 0
  %1292 = vmatpush1.bf16.msra.mxu0 0
  %1293 = vmatprep.subr.bf16.mxu0 0
  %1294 = vmatpush1.bf16.msra.mxu0 0
  %1295 = vmatprep.subr.bf16.mxu0 0
  %1296 = vmatpush1.bf16.msra.mxu0 0
  %1297 = vmatprep.subr.bf16.mxu0 0
  %1298 = vmatpush1.bf16.msra.mxu0 0
  %1299 = vmatprep.subr.bf16.mxu0 0
  %1300 = vmatpush1.bf16.msra.mxu0 0
  %1301 = vmatprep.subr.bf16.mxu0 0
  %1302 = vmatpush1.bf16.msra.mxu0 0
  %1303 = vmatprep.subr.bf16.mxu0 0
  %1304 = vmatpush1.bf16.msra.mxu0 0
  %1305 = vmatprep.subr.bf16.mxu0 0
  %1306 = vmatpush1.bf16.msra.mxu0 0
  %1307 = vmatprep.subr.bf16.mxu0 0
  %1308 = vmatpush1.bf16.msra.mxu0 0
  %1309 = vmatprep.subr.bf16.mxu0 0
  %1310 = vmatpush1.bf16.msra.mxu0 0
  %1311 = vmatprep.subr.bf16.mxu0 0
  %1312 = vmatpush1.bf16.msra.mxu0 0
  %1313 = vmatprep.mubr.bf16.mxu0 0
  %1314 = vmatmul.mubr.bf16.gmra.mrb[0].mxu0 %v1279
  %v1315 = vpop.f32.mrb[0].mxu0
  %v1316 = vadd.f32 0.0, %v1315
  %v1317 = vpop.f32.mrb[0].mxu0
  %v1318 = vpop.f32.mrb[0].mxu0
  %v1319 = vpop.f32.mrb[0].mxu0
  %1320 = vdwg.mxu0
  %v1322 = vrot.slane %v1316, 5
  %v1323 = vrot.slane %v1316, 6
  %v1324 = vrot.slane %v1316, 7
  %v1325 = vrot.slane %v1316, 1
  %v1326 = vrot.slane %v1316, 2
  %v1327 = vrot.slane %v1316, 3
  %v1328 = vrot.slane %v1316, 4
  %v1337 = vadd.f32 %v135, %v1322
  %v1338 = vadd.f32 %v138, %v1323
  %v1339 = vadd.f32 %v143, %v1324
  %v1340 = vadd.f32 %v146, %v1316
  %v1341 = vadd.f32 %v151, %v1325
  %v1342 = vadd.f32 %v154, %v1326
  %v1343 = vadd.f32 %v159, %v1327
  %v1344 = vadd.f32 %v162, %v1328
  %v1345 = vxor.u32 %v1337, 2147483648
  %v1346 = vxor.u32 %v1338, 2147483648
  %v1347 = vxor.u32 %v1339, 2147483648
  %v1348 = vxor.u32 %v1340, 2147483648
  %v1349 = vxor.u32 %v1341, 2147483648
  %v1350 = vxor.u32 %v1342, 2147483648
  %v1351 = vxor.u32 %v1343, 2147483648
  %v1352 = vxor.u32 %v1344, 2147483648
  %v1353 = vmul.f32 %v1345, 1.442695
  %v1354 = vpow.pop %v1353
  %v1355 = vmul.f32 %v1346, 1.442695
  %v1356 = vpow.pop %v1355
  %v1357 = vmul.f32 %v1347, 1.442695
  %v1358 = vpow.pop %v1357
  %v1359 = vmul.f32 %v1348, 1.442695
  %v1360 = vpow.pop %v1359
  %v1361 = vmul.f32 %v1349, 1.442695
  %v1362 = vpow.pop %v1361
  %v1363 = vmul.f32 %v1350, 1.442695
  %v1364 = vpow.pop %v1363
  %v1365 = vmul.f32 %v1351, 1.442695
  %v1366 = vpow.pop %v1365
  %v1367 = vmul.f32 %v1352, 1.442695
  %v1368 = vpow.pop %v1367
  %v1369 = vadd.f32 %v1354, 1.0
  %v1370 = vadd.f32 %v1356, 1.0
  %v1371 = vadd.f32 %v1358, 1.0
  %v1372 = vadd.f32 %v1360, 1.0
  %v1373 = vadd.f32 %v1362, 1.0
  %v1374 = vadd.f32 %v1364, 1.0
  %v1375 = vadd.f32 %v1366, 1.0
  %v1376 = vadd.f32 %v1368, 1.0
  %v1377 = vrcp.pop %v1369
  %v1378 = vmul.f32 1.0, %v1377
  %v1379 = vrcp.pop %v1370
  %v1380 = vmul.f32 1.0, %v1379
  %v1381 = vrcp.pop %v1371
  %v1382 = vmul.f32 1.0, %v1381
  %v1383 = vrcp.pop %v1372
  %v1384 = vmul.f32 1.0, %v1383
  %v1385 = vrcp.pop %v1373
  %v1386 = vmul.f32 1.0, %v1385
  %v1387 = vrcp.pop %v1374
  %v1388 = vmul.f32 1.0, %v1387
  %v1389 = vrcp.pop %v1375
  %v1390 = vmul.f32 1.0, %v1389
  %v1391 = vrcp.pop %v1376
  %v1392 = vmul.f32 1.0, %v1391
  %v1393 = vtanh.pop %v1337
  %v1394 = vtanh.pop %v1338
  %v1395 = vtanh.pop %v1339
  %v1396 = vtanh.pop %v1340
  %v1397 = vtanh.pop %v1341
  %v1398 = vtanh.pop %v1342
  %v1399 = vtanh.pop %v1343
  %v1400 = vtanh.pop %v1344
  %v1409 = vrot.slane %v1140, 7
  %v1410 = vrot.slane %v1141, 7
  %v1411 = vrot.slane %v1142, 7
  %v1412 = vrot.slane %v1143, 7
  %v1413 = vrot.slane %v1144, 7
  %v1414 = vrot.slane %v1145, 7
  %v1415 = vrot.slane %v1146, 7
  %v1416 = vrot.slane %v1147, 7
  %v1425 = vmul.f32 %v1378, %v1409
  %v1426 = vmul.f32 %v1380, %v1410
  %v1427 = vmul.f32 %v1382, %v1411
  %v1428 = vmul.f32 %v1384, %v1412
  %v1429 = vmul.f32 %v1386, %v1413
  %v1430 = vmul.f32 %v1388, %v1414
  %v1431 = vmul.f32 %v1390, %v1415
  %v1432 = vmul.f32 %v1392, %v1416
  %1441 = vrot.lane.b32.xlu0 %v1393, 32
  %v1442 = vpop.permute.xlu0 %1441
  %1443 = vrot.lane.b32.xlu0 %v1394, 32
  %v1444 = vpop.permute.xlu0 %1443
  %1445 = vrot.lane.b32.xlu0 %v1395, 32
  %v1446 = vpop.permute.xlu0 %1445
  %1447 = vrot.lane.b32.xlu0 %v1396, 32
  %v1448 = vpop.permute.xlu0 %1447
  %1449 = vrot.lane.b32.xlu0 %v1397, 32
  %v1450 = vpop.permute.xlu0 %1449
  %1451 = vrot.lane.b32.xlu0 %v1398, 32
  %v1452 = vpop.permute.xlu0 %1451
  %1453 = vrot.lane.b32.xlu0 %v1399, 32
  %v1454 = vpop.permute.xlu0 %1453
  %1455 = vrot.lane.b32.xlu0 %v1400, 32
  %v1456 = vpop.permute.xlu0 %1455
  %v1465 = vmul.f32 %v1378, %v1442
  %v1466 = vmul.f32 %v1380, %v1444
  %v1467 = vmul.f32 %v1382, %v1446
  %v1468 = vmul.f32 %v1384, %v1448
  %v1469 = vmul.f32 %v1386, %v1450
  %v1470 = vmul.f32 %v1388, %v1452
  %v1471 = vmul.f32 %v1390, %v1454
  %v1472 = vmul.f32 %v1392, %v1456
  %1481 = vrot.lane.b32.xlu0 %v1465, 64
  %v1482 = vpop.permute.xlu0 %1481
  %1483 = vrot.lane.b32.xlu0 %v1466, 64
  %v1484 = vpop.permute.xlu0 %1483
  %1485 = vrot.lane.b32.xlu0 %v1467, 64
  %v1486 = vpop.permute.xlu0 %1485
  %1487 = vrot.lane.b32.xlu0 %v1468, 64
  %v1488 = vpop.permute.xlu0 %1487
  %1489 = vrot.lane.b32.xlu0 %v1469, 64
  %v1490 = vpop.permute.xlu0 %1489
  %1491 = vrot.lane.b32.xlu0 %v1470, 64
  %v1492 = vpop.permute.xlu0 %1491
  %1493 = vrot.lane.b32.xlu0 %v1471, 64
  %v1494 = vpop.permute.xlu0 %1493
  %1495 = vrot.lane.b32.xlu0 %v1472, 64
  %v1496 = vpop.permute.xlu0 %1495
  %v1505 = vadd.f32 %v1425, %v1482
  %v1506 = vadd.f32 %v1426, %v1484
  %v1507 = vadd.f32 %v1427, %v1486
  %v1508 = vadd.f32 %v1428, %v1488
  %v1509 = vadd.f32 %v1429, %v1490
  %v1510 = vadd.f32 %v1430, %v1492
  %v1511 = vadd.f32 %v1431, %v1494
  %v1512 = vadd.f32 %v1432, %v1496
  %v1513 = vtanh.pop %v1505
  %v1514 = vtanh.pop %v1506
  %v1515 = vtanh.pop %v1507
  %v1516 = vtanh.pop %v1508
  %v1517 = vtanh.pop %v1509
  %v1518 = vtanh.pop %v1510
  %v1519 = vtanh.pop %v1511
  %v1520 = vtanh.pop %v1512
  %1529 = vrot.lane.b32.xlu0 %v1513, 96
  %v1530 = vpop.permute.xlu0 %1529
  %1531 = vrot.lane.b32.xlu0 %v1514, 96
  %v1532 = vpop.permute.xlu0 %1531
  %1533 = vrot.lane.b32.xlu0 %v1515, 96
  %v1534 = vpop.permute.xlu0 %1533
  %1535 = vrot.lane.b32.xlu0 %v1516, 96
  %v1536 = vpop.permute.xlu0 %1535
  %1537 = vrot.lane.b32.xlu0 %v1517, 96
  %v1538 = vpop.permute.xlu0 %1537
  %1539 = vrot.lane.b32.xlu0 %v1518, 96
  %v1540 = vpop.permute.xlu0 %1539
  %1541 = vrot.lane.b32.xlu0 %v1519, 96
  %v1542 = vpop.permute.xlu0 %1541
  %1543 = vrot.lane.b32.xlu0 %v1520, 96
  %v1544 = vpop.permute.xlu0 %1543
  %v1553 = vmul.f32 %v1378, %v1530
  %v1554 = vmul.f32 %v1380, %v1532
  %v1555 = vmul.f32 %v1382, %v1534
  %v1556 = vmul.f32 %v1384, %v1536
  %v1557 = vmul.f32 %v1386, %v1538
  %v1558 = vmul.f32 %v1388, %v1540
  %v1559 = vmul.f32 %v1390, %v1542
  %v1560 = vmul.f32 %v1392, %v1544
  %1569 = vrot.lane.b32.xlu0 %v1553, 32
  %v1570 = vpop.permute.xlu0 %1569
  %1571 = vrot.lane.b32.xlu0 %v1554, 32
  %v1572 = vpop.permute.xlu0 %1571
  %1573 = vrot.lane.b32.xlu0 %v1555, 32
  %v1574 = vpop.permute.xlu0 %1573
  %1575 = vrot.lane.b32.xlu0 %v1556, 32
  %v1576 = vpop.permute.xlu0 %1575
  %1577 = vrot.lane.b32.xlu0 %v1557, 32
  %v1578 = vpop.permute.xlu0 %1577
  %1579 = vrot.lane.b32.xlu0 %v1558, 32
  %v1580 = vpop.permute.xlu0 %1579
  %1581 = vrot.lane.b32.xlu0 %v1559, 32
  %v1582 = vpop.permute.xlu0 %1581
  %1583 = vrot.lane.b32.xlu0 %v1560, 32
  %v1584 = vpop.permute.xlu0 %1583
  %vm1593 = vcmask 257027
  %1594 = vst.msk [vmem:[%s4] sm:$0x8] %vm1593, %v1570
  %1595 = vst.msk [vmem:[%s4 + $0x8] sm:$0x8] %vm1593, %v1572
  %1596 = vst.msk [vmem:[%s4 + $0x10] sm:$0x8] %vm1593, %v1574
  %1597 = vst.msk [vmem:[%s4 + $0x18] sm:$0x8] %vm1593, %v1576
  %1598 = vst.msk [vmem:[%s4 + $0x20] sm:$0x8] %vm1593, %v1578
  %1599 = vst.msk [vmem:[%s4 + $0x28] sm:$0x8] %vm1593, %v1580
  %1600 = vst.msk [vmem:[%s4 + $0x30] sm:$0x8] %vm1593, %v1582
  %1601 = vst.msk [vmem:[%s4 + $0x38] sm:$0x8] %vm1593, %v1584
  %v1602 = vpack.c.bf16 %v1553, %v1553
  %v1603 = vpack.c.bf16 %v1554, %v1554
  %v1604 = vpack.c.bf16 %v1555, %v1555
  %v1605 = vpack.c.bf16 %v1556, %v1556
  %v1606 = vpack.c.bf16 %v1557, %v1557
  %v1607 = vpack.c.bf16 %v1558, %v1558
  %v1608 = vpack.c.bf16 %v1559, %v1559
  %v1609 = vpack.c.bf16 %v1560, %v1560
  %v1618 = vunpack.c.l.b16 %v1602
  %v1619 = vunpack.c.l.b16 %v1603
  %v1620 = vunpack.c.l.b16 %v1604
  %v1621 = vunpack.c.l.b16 %v1605
  %v1622 = vunpack.c.l.b16 %v1606
  %v1623 = vunpack.c.l.b16 %v1607
  %v1624 = vunpack.c.l.b16 %v1608
  %v1625 = vunpack.c.l.b16 %v1609
  %v1626 = vrot.slane %v1618, 3
  %v1627 = vrot.slane %v1619, 2
  %v1628 = vsel %vm525, %v1627, %v1626
  %v1629 = vrot.slane %v1620, 1
  %v1630 = vsel %vm528, %v1629, %v1628
  %v1631 = vsel %vm531, %v1621, %v1630
  %v1632 = vrot.slane %v1622, 7
  %v1633 = vsel %vm534, %v1632, %v1631
  %v1634 = vrot.slane %v1623, 6
  %v1635 = vsel %vm537, %v1634, %v1633
  %v1636 = vrot.slane %v1624, 5
  %v1637 = vsel %vm540, %v1636, %v1635
  %v1638 = vrot.slane %v1625, 4
  %v1639 = vsel %vm543, %v1638, %v1637
  %v1640 = vpack.c.b16 %v1639, %v1639
  %1641 = vrot.lane.b32.xlu0 %v1640, 32
  %v1642 = vpop.permute.xlu0 %1641
  %v1644 = vsel %vm87, %v1642, 0
  %1646 = vmatprep.subr.bf16.mxu0 0
  %1647 = vmatpush1.bf16.msra.mxu0 %v180
  %1648 = vmatprep.subr.bf16.mxu0 0
  %1649 = vmatpush1.bf16.msra.mxu0 %v181
  %1650 = vmatprep.subr.bf16.mxu0 0
  %1651 = vmatpush1.bf16.msra.mxu0 0
  %1652 = vmatprep.subr.bf16.mxu0 0
  %1653 = vmatpush1.bf16.msra.mxu0 0
  %1654 = vmatprep.subr.bf16.mxu0 0
  %1655 = vmatpush1.bf16.msra.mxu0 0
  %1656 = vmatprep.subr.bf16.mxu0 0
  %1657 = vmatpush1.bf16.msra.mxu0 0
  %1658 = vmatprep.subr.bf16.mxu0 0
  %1659 = vmatpush1.bf16.msra.mxu0 0
  %1660 = vmatprep.subr.bf16.mxu0 0
  %1661 = vmatpush1.bf16.msra.mxu0 0
  %1662 = vmatprep.subr.bf16.mxu0 0
  %1663 = vmatpush1.bf16.msra.mxu0 0
  %1664 = vmatprep.subr.bf16.mxu0 0
  %1665 = vmatpush1.bf16.msra.mxu0 0
  %1666 = vmatprep.subr.bf16.mxu0 0
  %1667 = vmatpush1.bf16.msra.mxu0 0
  %1668 = vmatprep.subr.bf16.mxu0 0
  %1669 = vmatpush1.bf16.msra.mxu0 0
  %1670 = vmatprep.subr.bf16.mxu0 0
  %1671 = vmatpush1.bf16.msra.mxu0 0
  %1672 = vmatprep.subr.bf16.mxu0 0
  %1673 = vmatpush1.bf16.msra.mxu0 0
  %1674 = vmatprep.subr.bf16.mxu0 0
  %1675 = vmatpush1.bf16.msra.mxu0 0
  %1676 = vmatprep.subr.bf16.mxu0 0
  %1677 = vmatpush1.bf16.msra.mxu0 0
  %1678 = vmatprep.mubr.bf16.mxu0 0
  %1679 = vmatmul.mubr.bf16.gmra.mrb[0].mxu0 %v1644
  %v1680 = vpop.f32.mrb[0].mxu0
  %v1681 = vadd.f32 0.0, %v1680
  %v1682 = vpop.f32.mrb[0].mxu0
  %v1683 = vpop.f32.mrb[0].mxu0
  %v1684 = vpop.f32.mrb[0].mxu0
  %1685 = vdwg.mxu0
  %v1687 = vrot.slane %v1681, 4
  %v1688 = vrot.slane %v1681, 5
  %v1689 = vrot.slane %v1681, 6
  %v1690 = vrot.slane %v1681, 7
  %v1691 = vrot.slane %v1681, 1
  %v1692 = vrot.slane %v1681, 2
  %v1693 = vrot.slane %v1681, 3
  %v1702 = vadd.f32 %v135, %v1687
  %v1703 = vadd.f32 %v138, %v1688
  %v1704 = vadd.f32 %v143, %v1689
  %v1705 = vadd.f32 %v146, %v1690
  %v1706 = vadd.f32 %v151, %v1681
  %v1707 = vadd.f32 %v154, %v1691
  %v1708 = vadd.f32 %v159, %v1692
  %v1709 = vadd.f32 %v162, %v1693
  %v1710 = vxor.u32 %v1702, 2147483648
  %v1711 = vxor.u32 %v1703, 2147483648
  %v1712 = vxor.u32 %v1704, 2147483648
  %v1713 = vxor.u32 %v1705, 2147483648
  %v1714 = vxor.u32 %v1706, 2147483648
  %v1715 = vxor.u32 %v1707, 2147483648
  %v1716 = vxor.u32 %v1708, 2147483648
  %v1717 = vxor.u32 %v1709, 2147483648
  %v1718 = vmul.f32 %v1710, 1.442695
  %v1719 = vpow.pop %v1718
  %v1720 = vmul.f32 %v1711, 1.442695
  %v1721 = vpow.pop %v1720
  %v1722 = vmul.f32 %v1712, 1.442695
  %v1723 = vpow.pop %v1722
  %v1724 = vmul.f32 %v1713, 1.442695
  %v1725 = vpow.pop %v1724
  %v1726 = vmul.f32 %v1714, 1.442695
  %v1727 = vpow.pop %v1726
  %v1728 = vmul.f32 %v1715, 1.442695
  %v1729 = vpow.pop %v1728
  %v1730 = vmul.f32 %v1716, 1.442695
  %v1731 = vpow.pop %v1730
  %v1732 = vmul.f32 %v1717, 1.442695
  %v1733 = vpow.pop %v1732
  %v1734 = vadd.f32 %v1719, 1.0
  %v1735 = vadd.f32 %v1721, 1.0
  %v1736 = vadd.f32 %v1723, 1.0
  %v1737 = vadd.f32 %v1725, 1.0
  %v1738 = vadd.f32 %v1727, 1.0
  %v1739 = vadd.f32 %v1729, 1.0
  %v1740 = vadd.f32 %v1731, 1.0
  %v1741 = vadd.f32 %v1733, 1.0
  %v1742 = vrcp.pop %v1734
  %v1743 = vmul.f32 1.0, %v1742
  %v1744 = vrcp.pop %v1735
  %v1745 = vmul.f32 1.0, %v1744
  %v1746 = vrcp.pop %v1736
  %v1747 = vmul.f32 1.0, %v1746
  %v1748 = vrcp.pop %v1737
  %v1749 = vmul.f32 1.0, %v1748
  %v1750 = vrcp.pop %v1738
  %v1751 = vmul.f32 1.0, %v1750
  %v1752 = vrcp.pop %v1739
  %v1753 = vmul.f32 1.0, %v1752
  %v1754 = vrcp.pop %v1740
  %v1755 = vmul.f32 1.0, %v1754
  %v1756 = vrcp.pop %v1741
  %v1757 = vmul.f32 1.0, %v1756
  %v1758 = vtanh.pop %v1702
  %v1759 = vtanh.pop %v1703
  %v1760 = vtanh.pop %v1704
  %v1761 = vtanh.pop %v1705
  %v1762 = vtanh.pop %v1706
  %v1763 = vtanh.pop %v1707
  %v1764 = vtanh.pop %v1708
  %v1765 = vtanh.pop %v1709
  %v1774 = vrot.slane %v1505, 7
  %v1775 = vrot.slane %v1506, 7
  %v1776 = vrot.slane %v1507, 7
  %v1777 = vrot.slane %v1508, 7
  %v1778 = vrot.slane %v1509, 7
  %v1779 = vrot.slane %v1510, 7
  %v1780 = vrot.slane %v1511, 7
  %v1781 = vrot.slane %v1512, 7
  %v1790 = vmul.f32 %v1743, %v1774
  %v1791 = vmul.f32 %v1745, %v1775
  %v1792 = vmul.f32 %v1747, %v1776
  %v1793 = vmul.f32 %v1749, %v1777
  %v1794 = vmul.f32 %v1751, %v1778
  %v1795 = vmul.f32 %v1753, %v1779
  %v1796 = vmul.f32 %v1755, %v1780
  %v1797 = vmul.f32 %v1757, %v1781
  %1806 = vrot.lane.b32.xlu0 %v1758, 32
  %v1807 = vpop.permute.xlu0 %1806
  %1808 = vrot.lane.b32.xlu0 %v1759, 32
  %v1809 = vpop.permute.xlu0 %1808
  %1810 = vrot.lane.b32.xlu0 %v1760, 32
  %v1811 = vpop.permute.xlu0 %1810
  %1812 = vrot.lane.b32.xlu0 %v1761, 32
  %v1813 = vpop.permute.xlu0 %1812
  %1814 = vrot.lane.b32.xlu0 %v1762, 32
  %v1815 = vpop.permute.xlu0 %1814
  %1816 = vrot.lane.b32.xlu0 %v1763, 32
  %v1817 = vpop.permute.xlu0 %1816
  %1818 = vrot.lane.b32.xlu0 %v1764, 32
  %v1819 = vpop.permute.xlu0 %1818
  %1820 = vrot.lane.b32.xlu0 %v1765, 32
  %v1821 = vpop.permute.xlu0 %1820
  %v1830 = vmul.f32 %v1743, %v1807
  %v1831 = vmul.f32 %v1745, %v1809
  %v1832 = vmul.f32 %v1747, %v1811
  %v1833 = vmul.f32 %v1749, %v1813
  %v1834 = vmul.f32 %v1751, %v1815
  %v1835 = vmul.f32 %v1753, %v1817
  %v1836 = vmul.f32 %v1755, %v1819
  %v1837 = vmul.f32 %v1757, %v1821
  %1846 = vrot.lane.b32.xlu0 %v1830, 64
  %v1847 = vpop.permute.xlu0 %1846
  %1848 = vrot.lane.b32.xlu0 %v1831, 64
  %v1849 = vpop.permute.xlu0 %1848
  %1850 = vrot.lane.b32.xlu0 %v1832, 64
  %v1851 = vpop.permute.xlu0 %1850
  %1852 = vrot.lane.b32.xlu0 %v1833, 64
  %v1853 = vpop.permute.xlu0 %1852
  %1854 = vrot.lane.b32.xlu0 %v1834, 64
  %v1855 = vpop.permute.xlu0 %1854
  %1856 = vrot.lane.b32.xlu0 %v1835, 64
  %v1857 = vpop.permute.xlu0 %1856
  %1858 = vrot.lane.b32.xlu0 %v1836, 64
  %v1859 = vpop.permute.xlu0 %1858
  %1860 = vrot.lane.b32.xlu0 %v1837, 64
  %v1861 = vpop.permute.xlu0 %1860
  %v1870 = vadd.f32 %v1790, %v1847
  %v1871 = vadd.f32 %v1791, %v1849
  %v1872 = vadd.f32 %v1792, %v1851
  %v1873 = vadd.f32 %v1793, %v1853
  %v1874 = vadd.f32 %v1794, %v1855
  %v1875 = vadd.f32 %v1795, %v1857
  %v1876 = vadd.f32 %v1796, %v1859
  %v1877 = vadd.f32 %v1797, %v1861
  %v1878 = vtanh.pop %v1870
  %v1879 = vtanh.pop %v1871
  %v1880 = vtanh.pop %v1872
  %v1881 = vtanh.pop %v1873
  %v1882 = vtanh.pop %v1874
  %v1883 = vtanh.pop %v1875
  %v1884 = vtanh.pop %v1876
  %v1885 = vtanh.pop %v1877
  %1894 = vrot.lane.b32.xlu0 %v1878, 96
  %v1895 = vpop.permute.xlu0 %1894
  %1896 = vrot.lane.b32.xlu0 %v1879, 96
  %v1897 = vpop.permute.xlu0 %1896
  %1898 = vrot.lane.b32.xlu0 %v1880, 96
  %v1899 = vpop.permute.xlu0 %1898
  %1900 = vrot.lane.b32.xlu0 %v1881, 96
  %v1901 = vpop.permute.xlu0 %1900
  %1902 = vrot.lane.b32.xlu0 %v1882, 96
  %v1903 = vpop.permute.xlu0 %1902
  %1904 = vrot.lane.b32.xlu0 %v1883, 96
  %v1905 = vpop.permute.xlu0 %1904
  %1906 = vrot.lane.b32.xlu0 %v1884, 96
  %v1907 = vpop.permute.xlu0 %1906
  %1908 = vrot.lane.b32.xlu0 %v1885, 96
  %v1909 = vpop.permute.xlu0 %1908
  %v1918 = vmul.f32 %v1743, %v1895
  %v1919 = vmul.f32 %v1745, %v1897
  %v1920 = vmul.f32 %v1747, %v1899
  %v1921 = vmul.f32 %v1749, %v1901
  %v1922 = vmul.f32 %v1751, %v1903
  %v1923 = vmul.f32 %v1753, %v1905
  %v1924 = vmul.f32 %v1755, %v1907
  %v1925 = vmul.f32 %v1757, %v1909
  %1934 = vrot.lane.b32.xlu0 %v1918, 32
  %v1935 = vpop.permute.xlu0 %1934
  %1936 = vrot.lane.b32.xlu0 %v1919, 32
  %v1937 = vpop.permute.xlu0 %1936
  %1938 = vrot.lane.b32.xlu0 %v1920, 32
  %v1939 = vpop.permute.xlu0 %1938
  %1940 = vrot.lane.b32.xlu0 %v1921, 32
  %v1941 = vpop.permute.xlu0 %1940
  %1942 = vrot.lane.b32.xlu0 %v1922, 32
  %v1943 = vpop.permute.xlu0 %1942
  %1944 = vrot.lane.b32.xlu0 %v1923, 32
  %v1945 = vpop.permute.xlu0 %1944
  %1946 = vrot.lane.b32.xlu0 %v1924, 32
  %v1947 = vpop.permute.xlu0 %1946
  %1948 = vrot.lane.b32.xlu0 %v1925, 32
  %v1949 = vpop.permute.xlu0 %1948
  %vm1958 = vcmask 258052
  %1959 = vst.msk [vmem:[%s4] sm:$0x10] %vm1958, %v1935
  %1960 = vst.msk [vmem:[%s4 + $0x8] sm:$0x10] %vm1958, %v1937
  %1961 = vst.msk [vmem:[%s4 + $0x10] sm:$0x10] %vm1958, %v1939
  %1962 = vst.msk [vmem:[%s4 + $0x18] sm:$0x10] %vm1958, %v1941
  %1963 = vst.msk [vmem:[%s4 + $0x20] sm:$0x10] %vm1958, %v1943
  %1964 = vst.msk [vmem:[%s4 + $0x28] sm:$0x10] %vm1958, %v1945
  %1965 = vst.msk [vmem:[%s4 + $0x30] sm:$0x10] %vm1958, %v1947
  %1966 = vst.msk [vmem:[%s4 + $0x38] sm:$0x10] %vm1958, %v1949
  %v1967 = vpack.c.bf16 %v1918, %v1918
  %v1968 = vpack.c.bf16 %v1919, %v1919
  %v1969 = vpack.c.bf16 %v1920, %v1920
  %v1970 = vpack.c.bf16 %v1921, %v1921
  %v1971 = vpack.c.bf16 %v1922, %v1922
  %v1972 = vpack.c.bf16 %v1923, %v1923
  %v1973 = vpack.c.bf16 %v1924, %v1924
  %v1974 = vpack.c.bf16 %v1925, %v1925
  %v1983 = vunpack.c.l.b16 %v1967
  %v1984 = vunpack.c.l.b16 %v1968
  %v1985 = vunpack.c.l.b16 %v1969
  %v1986 = vunpack.c.l.b16 %v1970
  %v1987 = vunpack.c.l.b16 %v1971
  %v1988 = vunpack.c.l.b16 %v1972
  %v1989 = vunpack.c.l.b16 %v1973
  %v1990 = vunpack.c.l.b16 %v1974
  %v1991 = vrot.slane %v1983, 4
  %v1992 = vrot.slane %v1984, 3
  %v1993 = vsel %vm525, %v1992, %v1991
  %v1994 = vrot.slane %v1985, 2
  %v1995 = vsel %vm528, %v1994, %v1993
  %v1996 = vrot.slane %v1986, 1
  %v1997 = vsel %vm531, %v1996, %v1995
  %v1998 = vsel %vm534, %v1987, %v1997
  %v1999 = vrot.slane %v1988, 7
  %v2000 = vsel %vm537, %v1999, %v1998
  %v2001 = vrot.slane %v1989, 6
  %v2002 = vsel %vm540, %v2001, %v2000
  %v2003 = vrot.slane %v1990, 5
  %v2004 = vsel %vm543, %v2003, %v2002
  %v2005 = vpack.c.b16 %v2004, %v2004
  %2006 = vrot.lane.b32.xlu0 %v2005, 32
  %v2007 = vpop.permute.xlu0 %2006
  %v2009 = vsel %vm87, %v2007, 0
  %2011 = vmatprep.subr.bf16.mxu0 0
  %2012 = vmatpush1.bf16.msra.mxu0 %v180
  %2013 = vmatprep.subr.bf16.mxu0 0
  %2014 = vmatpush1.bf16.msra.mxu0 %v181
  %2015 = vmatprep.subr.bf16.mxu0 0
  %2016 = vmatpush1.bf16.msra.mxu0 0
  %2017 = vmatprep.subr.bf16.mxu0 0
  %2018 = vmatpush1.bf16.msra.mxu0 0
  %2019 = vmatprep.subr.bf16.mxu0 0
  %2020 = vmatpush1.bf16.msra.mxu0 0
  %2021 = vmatprep.subr.bf16.mxu0 0
  %2022 = vmatpush1.bf16.msra.mxu0 0
  %2023 = vmatprep.subr.bf16.mxu0 0
  %2024 = vmatpush1.bf16.msra.mxu0 0
  %2025 = vmatprep.subr.bf16.mxu0 0
  %2026 = vmatpush1.bf16.msra.mxu0 0
  %2027 = vmatprep.subr.bf16.mxu0 0
  %2028 = vmatpush1.bf16.msra.mxu0 0
  %2029 = vmatprep.subr.bf16.mxu0 0
  %2030 = vmatpush1.bf16.msra.mxu0 0
  %2031 = vmatprep.subr.bf16.mxu0 0
  %2032 = vmatpush1.bf16.msra.mxu0 0
  %2033 = vmatprep.subr.bf16.mxu0 0
  %2034 = vmatpush1.bf16.msra.mxu0 0
  %2035 = vmatprep.subr.bf16.mxu0 0
  %2036 = vmatpush1.bf16.msra.mxu0 0
  %2037 = vmatprep.subr.bf16.mxu0 0
  %2038 = vmatpush1.bf16.msra.mxu0 0
  %2039 = vmatprep.subr.bf16.mxu0 0
  %2040 = vmatpush1.bf16.msra.mxu0 0
  %2041 = vmatprep.subr.bf16.mxu0 0
  %2042 = vmatpush1.bf16.msra.mxu0 0
  %2043 = vmatprep.mubr.bf16.mxu0 0
  %2044 = vmatmul.mubr.bf16.gmra.mrb[0].mxu0 %v2009
  %v2045 = vpop.f32.mrb[0].mxu0
  %v2046 = vadd.f32 0.0, %v2045
  %v2047 = vpop.f32.mrb[0].mxu0
  %v2048 = vpop.f32.mrb[0].mxu0
  %v2049 = vpop.f32.mrb[0].mxu0
  %2050 = vdwg.mxu0
  %v2052 = vrot.slane %v2046, 3
  %v2053 = vrot.slane %v2046, 4
  %v2054 = vrot.slane %v2046, 5
  %v2055 = vrot.slane %v2046, 6
  %v2056 = vrot.slane %v2046, 7
  %v2057 = vrot.slane %v2046, 1
  %v2058 = vrot.slane %v2046, 2
  %v2067 = vadd.f32 %v135, %v2052
  %v2068 = vadd.f32 %v138, %v2053
  %v2069 = vadd.f32 %v143, %v2054
  %v2070 = vadd.f32 %v146, %v2055
  %v2071 = vadd.f32 %v151, %v2056
  %v2072 = vadd.f32 %v154, %v2046
  %v2073 = vadd.f32 %v159, %v2057
  %v2074 = vadd.f32 %v162, %v2058
  %v2075 = vxor.u32 %v2067, 2147483648
  %v2076 = vxor.u32 %v2068, 2147483648
  %v2077 = vxor.u32 %v2069, 2147483648
  %v2078 = vxor.u32 %v2070, 2147483648
  %v2079 = vxor.u32 %v2071, 2147483648
  %v2080 = vxor.u32 %v2072, 2147483648
  %v2081 = vxor.u32 %v2073, 2147483648
  %v2082 = vxor.u32 %v2074, 2147483648
  %v2083 = vmul.f32 %v2075, 1.442695
  %v2084 = vpow.pop %v2083
  %v2085 = vmul.f32 %v2076, 1.442695
  %v2086 = vpow.pop %v2085
  %v2087 = vmul.f32 %v2077, 1.442695
  %v2088 = vpow.pop %v2087
  %v2089 = vmul.f32 %v2078, 1.442695
  %v2090 = vpow.pop %v2089
  %v2091 = vmul.f32 %v2079, 1.442695
  %v2092 = vpow.pop %v2091
  %v2093 = vmul.f32 %v2080, 1.442695
  %v2094 = vpow.pop %v2093
  %v2095 = vmul.f32 %v2081, 1.442695
  %v2096 = vpow.pop %v2095
  %v2097 = vmul.f32 %v2082, 1.442695
  %v2098 = vpow.pop %v2097
  %v2099 = vadd.f32 %v2084, 1.0
  %v2100 = vadd.f32 %v2086, 1.0
  %v2101 = vadd.f32 %v2088, 1.0
  %v2102 = vadd.f32 %v2090, 1.0
  %v2103 = vadd.f32 %v2092, 1.0
  %v2104 = vadd.f32 %v2094, 1.0
  %v2105 = vadd.f32 %v2096, 1.0
  %v2106 = vadd.f32 %v2098, 1.0
  %v2107 = vrcp.pop %v2099
  %v2108 = vmul.f32 1.0, %v2107
  %v2109 = vrcp.pop %v2100
  %v2110 = vmul.f32 1.0, %v2109
  %v2111 = vrcp.pop %v2101
  %v2112 = vmul.f32 1.0, %v2111
  %v2113 = vrcp.pop %v2102
  %v2114 = vmul.f32 1.0, %v2113
  %v2115 = vrcp.pop %v2103
  %v2116 = vmul.f32 1.0, %v2115
  %v2117 = vrcp.pop %v2104
  %v2118 = vmul.f32 1.0, %v2117
  %v2119 = vrcp.pop %v2105
  %v2120 = vmul.f32 1.0, %v2119
  %v2121 = vrcp.pop %v2106
  %v2122 = vmul.f32 1.0, %v2121
  %v2123 = vtanh.pop %v2067
  %v2124 = vtanh.pop %v2068
  %v2125 = vtanh.pop %v2069
  %v2126 = vtanh.pop %v2070
  %v2127 = vtanh.pop %v2071
  %v2128 = vtanh.pop %v2072
  %v2129 = vtanh.pop %v2073
  %v2130 = vtanh.pop %v2074
  %v2139 = vrot.slane %v1870, 7
  %v2140 = vrot.slane %v1871, 7
  %v2141 = vrot.slane %v1872, 7
  %v2142 = vrot.slane %v1873, 7
  %v2143 = vrot.slane %v1874, 7
  %v2144 = vrot.slane %v1875, 7
  %v2145 = vrot.slane %v1876, 7
  %v2146 = vrot.slane %v1877, 7
  %v2155 = vmul.f32 %v2108, %v2139
  %v2156 = vmul.f32 %v2110, %v2140
  %v2157 = vmul.f32 %v2112, %v2141
  %v2158 = vmul.f32 %v2114, %v2142
  %v2159 = vmul.f32 %v2116, %v2143
  %v2160 = vmul.f32 %v2118, %v2144
  %v2161 = vmul.f32 %v2120, %v2145
  %v2162 = vmul.f32 %v2122, %v2146
  %2171 = vrot.lane.b32.xlu0 %v2123, 32
  %v2172 = vpop.permute.xlu0 %2171
  %2173 = vrot.lane.b32.xlu0 %v2124, 32
  %v2174 = vpop.permute.xlu0 %2173
  %2175 = vrot.lane.b32.xlu0 %v2125, 32
  %v2176 = vpop.permute.xlu0 %2175
  %2177 = vrot.lane.b32.xlu0 %v2126, 32
  %v2178 = vpop.permute.xlu0 %2177
  %2179 = vrot.lane.b32.xlu0 %v2127, 32
  %v2180 = vpop.permute.xlu0 %2179
  %2181 = vrot.lane.b32.xlu0 %v2128, 32
  %v2182 = vpop.permute.xlu0 %2181
  %2183 = vrot.lane.b32.xlu0 %v2129, 32
  %v2184 = vpop.permute.xlu0 %2183
  %2185 = vrot.lane.b32.xlu0 %v2130, 32
  %v2186 = vpop.permute.xlu0 %2185
  %v2195 = vmul.f32 %v2108, %v2172
  %v2196 = vmul.f32 %v2110, %v2174
  %v2197 = vmul.f32 %v2112, %v2176
  %v2198 = vmul.f32 %v2114, %v2178
  %v2199 = vmul.f32 %v2116, %v2180
  %v2200 = vmul.f32 %v2118, %v2182
  %v2201 = vmul.f32 %v2120, %v2184
  %v2202 = vmul.f32 %v2122, %v2186
  %2211 = vrot.lane.b32.xlu0 %v2195, 64
  %v2212 = vpop.permute.xlu0 %2211
  %2213 = vrot.lane.b32.xlu0 %v2196, 64
  %v2214 = vpop.permute.xlu0 %2213
  %2215 = vrot.lane.b32.xlu0 %v2197, 64
  %v2216 = vpop.permute.xlu0 %2215
  %2217 = vrot.lane.b32.xlu0 %v2198, 64
  %v2218 = vpop.permute.xlu0 %2217
  %2219 = vrot.lane.b32.xlu0 %v2199, 64
  %v2220 = vpop.permute.xlu0 %2219
  %2221 = vrot.lane.b32.xlu0 %v2200, 64
  %v2222 = vpop.permute.xlu0 %2221
  %2223 = vrot.lane.b32.xlu0 %v2201, 64
  %v2224 = vpop.permute.xlu0 %2223
  %2225 = vrot.lane.b32.xlu0 %v2202, 64
  %v2226 = vpop.permute.xlu0 %2225
  %v2235 = vadd.f32 %v2155, %v2212
  %v2236 = vadd.f32 %v2156, %v2214
  %v2237 = vadd.f32 %v2157, %v2216
  %v2238 = vadd.f32 %v2158, %v2218
  %v2239 = vadd.f32 %v2159, %v2220
  %v2240 = vadd.f32 %v2160, %v2222
  %v2241 = vadd.f32 %v2161, %v2224
  %v2242 = vadd.f32 %v2162, %v2226
  %v2243 = vtanh.pop %v2235
  %v2244 = vtanh.pop %v2236
  %v2245 = vtanh.pop %v2237
  %v2246 = vtanh.pop %v2238
  %v2247 = vtanh.pop %v2239
  %v2248 = vtanh.pop %v2240
  %v2249 = vtanh.pop %v2241
  %v2250 = vtanh.pop %v2242
  %2259 = vrot.lane.b32.xlu0 %v2243, 96
  %v2260 = vpop.permute.xlu0 %2259
  %2261 = vrot.lane.b32.xlu0 %v2244, 96
  %v2262 = vpop.permute.xlu0 %2261
  %2263 = vrot.lane.b32.xlu0 %v2245, 96
  %v2264 = vpop.permute.xlu0 %2263
  %2265 = vrot.lane.b32.xlu0 %v2246, 96
  %v2266 = vpop.permute.xlu0 %2265
  %2267 = vrot.lane.b32.xlu0 %v2247, 96
  %v2268 = vpop.permute.xlu0 %2267
  %2269 = vrot.lane.b32.xlu0 %v2248, 96
  %v2270 = vpop.permute.xlu0 %2269
  %2271 = vrot.lane.b32.xlu0 %v2249, 96
  %v2272 = vpop.permute.xlu0 %2271
  %2273 = vrot.lane.b32.xlu0 %v2250, 96
  %v2274 = vpop.permute.xlu0 %2273
  %v2283 = vmul.f32 %v2108, %v2260
  %v2284 = vmul.f32 %v2110, %v2262
  %v2285 = vmul.f32 %v2112, %v2264
  %v2286 = vmul.f32 %v2114, %v2266
  %v2287 = vmul.f32 %v2116, %v2268
  %v2288 = vmul.f32 %v2118, %v2270
  %v2289 = vmul.f32 %v2120, %v2272
  %v2290 = vmul.f32 %v2122, %v2274
  %2299 = vrot.lane.b32.xlu0 %v2283, 32
  %v2300 = vpop.permute.xlu0 %2299
  %2301 = vrot.lane.b32.xlu0 %v2284, 32
  %v2302 = vpop.permute.xlu0 %2301
  %2303 = vrot.lane.b32.xlu0 %v2285, 32
  %v2304 = vpop.permute.xlu0 %2303
  %2305 = vrot.lane.b32.xlu0 %v2286, 32
  %v2306 = vpop.permute.xlu0 %2305
  %2307 = vrot.lane.b32.xlu0 %v2287, 32
  %v2308 = vpop.permute.xlu0 %2307
  %2309 = vrot.lane.b32.xlu0 %v2288, 32
  %v2310 = vpop.permute.xlu0 %2309
  %2311 = vrot.lane.b32.xlu0 %v2289, 32
  %v2312 = vpop.permute.xlu0 %2311
  %2313 = vrot.lane.b32.xlu0 %v2290, 32
  %v2314 = vpop.permute.xlu0 %2313
  %vm2323 = vcmask 259077
  %2324 = vst.msk [vmem:[%s4] sm:$0x20] %vm2323, %v2300
  %2325 = vst.msk [vmem:[%s4 + $0x8] sm:$0x20] %vm2323, %v2302
  %2326 = vst.msk [vmem:[%s4 + $0x10] sm:$0x20] %vm2323, %v2304
  %2327 = vst.msk [vmem:[%s4 + $0x18] sm:$0x20] %vm2323, %v2306
  %2328 = vst.msk [vmem:[%s4 + $0x20] sm:$0x20] %vm2323, %v2308
  %2329 = vst.msk [vmem:[%s4 + $0x28] sm:$0x20] %vm2323, %v2310
  %2330 = vst.msk [vmem:[%s4 + $0x30] sm:$0x20] %vm2323, %v2312
  %2331 = vst.msk [vmem:[%s4 + $0x38] sm:$0x20] %vm2323, %v2314
  %v2332 = vpack.c.bf16 %v2283, %v2283
  %v2333 = vpack.c.bf16 %v2284, %v2284
  %v2334 = vpack.c.bf16 %v2285, %v2285
  %v2335 = vpack.c.bf16 %v2286, %v2286
  %v2336 = vpack.c.bf16 %v2287, %v2287
  %v2337 = vpack.c.bf16 %v2288, %v2288
  %v2338 = vpack.c.bf16 %v2289, %v2289
  %v2339 = vpack.c.bf16 %v2290, %v2290
  %v2348 = vunpack.c.l.b16 %v2332
  %v2349 = vunpack.c.l.b16 %v2333
  %v2350 = vunpack.c.l.b16 %v2334
  %v2351 = vunpack.c.l.b16 %v2335
  %v2352 = vunpack.c.l.b16 %v2336
  %v2353 = vunpack.c.l.b16 %v2337
  %v2354 = vunpack.c.l.b16 %v2338
  %v2355 = vunpack.c.l.b16 %v2339
  %v2356 = vrot.slane %v2348, 5
  %v2357 = vrot.slane %v2349, 4
  %v2358 = vsel %vm525, %v2357, %v2356
  %v2359 = vrot.slane %v2350, 3
  %v2360 = vsel %vm528, %v2359, %v2358
  %v2361 = vrot.slane %v2351, 2
  %v2362 = vsel %vm531, %v2361, %v2360
  %v2363 = vrot.slane %v2352, 1
  %v2364 = vsel %vm534, %v2363, %v2362
  %v2365 = vsel %vm537, %v2353, %v2364
  %v2366 = vrot.slane %v2354, 7
  %v2367 = vsel %vm540, %v2366, %v2365
  %v2368 = vrot.slane %v2355, 6
  %v2369 = vsel %vm543, %v2368, %v2367
  %v2370 = vpack.c.b16 %v2369, %v2369
  %2371 = vrot.lane.b32.xlu0 %v2370, 32
  %v2372 = vpop.permute.xlu0 %2371
  %v2374 = vsel %vm87, %v2372, 0
  %2376 = vmatprep.subr.bf16.mxu0 0
  %2377 = vmatpush1.bf16.msra.mxu0 %v180
  %2378 = vmatprep.subr.bf16.mxu0 0
  %2379 = vmatpush1.bf16.msra.mxu0 %v181
  %2380 = vmatprep.subr.bf16.mxu0 0
  %2381 = vmatpush1.bf16.msra.mxu0 0
  %2382 = vmatprep.subr.bf16.mxu0 0
  %2383 = vmatpush1.bf16.msra.mxu0 0
  %2384 = vmatprep.subr.bf16.mxu0 0
  %2385 = vmatpush1.bf16.msra.mxu0 0
  %2386 = vmatprep.subr.bf16.mxu0 0
  %2387 = vmatpush1.bf16.msra.mxu0 0
  %2388 = vmatprep.subr.bf16.mxu0 0
  %2389 = vmatpush1.bf16.msra.mxu0 0
  %2390 = vmatprep.subr.bf16.mxu0 0
  %2391 = vmatpush1.bf16.msra.mxu0 0
  %2392 = vmatprep.subr.bf16.mxu0 0
  %2393 = vmatpush1.bf16.msra.mxu0 0
  %2394 = vmatprep.subr.bf16.mxu0 0
  %2395 = vmatpush1.bf16.msra.mxu0 0
  %2396 = vmatprep.subr.bf16.mxu0 0
  %2397 = vmatpush1.bf16.msra.mxu0 0
  %2398 = vmatprep.subr.bf16.mxu0 0
  %2399 = vmatpush1.bf16.msra.mxu0 0
  %2400 = vmatprep.subr.bf16.mxu0 0
  %2401 = vmatpush1.bf16.msra.mxu0 0
  %2402 = vmatprep.subr.bf16.mxu0 0
  %2403 = vmatpush1.bf16.msra.mxu0 0
  %2404 = vmatprep.subr.bf16.mxu0 0
  %2405 = vmatpush1.bf16.msra.mxu0 0
  %2406 = vmatprep.subr.bf16.mxu0 0
  %2407 = vmatpush1.bf16.msra.mxu0 0
  %2408 = vmatprep.mubr.bf16.mxu0 0
  %2409 = vmatmul.mubr.bf16.gmra.mrb[0].mxu0 %v2374
  %v2410 = vpop.f32.mrb[0].mxu0
  %v2411 = vadd.f32 0.0, %v2410
  %v2412 = vpop.f32.mrb[0].mxu0
  %v2413 = vpop.f32.mrb[0].mxu0
  %v2414 = vpop.f32.mrb[0].mxu0
  %2415 = vdwg.mxu0
  %v2417 = vrot.slane %v2411, 2
  %v2418 = vrot.slane %v2411, 3
  %v2419 = vrot.slane %v2411, 4
  %v2420 = vrot.slane %v2411, 5
  %v2421 = vrot.slane %v2411, 6
  %v2422 = vrot.slane %v2411, 7
  %v2423 = vrot.slane %v2411, 1
  %v2432 = vadd.f32 %v135, %v2417
  %v2433 = vadd.f32 %v138, %v2418
  %v2434 = vadd.f32 %v143, %v2419
  %v2435 = vadd.f32 %v146, %v2420
  %v2436 = vadd.f32 %v151, %v2421
  %v2437 = vadd.f32 %v154, %v2422
  %v2438 = vadd.f32 %v159, %v2411
  %v2439 = vadd.f32 %v162, %v2423
  %v2440 = vxor.u32 %v2432, 2147483648
  %v2441 = vxor.u32 %v2433, 2147483648
  %v2442 = vxor.u32 %v2434, 2147483648
  %v2443 = vxor.u32 %v2435, 2147483648
  %v2444 = vxor.u32 %v2436, 2147483648
  %v2445 = vxor.u32 %v2437, 2147483648
  %v2446 = vxor.u32 %v2438, 2147483648
  %v2447 = vxor.u32 %v2439, 2147483648
  %v2448 = vmul.f32 %v2440, 1.442695
  %v2449 = vpow.pop %v2448
  %v2450 = vmul.f32 %v2441, 1.442695
  %v2451 = vpow.pop %v2450
  %v2452 = vmul.f32 %v2442, 1.442695
  %v2453 = vpow.pop %v2452
  %v2454 = vmul.f32 %v2443, 1.442695
  %v2455 = vpow.pop %v2454
  %v2456 = vmul.f32 %v2444, 1.442695
  %v2457 = vpow.pop %v2456
  %v2458 = vmul.f32 %v2445, 1.442695
  %v2459 = vpow.pop %v2458
  %v2460 = vmul.f32 %v2446, 1.442695
  %v2461 = vpow.pop %v2460
  %v2462 = vmul.f32 %v2447, 1.442695
  %v2463 = vpow.pop %v2462
  %v2464 = vadd.f32 %v2449, 1.0
  %v2465 = vadd.f32 %v2451, 1.0
  %v2466 = vadd.f32 %v2453, 1.0
  %v2467 = vadd.f32 %v2455, 1.0
  %v2468 = vadd.f32 %v2457, 1.0
  %v2469 = vadd.f32 %v2459, 1.0
  %v2470 = vadd.f32 %v2461, 1.0
  %v2471 = vadd.f32 %v2463, 1.0
  %v2472 = vrcp.pop %v2464
  %v2473 = vmul.f32 1.0, %v2472
  %v2474 = vrcp.pop %v2465
  %v2475 = vmul.f32 1.0, %v2474
  %v2476 = vrcp.pop %v2466
  %v2477 = vmul.f32 1.0, %v2476
  %v2478 = vrcp.pop %v2467
  %v2479 = vmul.f32 1.0, %v2478
  %v2480 = vrcp.pop %v2468
  %v2481 = vmul.f32 1.0, %v2480
  %v2482 = vrcp.pop %v2469
  %v2483 = vmul.f32 1.0, %v2482
  %v2484 = vrcp.pop %v2470
  %v2485 = vmul.f32 1.0, %v2484
  %v2486 = vrcp.pop %v2471
  %v2487 = vmul.f32 1.0, %v2486
  %v2488 = vtanh.pop %v2432
  %v2489 = vtanh.pop %v2433
  %v2490 = vtanh.pop %v2434
  %v2491 = vtanh.pop %v2435
  %v2492 = vtanh.pop %v2436
  %v2493 = vtanh.pop %v2437
  %v2494 = vtanh.pop %v2438
  %v2495 = vtanh.pop %v2439
  %v2504 = vrot.slane %v2235, 7
  %v2505 = vrot.slane %v2236, 7
  %v2506 = vrot.slane %v2237, 7
  %v2507 = vrot.slane %v2238, 7
  %v2508 = vrot.slane %v2239, 7
  %v2509 = vrot.slane %v2240, 7
  %v2510 = vrot.slane %v2241, 7
  %v2511 = vrot.slane %v2242, 7
  %v2520 = vmul.f32 %v2473, %v2504
  %v2521 = vmul.f32 %v2475, %v2505
  %v2522 = vmul.f32 %v2477, %v2506
  %v2523 = vmul.f32 %v2479, %v2507
  %v2524 = vmul.f32 %v2481, %v2508
  %v2525 = vmul.f32 %v2483, %v2509
  %v2526 = vmul.f32 %v2485, %v2510
  %v2527 = vmul.f32 %v2487, %v2511
  %2536 = vrot.lane.b32.xlu0 %v2488, 32
  %v2537 = vpop.permute.xlu0 %2536
  %2538 = vrot.lane.b32.xlu0 %v2489, 32
  %v2539 = vpop.permute.xlu0 %2538
  %2540 = vrot.lane.b32.xlu0 %v2490, 32
  %v2541 = vpop.permute.xlu0 %2540
  %2542 = vrot.lane.b32.xlu0 %v2491, 32
  %v2543 = vpop.permute.xlu0 %2542
  %2544 = vrot.lane.b32.xlu0 %v2492, 32
  %v2545 = vpop.permute.xlu0 %2544
  %2546 = vrot.lane.b32.xlu0 %v2493, 32
  %v2547 = vpop.permute.xlu0 %2546
  %2548 = vrot.lane.b32.xlu0 %v2494, 32
  %v2549 = vpop.permute.xlu0 %2548
  %2550 = vrot.lane.b32.xlu0 %v2495, 32
  %v2551 = vpop.permute.xlu0 %2550
  %v2560 = vmul.f32 %v2473, %v2537
  %v2561 = vmul.f32 %v2475, %v2539
  %v2562 = vmul.f32 %v2477, %v2541
  %v2563 = vmul.f32 %v2479, %v2543
  %v2564 = vmul.f32 %v2481, %v2545
  %v2565 = vmul.f32 %v2483, %v2547
  %v2566 = vmul.f32 %v2485, %v2549
  %v2567 = vmul.f32 %v2487, %v2551
  %2576 = vrot.lane.b32.xlu0 %v2560, 64
  %v2577 = vpop.permute.xlu0 %2576
  %2578 = vrot.lane.b32.xlu0 %v2561, 64
  %v2579 = vpop.permute.xlu0 %2578
  %2580 = vrot.lane.b32.xlu0 %v2562, 64
  %v2581 = vpop.permute.xlu0 %2580
  %2582 = vrot.lane.b32.xlu0 %v2563, 64
  %v2583 = vpop.permute.xlu0 %2582
  %2584 = vrot.lane.b32.xlu0 %v2564, 64
  %v2585 = vpop.permute.xlu0 %2584
  %2586 = vrot.lane.b32.xlu0 %v2565, 64
  %v2587 = vpop.permute.xlu0 %2586
  %2588 = vrot.lane.b32.xlu0 %v2566, 64
  %v2589 = vpop.permute.xlu0 %2588
  %2590 = vrot.lane.b32.xlu0 %v2567, 64
  %v2591 = vpop.permute.xlu0 %2590
  %v2600 = vadd.f32 %v2520, %v2577
  %v2601 = vadd.f32 %v2521, %v2579
  %v2602 = vadd.f32 %v2522, %v2581
  %v2603 = vadd.f32 %v2523, %v2583
  %v2604 = vadd.f32 %v2524, %v2585
  %v2605 = vadd.f32 %v2525, %v2587
  %v2606 = vadd.f32 %v2526, %v2589
  %v2607 = vadd.f32 %v2527, %v2591
  %v2608 = vtanh.pop %v2600
  %v2609 = vtanh.pop %v2601
  %v2610 = vtanh.pop %v2602
  %v2611 = vtanh.pop %v2603
  %v2612 = vtanh.pop %v2604
  %v2613 = vtanh.pop %v2605
  %v2614 = vtanh.pop %v2606
  %v2615 = vtanh.pop %v2607
  %2624 = vrot.lane.b32.xlu0 %v2608, 96
  %v2625 = vpop.permute.xlu0 %2624
  %2626 = vrot.lane.b32.xlu0 %v2609, 96
  %v2627 = vpop.permute.xlu0 %2626
  %2628 = vrot.lane.b32.xlu0 %v2610, 96
  %v2629 = vpop.permute.xlu0 %2628
  %2630 = vrot.lane.b32.xlu0 %v2611, 96
  %v2631 = vpop.permute.xlu0 %2630
  %2632 = vrot.lane.b32.xlu0 %v2612, 96
  %v2633 = vpop.permute.xlu0 %2632
  %2634 = vrot.lane.b32.xlu0 %v2613, 96
  %v2635 = vpop.permute.xlu0 %2634
  %2636 = vrot.lane.b32.xlu0 %v2614, 96
  %v2637 = vpop.permute.xlu0 %2636
  %2638 = vrot.lane.b32.xlu0 %v2615, 96
  %v2639 = vpop.permute.xlu0 %2638
  %v2648 = vmul.f32 %v2473, %v2625
  %v2649 = vmul.f32 %v2475, %v2627
  %v2650 = vmul.f32 %v2477, %v2629
  %v2651 = vmul.f32 %v2479, %v2631
  %v2652 = vmul.f32 %v2481, %v2633
  %v2653 = vmul.f32 %v2483, %v2635
  %v2654 = vmul.f32 %v2485, %v2637
  %v2655 = vmul.f32 %v2487, %v2639
  %2664 = vrot.lane.b32.xlu0 %v2648, 32
  %v2665 = vpop.permute.xlu0 %2664
  %2666 = vrot.lane.b32.xlu0 %v2649, 32
  %v2667 = vpop.permute.xlu0 %2666
  %2668 = vrot.lane.b32.xlu0 %v2650, 32
  %v2669 = vpop.permute.xlu0 %2668
  %2670 = vrot.lane.b32.xlu0 %v2651, 32
  %v2671 = vpop.permute.xlu0 %2670
  %2672 = vrot.lane.b32.xlu0 %v2652, 32
  %v2673 = vpop.permute.xlu0 %2672
  %2674 = vrot.lane.b32.xlu0 %v2653, 32
  %v2675 = vpop.permute.xlu0 %2674
  %2676 = vrot.lane.b32.xlu0 %v2654, 32
  %v2677 = vpop.permute.xlu0 %2676
  %2678 = vrot.lane.b32.xlu0 %v2655, 32
  %v2679 = vpop.permute.xlu0 %2678
  %vm2688 = vcmask 260102
  %2689 = vst.msk [vmem:[%s4] sm:$0x40] %vm2688, %v2665
  %2690 = vst.msk [vmem:[%s4 + $0x8] sm:$0x40] %vm2688, %v2667
  %2691 = vst.msk [vmem:[%s4 + $0x10] sm:$0x40] %vm2688, %v2669
  %2692 = vst.msk [vmem:[%s4 + $0x18] sm:$0x40] %vm2688, %v2671
  %2693 = vst.msk [vmem:[%s4 + $0x20] sm:$0x40] %vm2688, %v2673
  %2694 = vst.msk [vmem:[%s4 + $0x28] sm:$0x40] %vm2688, %v2675
  %2695 = vst.msk [vmem:[%s4 + $0x30] sm:$0x40] %vm2688, %v2677
  %2696 = vst.msk [vmem:[%s4 + $0x38] sm:$0x40] %vm2688, %v2679
  %v2697 = vpack.c.bf16 %v2648, %v2648
  %v2698 = vpack.c.bf16 %v2649, %v2649
  %v2699 = vpack.c.bf16 %v2650, %v2650
  %v2700 = vpack.c.bf16 %v2651, %v2651
  %v2701 = vpack.c.bf16 %v2652, %v2652
  %v2702 = vpack.c.bf16 %v2653, %v2653
  %v2703 = vpack.c.bf16 %v2654, %v2654
  %v2704 = vpack.c.bf16 %v2655, %v2655
  %v2713 = vunpack.c.l.b16 %v2697
  %v2714 = vunpack.c.l.b16 %v2698
  %v2715 = vunpack.c.l.b16 %v2699
  %v2716 = vunpack.c.l.b16 %v2700
  %v2717 = vunpack.c.l.b16 %v2701
  %v2718 = vunpack.c.l.b16 %v2702
  %v2719 = vunpack.c.l.b16 %v2703
  %v2720 = vunpack.c.l.b16 %v2704
  %v2721 = vrot.slane %v2713, 6
  %v2722 = vrot.slane %v2714, 5
  %v2723 = vsel %vm525, %v2722, %v2721
  %v2724 = vrot.slane %v2715, 4
  %v2725 = vsel %vm528, %v2724, %v2723
  %v2726 = vrot.slane %v2716, 3
  %v2727 = vsel %vm531, %v2726, %v2725
  %v2728 = vrot.slane %v2717, 2
  %v2729 = vsel %vm534, %v2728, %v2727
  %v2730 = vrot.slane %v2718, 1
  %v2731 = vsel %vm537, %v2730, %v2729
  %v2732 = vsel %vm540, %v2719, %v2731
  %v2733 = vrot.slane %v2720, 7
  %v2734 = vsel %vm543, %v2733, %v2732
  %v2735 = vpack.c.b16 %v2734, %v2734
  %2736 = vrot.lane.b32.xlu0 %v2735, 32
  %v2737 = vpop.permute.xlu0 %2736
  %v2739 = vsel %vm87, %v2737, 0
  %2741 = vmatprep.subr.bf16.mxu0 0
  %2742 = vmatpush1.bf16.msra.mxu0 %v180
  %2743 = vmatprep.subr.bf16.mxu0 0
  %2744 = vmatpush1.bf16.msra.mxu0 %v181
  %2745 = vmatprep.subr.bf16.mxu0 0
  %2746 = vmatpush1.bf16.msra.mxu0 0
  %2747 = vmatprep.subr.bf16.mxu0 0
  %2748 = vmatpush1.bf16.msra.mxu0 0
  %2749 = vmatprep.subr.bf16.mxu0 0
  %2750 = vmatpush1.bf16.msra.mxu0 0
  %2751 = vmatprep.subr.bf16.mxu0 0
  %2752 = vmatpush1.bf16.msra.mxu0 0
  %2753 = vmatprep.subr.bf16.mxu0 0
  %2754 = vmatpush1.bf16.msra.mxu0 0
  %2755 = vmatprep.subr.bf16.mxu0 0
  %2756 = vmatpush1.bf16.msra.mxu0 0
  %2757 = vmatprep.subr.bf16.mxu0 0
  %2758 = vmatpush1.bf16.msra.mxu0 0
  %2759 = vmatprep.subr.bf16.mxu0 0
  %2760 = vmatpush1.bf16.msra.mxu0 0
  %2761 = vmatprep.subr.bf16.mxu0 0
  %2762 = vmatpush1.bf16.msra.mxu0 0
  %2763 = vmatprep.subr.bf16.mxu0 0
  %2764 = vmatpush1.bf16.msra.mxu0 0
  %2765 = vmatprep.subr.bf16.mxu0 0
  %2766 = vmatpush1.bf16.msra.mxu0 0
  %2767 = vmatprep.subr.bf16.mxu0 0
  %2768 = vmatpush1.bf16.msra.mxu0 0
  %2769 = vmatprep.subr.bf16.mxu0 0
  %2770 = vmatpush1.bf16.msra.mxu0 0
  %2771 = vmatprep.subr.bf16.mxu0 0
  %2772 = vmatpush1.bf16.msra.mxu0 0
  %2773 = vmatprep.mubr.bf16.mxu0 0
  %2774 = vmatmul.mubr.bf16.gmra.mrb[0].mxu0 %v2739
  %v2775 = vpop.f32.mrb[0].mxu0
  %v2776 = vadd.f32 0.0, %v2775
  %v2777 = vpop.f32.mrb[0].mxu0
  %v2778 = vpop.f32.mrb[0].mxu0
  %v2779 = vpop.f32.mrb[0].mxu0
  %2780 = vdwg.mxu0
  %v2782 = vrot.slane %v2776, 1
  %v2783 = vrot.slane %v2776, 2
  %v2784 = vrot.slane %v2776, 3
  %v2785 = vrot.slane %v2776, 4
  %v2786 = vrot.slane %v2776, 5
  %v2787 = vrot.slane %v2776, 6
  %v2788 = vrot.slane %v2776, 7
  %v2797 = vadd.f32 %v135, %v2782
  %v2798 = vadd.f32 %v138, %v2783
  %v2799 = vadd.f32 %v143, %v2784
  %v2800 = vadd.f32 %v146, %v2785
  %v2801 = vadd.f32 %v151, %v2786
  %v2802 = vadd.f32 %v154, %v2787
  %v2803 = vadd.f32 %v159, %v2788
  %v2804 = vadd.f32 %v162, %v2776
  %v2805 = vxor.u32 %v2797, 2147483648
  %v2806 = vxor.u32 %v2798, 2147483648
  %v2807 = vxor.u32 %v2799, 2147483648
  %v2808 = vxor.u32 %v2800, 2147483648
  %v2809 = vxor.u32 %v2801, 2147483648
  %v2810 = vxor.u32 %v2802, 2147483648
  %v2811 = vxor.u32 %v2803, 2147483648
  %v2812 = vxor.u32 %v2804, 2147483648
  %v2813 = vmul.f32 %v2805, 1.442695
  %v2814 = vpow.pop %v2813
  %v2815 = vmul.f32 %v2806, 1.442695
  %v2816 = vpow.pop %v2815
  %v2817 = vmul.f32 %v2807, 1.442695
  %v2818 = vpow.pop %v2817
  %v2819 = vmul.f32 %v2808, 1.442695
  %v2820 = vpow.pop %v2819
  %v2821 = vmul.f32 %v2809, 1.442695
  %v2822 = vpow.pop %v2821
  %v2823 = vmul.f32 %v2810, 1.442695
  %v2824 = vpow.pop %v2823
  %v2825 = vmul.f32 %v2811, 1.442695
  %v2826 = vpow.pop %v2825
  %v2827 = vmul.f32 %v2812, 1.442695
  %v2828 = vpow.pop %v2827
  %v2829 = vadd.f32 %v2814, 1.0
  %v2830 = vadd.f32 %v2816, 1.0
  %v2831 = vadd.f32 %v2818, 1.0
  %v2832 = vadd.f32 %v2820, 1.0
  %v2833 = vadd.f32 %v2822, 1.0
  %v2834 = vadd.f32 %v2824, 1.0
  %v2835 = vadd.f32 %v2826, 1.0
  %v2836 = vadd.f32 %v2828, 1.0
  %v2837 = vrcp.pop %v2829
  %v2838 = vmul.f32 1.0, %v2837
  %v2839 = vrcp.pop %v2830
  %v2840 = vmul.f32 1.0, %v2839
  %v2841 = vrcp.pop %v2831
  %v2842 = vmul.f32 1.0, %v2841
  %v2843 = vrcp.pop %v2832
  %v2844 = vmul.f32 1.0, %v2843
  %v2845 = vrcp.pop %v2833
  %v2846 = vmul.f32 1.0, %v2845
  %v2847 = vrcp.pop %v2834
  %v2848 = vmul.f32 1.0, %v2847
  %v2849 = vrcp.pop %v2835
  %v2850 = vmul.f32 1.0, %v2849
  %v2851 = vrcp.pop %v2836
  %v2852 = vmul.f32 1.0, %v2851
  %v2853 = vtanh.pop %v2797
  %v2854 = vtanh.pop %v2798
  %v2855 = vtanh.pop %v2799
  %v2856 = vtanh.pop %v2800
  %v2857 = vtanh.pop %v2801
  %v2858 = vtanh.pop %v2802
  %v2859 = vtanh.pop %v2803
  %v2860 = vtanh.pop %v2804
  %v2869 = vrot.slane %v2600, 7
  %v2870 = vrot.slane %v2601, 7
  %v2871 = vrot.slane %v2602, 7
  %v2872 = vrot.slane %v2603, 7
  %v2873 = vrot.slane %v2604, 7
  %v2874 = vrot.slane %v2605, 7
  %v2875 = vrot.slane %v2606, 7
  %v2876 = vrot.slane %v2607, 7
  %v2885 = vmul.f32 %v2838, %v2869
  %v2886 = vmul.f32 %v2840, %v2870
  %v2887 = vmul.f32 %v2842, %v2871
  %v2888 = vmul.f32 %v2844, %v2872
  %v2889 = vmul.f32 %v2846, %v2873
  %v2890 = vmul.f32 %v2848, %v2874
  %v2891 = vmul.f32 %v2850, %v2875
  %v2892 = vmul.f32 %v2852, %v2876
  %2901 = vrot.lane.b32.xlu0 %v2853, 32
  %v2902 = vpop.permute.xlu0 %2901
  %2903 = vrot.lane.b32.xlu0 %v2854, 32
  %v2904 = vpop.permute.xlu0 %2903
  %2905 = vrot.lane.b32.xlu0 %v2855, 32
  %v2906 = vpop.permute.xlu0 %2905
  %2907 = vrot.lane.b32.xlu0 %v2856, 32
  %v2908 = vpop.permute.xlu0 %2907
  %2909 = vrot.lane.b32.xlu0 %v2857, 32
  %v2910 = vpop.permute.xlu0 %2909
  %2911 = vrot.lane.b32.xlu0 %v2858, 32
  %v2912 = vpop.permute.xlu0 %2911
  %2913 = vrot.lane.b32.xlu0 %v2859, 32
  %v2914 = vpop.permute.xlu0 %2913
  %2915 = vrot.lane.b32.xlu0 %v2860, 32
  %v2916 = vpop.permute.xlu0 %2915
  %v2925 = vmul.f32 %v2838, %v2902
  %v2926 = vmul.f32 %v2840, %v2904
  %v2927 = vmul.f32 %v2842, %v2906
  %v2928 = vmul.f32 %v2844, %v2908
  %v2929 = vmul.f32 %v2846, %v2910
  %v2930 = vmul.f32 %v2848, %v2912
  %v2931 = vmul.f32 %v2850, %v2914
  %v2932 = vmul.f32 %v2852, %v2916
  %2941 = vrot.lane.b32.xlu0 %v2925, 64
  %v2942 = vpop.permute.xlu0 %2941
  %2943 = vrot.lane.b32.xlu0 %v2926, 64
  %v2944 = vpop.permute.xlu0 %2943
  %2945 = vrot.lane.b32.xlu0 %v2927, 64
  %v2946 = vpop.permute.xlu0 %2945
  %2947 = vrot.lane.b32.xlu0 %v2928, 64
  %v2948 = vpop.permute.xlu0 %2947
  %2949 = vrot.lane.b32.xlu0 %v2929, 64
  %v2950 = vpop.permute.xlu0 %2949
  %2951 = vrot.lane.b32.xlu0 %v2930, 64
  %v2952 = vpop.permute.xlu0 %2951
  %2953 = vrot.lane.b32.xlu0 %v2931, 64
  %v2954 = vpop.permute.xlu0 %2953
  %2955 = vrot.lane.b32.xlu0 %v2932, 64
  %v2956 = vpop.permute.xlu0 %2955
  %v2965 = vadd.f32 %v2885, %v2942
  %v2966 = vadd.f32 %v2886, %v2944
  %v2967 = vadd.f32 %v2887, %v2946
  %v2968 = vadd.f32 %v2888, %v2948
  %v2969 = vadd.f32 %v2889, %v2950
  %v2970 = vadd.f32 %v2890, %v2952
  %v2971 = vadd.f32 %v2891, %v2954
  %v2972 = vadd.f32 %v2892, %v2956
  %v2973 = vtanh.pop %v2965
  %v2974 = vtanh.pop %v2966
  %v2975 = vtanh.pop %v2967
  %v2976 = vtanh.pop %v2968
  %v2977 = vtanh.pop %v2969
  %v2978 = vtanh.pop %v2970
  %v2979 = vtanh.pop %v2971
  %v2980 = vtanh.pop %v2972
  %2989 = vrot.lane.b32.xlu0 %v2973, 96
  %v2990 = vpop.permute.xlu0 %2989
  %2991 = vrot.lane.b32.xlu0 %v2974, 96
  %v2992 = vpop.permute.xlu0 %2991
  %2993 = vrot.lane.b32.xlu0 %v2975, 96
  %v2994 = vpop.permute.xlu0 %2993
  %2995 = vrot.lane.b32.xlu0 %v2976, 96
  %v2996 = vpop.permute.xlu0 %2995
  %2997 = vrot.lane.b32.xlu0 %v2977, 96
  %v2998 = vpop.permute.xlu0 %2997
  %2999 = vrot.lane.b32.xlu0 %v2978, 96
  %v3000 = vpop.permute.xlu0 %2999
  %3001 = vrot.lane.b32.xlu0 %v2979, 96
  %v3002 = vpop.permute.xlu0 %3001
  %3003 = vrot.lane.b32.xlu0 %v2980, 96
  %v3004 = vpop.permute.xlu0 %3003
  %v3013 = vmul.f32 %v2838, %v2990
  %v3014 = vmul.f32 %v2840, %v2992
  %v3015 = vmul.f32 %v2842, %v2994
  %v3016 = vmul.f32 %v2844, %v2996
  %v3017 = vmul.f32 %v2846, %v2998
  %v3018 = vmul.f32 %v2848, %v3000
  %v3019 = vmul.f32 %v2850, %v3002
  %v3020 = vmul.f32 %v2852, %v3004
  %3029 = vrot.lane.b32.xlu0 %v3013, 32
  %v3030 = vpop.permute.xlu0 %3029
  %3031 = vrot.lane.b32.xlu0 %v3014, 32
  %v3032 = vpop.permute.xlu0 %3031
  %3033 = vrot.lane.b32.xlu0 %v3015, 32
  %v3034 = vpop.permute.xlu0 %3033
  %3035 = vrot.lane.b32.xlu0 %v3016, 32
  %v3036 = vpop.permute.xlu0 %3035
  %3037 = vrot.lane.b32.xlu0 %v3017, 32
  %v3038 = vpop.permute.xlu0 %3037
  %3039 = vrot.lane.b32.xlu0 %v3018, 32
  %v3040 = vpop.permute.xlu0 %3039
  %3041 = vrot.lane.b32.xlu0 %v3019, 32
  %v3042 = vpop.permute.xlu0 %3041
  %3043 = vrot.lane.b32.xlu0 %v3020, 32
  %v3044 = vpop.permute.xlu0 %3043
  %vm3053 = vcmask 261127
  %3054 = vst.msk [vmem:[%s4] sm:$0x80] %vm3053, %v3030
  %3055 = vst.msk [vmem:[%s4 + $0x8] sm:$0x80] %vm3053, %v3032
  %3056 = vst.msk [vmem:[%s4 + $0x10] sm:$0x80] %vm3053, %v3034
  %3057 = vst.msk [vmem:[%s4 + $0x18] sm:$0x80] %vm3053, %v3036
  %3058 = vst.msk [vmem:[%s4 + $0x20] sm:$0x80] %vm3053, %v3038
  %3059 = vst.msk [vmem:[%s4 + $0x28] sm:$0x80] %vm3053, %v3040
  %3060 = vst.msk [vmem:[%s4 + $0x30] sm:$0x80] %vm3053, %v3042
  %3061 = vst.msk [vmem:[%s4 + $0x38] sm:$0x80] %vm3053, %v3044
  %v3062 = vrot.slane %v3014, 7
  %v3063 = vrot.slane %v3015, 6
  %v3064 = vsel %vm525, %v3063, %v3062
  %v3065 = vrot.slane %v3016, 5
  %v3066 = vsel %vm528, %v3065, %v3064
  %v3067 = vrot.slane %v3017, 4
  %v3068 = vsel %vm531, %v3067, %v3066
  %v3069 = vrot.slane %v3018, 3
  %v3070 = vsel %vm534, %v3069, %v3068
  %v3071 = vrot.slane %v3019, 2
  %v3072 = vsel %vm537, %v3071, %v3070
  %v3073 = vrot.slane %v3020, 1
  %v3074 = vsel %vm540, %v3073, %v3072
  %3075 = vrot.lane.b32.xlu0 %v3074, 32
  %v3076 = vpop.permute.xlu0 %3075
  %3078 = vst.msk [vmem:[#allocation2 - $0x7] sm:$0x80] %vm3053, %v3030
  %vm3079 = vcmask 260096
  %3080 = vst.msk [vmem:[#allocation2 + $0x1] sm:$0x7f] %vm3079, %v3076
  %v3089 = vrot.slane %v2966, 7
  %v3090 = vrot.slane %v2967, 6
  %v3091 = vsel %vm525, %v3090, %v3089
  %v3092 = vrot.slane %v2968, 5
  %v3093 = vsel %vm528, %v3092, %v3091
  %v3094 = vrot.slane %v2969, 4
  %v3095 = vsel %vm531, %v3094, %v3093
  %v3096 = vrot.slane %v2970, 3
  %v3097 = vsel %vm534, %v3096, %v3095
  %v3098 = vrot.slane %v2971, 2
  %v3099 = vsel %vm537, %v3098, %v3097
  %v3100 = vrot.slane %v2972, 1
  %v3101 = vsel %vm540, %v3100, %v3099
  %3104 = vst.msk [vmem:[#allocation3 - $0x7] sm:$0x80] %vm3053, %v2965
  %3105 = vst.msk [vmem:[#allocation3 + $0x1] sm:$0x7f] %vm3079, %v3101
  // Predicated region
  $region22: #{lstm_forward.3} parent=0 // pred_check
    %p3106 = pneg %p21
  $region23: #{lstm_forward.3} parent=0 // pred_check_branch
    %3108 = sbr.rel (%p3106) target = $region25
  $region24: #{lstm_forward.3} parent=0 // pred_region
    %3109 = vst.msk [vmem:[%s5 - $0x7] sm:$0x80] %vm3053, %v3030
    %3110 = vst.msk [vmem:[%s5 + $0x1] sm:$0x7f] %vm3079, %v3076
    %3111 = vst.msk [vmem:[%s6 - $0x7] sm:$0x80] %vm3053, %v2965
    %3112 = vst.msk [vmem:[%s6 + $0x1] sm:$0x7f] %vm3079, %v3101
  $region25: #{lstm_forward.3} parent=0 // pred_fallthru
    _
  // Predicated region
  $region26: #{lstm_forward.3} parent=0 // pred_check
    _
  $region27: #{lstm_forward.3} parent=0 // pred_check_branch
    %3114 = sbr.rel (0) target = $region29
  $region28: #{lstm_forward.3} parent=0 // pred_region
    _
  $region29: #{lstm_forward.3} parent=0 // pred_fallthru
    _
  // Predicated region
  $region30: #{lstm_forward.3} parent=0 // pred_check
    _
  $region31: #{lstm_forward.3} parent=0 // pred_check_branch
    %3116 = sbr.rel (0) target = $region33
  $region32: #{lstm_forward.3} parent=0 // pred_region
    _
  $region33: #{lstm_forward.3} parent=0 // pred_fallthru
    _
  // Predicated region
  $region34: #{lstm_forward.3} parent=0 // pred_check
    _
  $region35: #{lstm_forward.3} parent=0 // pred_check_branch
    %3118 = sbr.rel (0) target = $region37
  $region36: #{lstm_forward.3} parent=0 // pred_region
    _
  $region37: #{lstm_forward.3} parent=0 // pred_fallthru
    _
  // Predicated region
  $region38: #{lstm_forward.3} parent=0 // pred_check
    _
  $region39: #{lstm_forward.3} parent=0 // pred_check_branch
    %3120 = sbr.rel (0) target = $region41
  $region40: #{lstm_forward.3} parent=0 // pred_region
    _
  $region41: #{lstm_forward.3} parent=0 // pred_fallthru
    _
  // Predicated region
  $region42: #{lstm_forward.3} parent=0 // pred_check
    _
  $region43: #{lstm_forward.3} parent=0 // pred_check_branch
    %3122 = sbr.rel (0) target = $region45
  $region44: #{lstm_forward.3} parent=0 // pred_region
    _
  $region45: #{lstm_forward.3} parent=0 // pred_fallthru
    _
  // Predicated region
  $region46: #{lstm_forward.3} parent=0 // pred_check
    _
  $region47: #{lstm_forward.3} parent=0 // pred_check_branch
    %3124 = sbr.rel (0) target = $region49
  $region48: #{lstm_forward.3} parent=0 // pred_region
    _
  $region49: #{lstm_forward.3} parent=0 // pred_fallthru
    _

// kernel: lstm_forward.2
$region0: #{lstm_forward.2}
  #allocation0 [shape = 'u32[]', space=smem, size = 0x4, offset = 0x4, fixed_abs, tag = 'smem constant byte address 0x4 - core index']
  #allocation1 [shape = 'u32[144,128]{1,0:T(1,128)}', space=vmem, size = 0x12000, scoped, tag = 'internal scratch']
  #allocation2 [shape = 'f32[8,32]{1,0:T(8,128)}', space=vmem, size = 0x1000, scoped, tag = 'scratch operand']
  #allocation3 [shape = 'f32[8,32]{1,0:T(8,128)}', space=vmem, size = 0x1000, scoped, tag = 'scratch operand']
  %s0 = inlined_call_operand.vmem [shape: f32[8,8,16], index: 0, kind: input, shape index: {}]
  %s1 = inlined_call_operand.vmem [shape: bf16[16,128], index: 1, kind: input, shape index: {}]
  %s2 = inlined_call_operand.vmem [shape: bf16[32,128], index: 2, kind: input, shape index: {}]
  %s3 = inlined_call_operand.vmem [shape: f32[1,128], index: 3, kind: input, shape index: {}]
  %s4 = inlined_call_operand.vmem [shape: f32[8,8,32], index: 4, kind: output, shape index: {0}]
  %s5 = inlined_call_operand.vmem [shape: f32[8,32], index: 5, kind: output, shape index: {1}]
  %s6 = inlined_call_operand.vmem [shape: f32[8,32], index: 6, kind: output, shape index: {2}]
  %7 = xla_tuple %s4, %s5, %s6
  %s8 = sld [smem:[#allocation0]]
  $region50: #{lstm_forward.2} parent=0
    _
  %s10 = ssub.s32 1, %s8
  %s11 = scalar_select 0, %s10, %s8
  // Predicated region
  $region2: #{lstm_forward.2} parent=0 // pred_check
    _
  $region3: #{lstm_forward.2} parent=0 // pred_check_branch
    %13 = sbr.rel (0) target = $region5
  $region4: #{lstm_forward.2} parent=0 // pred_region
    _
  $region5: #{lstm_forward.2} parent=0 // pred_fallthru
    _
  // Predicated region
  $region6: #{lstm_forward.2} parent=0 // pred_check
    _
  $region7: #{lstm_forward.2} parent=0 // pred_check_branch
    %15 = sbr.rel (0) target = $region9
  $region8: #{lstm_forward.2} parent=0 // pred_region
    _
  $region9: #{lstm_forward.2} parent=0 // pred_fallthru
    _
  // Predicated region
  $region10: #{lstm_forward.2} parent=0 // pred_check
    _
  $region11: #{lstm_forward.2} parent=0 // pred_check_branch
    %17 = sbr.rel (0) target = $region13
  $region12: #{lstm_forward.2} parent=0 // pred_region
    _
  $region13: #{lstm_forward.2} parent=0 // pred_fallthru
    _
  // Predicated region
  $region14: #{lstm_forward.2} parent=0 // pred_check
    _
  $region15: #{lstm_forward.2} parent=0 // pred_check_branch
    %19 = sbr.rel (0) target = $region17
  $region16: #{lstm_forward.2} parent=0 // pred_region
    _
  $region17: #{lstm_forward.2} parent=0 // pred_fallthru
    _
  %p21 = scmp.eq.s32.totalorder 0, 0
  // Predicated region
  $region18: #{lstm_forward.2} parent=0 // pred_check
    %p22 = pneg %p21
  $region19: #{lstm_forward.2} parent=0 // pred_check_branch
    %24 = sbr.rel (%p22) target = $region21
  $region20: #{lstm_forward.2} parent=0 // pred_region
    %vm25 = vcmask 261120
    %26 = vst.msk [vmem:[#allocation2] sm:$0xff] %vm25, 0.0
    %27 = vst.msk [vmem:[#allocation3] sm:$0xff] %vm25, 0.0
  $region21: #{lstm_forward.2} parent=0 // pred_fallthru
    _
  %v28 = vld [vmem:[%s0] sm:$0xff]
  %v29 = vld [vmem:[%s0 + $0x8] sm:$0xff]
  %v30 = vld [vmem:[%s0 + $0x10] sm:$0xff]
  %v31 = vld [vmem:[%s0 + $0x18] sm:$0xff]
  %v32 = vld [vmem:[%s0 + $0x20] sm:$0xff]
  %v33 = vld [vmem:[%s0 + $0x28] sm:$0xff]
  %v34 = vld [vmem:[%s0 + $0x30] sm:$0xff]
  %v35 = vld [vmem:[%s0 + $0x38] sm:$0xff]
  %v36 = vpack.c.bf16 %v28, %v28
  %v37 = vpack.c.bf16 %v29, %v29
  %v38 = vpack.c.bf16 %v30, %v30
  %v39 = vpack.c.bf16 %v31, %v31
  %v40 = vpack.c.bf16 %v32, %v32
  %v41 = vpack.c.bf16 %v33, %v33
  %v42 = vpack.c.bf16 %v34, %v34
  %v43 = vpack.c.bf16 %v35, %v35
  %v44 = vld [vmem:[%s1] sm:$0xf]
  %v45 = vld [vmem:[%s1 + $0x4] sm:$0xf]
  %v46 = vld [vmem:[%s3] sm:$0x1]
  %v48 = vlaneseq
  %v49 = vshrl.u32 %v48, 7
  %v50 = vsub.s32 0, %v49
  %v51 = vrot.slane %v46, %v50
  %v61 = vunpack.c.l.b16 %v36
  %v62 = vunpack.c.l.b16 %v37
  %v63 = vunpack.c.l.b16 %v38
  %v64 = vunpack.c.l.b16 %v39
  %v65 = vunpack.c.l.b16 %v40
  %v66 = vunpack.c.l.b16 %v41
  %v67 = vunpack.c.l.b16 %v42
  %v68 = vunpack.c.l.b16 %v43
  %v69 = vpack.c.b16 %v62, %v61
  %v70 = vpack.c.b16 %v64, %v63
  %v71 = vpack.c.b16 %v66, %v65
  %v72 = vpack.c.b16 %v68, %v67
  %v75 = vunpack.c.l.b16 %v44
  %v76 = vunpack.c.l.b16 %v45
  %v77 = vpack.c.b16 %v76, %v75
  %vm79 = vcmask 130048
  %v81 = vsel %vm79, %v69, 0
  %v84 = vsel %vm79, %v70, 0
  %v87 = vsel %vm79, %v71, 0
  %v90 = vsel %vm79, %v72, 0
  %92 = vmatprep.subr.bf16.mxu0 0
  %93 = vmatpush1.bf16.msra.mxu0 %v77
  %94 = vmatprep.subr.bf16.mxu0 0
  %95 = vmatpush1.bf16.msra.mxu0 0
  %96 = vmatprep.subr.bf16.mxu0 0
  %97 = vmatpush1.bf16.msra.mxu0 0
  %98 = vmatprep.subr.bf16.mxu0 0
  %99 = vmatpush1.bf16.msra.mxu0 0
  %100 = vmatprep.subr.bf16.mxu0 0
  %101 = vmatpush1.bf16.msra.mxu0 0
  %102 = vmatprep.subr.bf16.mxu0 0
  %103 = vmatpush1.bf16.msra.mxu0 0
  %104 = vmatprep.subr.bf16.mxu0 0
  %105 = vmatpush1.bf16.msra.mxu0 0
  %106 = vmatprep.subr.bf16.mxu0 0
  %107 = vmatpush1.bf16.msra.mxu0 0
  %108 = vmatprep.subr.bf16.mxu0 0
  %109 = vmatpush1.bf16.msra.mxu0 0
  %110 = vmatprep.subr.bf16.mxu0 0
  %111 = vmatpush1.bf16.msra.mxu0 0
  %112 = vmatprep.subr.bf16.mxu0 0
  %113 = vmatpush1.bf16.msra.mxu0 0
  %114 = vmatprep.subr.bf16.mxu0 0
  %115 = vmatpush1.bf16.msra.mxu0 0
  %116 = vmatprep.subr.bf16.mxu0 0
  %117 = vmatpush1.bf16.msra.mxu0 0
  %118 = vmatprep.subr.bf16.mxu0 0
  %119 = vmatpush1.bf16.msra.mxu0 0
  %120 = vmatprep.subr.bf16.mxu0 0
  %121 = vmatpush1.bf16.msra.mxu0 0
  %122 = vmatprep.subr.bf16.mxu0 0
  %123 = vmatpush1.bf16.msra.mxu0 0
  %124 = vmatprep.mubr.bf16.mxu0 0
  %125 = vmatmul.mubr.bf16.gmra.mrb[0].mxu0 %v81
  %v126 = vpop.f32.mrb[0].mxu0
  %v127 = vadd.f32 %v51, %v126
  %v128 = vpop.f32.mrb[0].mxu0
  %v129 = vpop.f32.mrb[0].mxu0
  %v130 = vadd.f32 %v51, %v129
  %v131 = vpop.f32.mrb[0].mxu0
  %132 = vmatprep.mubr.bf16.mxu0 0
  %133 = vmatmul.mubr.bf16.gmra.mrb[0].mxu0 %v84
  %v134 = vpop.f32.mrb[0].mxu0
  %v135 = vadd.f32 %v51, %v134
  %v136 = vpop.f32.mrb[0].mxu0
  %v137 = vpop.f32.mrb[0].mxu0
  %v138 = vadd.f32 %v51, %v137
  %v139 = vpop.f32.mrb[0].mxu0
  %140 = vmatprep.mubr.bf16.mxu0 0
  %141 = vmatmul.mubr.bf16.gmra.mrb[0].mxu0 %v87
  %v142 = vpop.f32.mrb[0].mxu0
  %v143 = vadd.f32 %v51, %v142
  %v144 = vpop.f32.mrb[0].mxu0
  %v145 = vpop.f32.mrb[0].mxu0
  %v146 = vadd.f32 %v51, %v145
  %v147 = vpop.f32.mrb[0].mxu0
  %148 = vmatprep.mubr.bf16.mxu0 0
  %149 = vmatmul.mubr.bf16.gmra.mrb[0].mxu0 %v90
  %v150 = vpop.f32.mrb[0].mxu0
  %v151 = vadd.f32 %v51, %v150
  %v152 = vpop.f32.mrb[0].mxu0
  %v153 = vpop.f32.mrb[0].mxu0
  %v154 = vadd.f32 %v51, %v153
  %v155 = vpop.f32.mrb[0].mxu0
  %156 = vdwg.mxu0
  %v157 = vld [vmem:[%s2] sm:$0xf]
  %v158 = vld [vmem:[%s2 + $0x4] sm:$0xf]
  %v159 = vld [vmem:[%s2 + $0x8] sm:$0xf]
  %v160 = vld [vmem:[%s2 + $0xc] sm:$0xf]
  %v161 = vld [vmem:[#allocation2] sm:$0xff]
  %v162 = vld [vmem:[#allocation3] sm:$0xff]
  %v163 = vpack.c.bf16 %v161, %v161
  %v168 = vunpack.c.l.b16 %v157
  %v169 = vunpack.c.l.b16 %v158
  %v170 = vunpack.c.l.b16 %v159
  %v171 = vunpack.c.l.b16 %v160
  %v172 = vpack.c.b16 %v169, %v168
  %v173 = vpack.c.b16 %v171, %v170
  %vm176 = vcmask 261120
  %v178 = vsel %vm176, %v163, 0
  %180 = vmatprep.subr.bf16.mxu0 0
  %181 = vmatpush1.bf16.msra.mxu0 %v172
  %182 = vmatprep.subr.bf16.mxu0 0
  %183 = vmatpush1.bf16.msra.mxu0 %v173
  %184 = vmatprep.subr.bf16.mxu0 0
  %185 = vmatpush1.bf16.msra.mxu0 0
  %186 = vmatprep.subr.bf16.mxu0 0
  %187 = vmatpush1.bf16.msra.mxu0 0
  %188 = vmatprep.subr.bf16.mxu0 0
  %189 = vmatpush1.bf16.msra.mxu0 0
  %190 = vmatprep.subr.bf16.mxu0 0
  %191 = vmatpush1.bf16.msra.mxu0 0
  %192 = vmatprep.subr.bf16.mxu0 0
  %193 = vmatpush1.bf16.msra.mxu0 0
  %194 = vmatprep.subr.bf16.mxu0 0
  %195 = vmatpush1.bf16.msra.mxu0 0
  %196 = vmatprep.subr.bf16.mxu0 0
  %197 = vmatpush1.bf16.msra.mxu0 0
  %198 = vmatprep.subr.bf16.mxu0 0
  %199 = vmatpush1.bf16.msra.mxu0 0
  %200 = vmatprep.subr.bf16.mxu0 0
  %201 = vmatpush1.bf16.msra.mxu0 0
  %202 = vmatprep.subr.bf16.mxu0 0
  %203 = vmatpush1.bf16.msra.mxu0 0
  %204 = vmatprep.subr.bf16.mxu0 0
  %205 = vmatpush1.bf16.msra.mxu0 0
  %206 = vmatprep.subr.bf16.mxu0 0
  %207 = vmatpush1.bf16.msra.mxu0 0
  %208 = vmatprep.subr.bf16.mxu0 0
  %209 = vmatpush1.bf16.msra.mxu0 0
  %210 = vmatprep.subr.bf16.mxu0 0
  %211 = vmatpush1.bf16.msra.mxu0 0
  %212 = vmatprep.mubr.bf16.mxu0 0
  %213 = vmatmul.mubr.bf16.gmra.mrb[0].mxu0 %v178
  %v214 = vpop.f32.mrb[0].mxu0
  %v215 = vadd.f32 0.0, %v214
  %v216 = vpop.f32.mrb[0].mxu0
  %v217 = vpop.f32.mrb[0].mxu0
  %v218 = vpop.f32.mrb[0].mxu0
  %219 = vdwg.mxu0
  %v221 = vrot.slane %v215, 1
  %v222 = vrot.slane %v215, 2
  %v223 = vrot.slane %v215, 3
  %v224 = vrot.slane %v215, 4
  %v225 = vrot.slane %v215, 5
  %v226 = vrot.slane %v215, 6
  %v227 = vrot.slane %v215, 7
  %v236 = vadd.f32 %v127, %v215
  %v237 = vadd.f32 %v130, %v221
  %v238 = vadd.f32 %v135, %v222
  %v239 = vadd.f32 %v138, %v223
  %v240 = vadd.f32 %v143, %v224
  %v241 = vadd.f32 %v146, %v225
  %v242 = vadd.f32 %v151, %v226
  %v243 = vadd.f32 %v154, %v227
  %v244 = vxor.u32 %v236, 2147483648
  %v245 = vxor.u32 %v237, 2147483648
  %v246 = vxor.u32 %v238, 2147483648
  %v247 = vxor.u32 %v239, 2147483648
  %v248 = vxor.u32 %v240, 2147483648
  %v249 = vxor.u32 %v241, 2147483648
  %v250 = vxor.u32 %v242, 2147483648
  %v251 = vxor.u32 %v243, 2147483648
  %v252 = vmul.f32 %v244, 1.442695
  %v253 = vpow.pop %v252
  %v254 = vmul.f32 %v245, 1.442695
  %v255 = vpow.pop %v254
  %v256 = vmul.f32 %v246, 1.442695
  %v257 = vpow.pop %v256
  %v258 = vmul.f32 %v247, 1.442695
  %v259 = vpow.pop %v258
  %v260 = vmul.f32 %v248, 1.442695
  %v261 = vpow.pop %v260
  %v262 = vmul.f32 %v249, 1.442695
  %v263 = vpow.pop %v262
  %v264 = vmul.f32 %v250, 1.442695
  %v265 = vpow.pop %v264
  %v266 = vmul.f32 %v251, 1.442695
  %v267 = vpow.pop %v266
  %v268 = vadd.f32 %v253, 1.0
  %v269 = vadd.f32 %v255, 1.0
  %v270 = vadd.f32 %v257, 1.0
  %v271 = vadd.f32 %v259, 1.0
  %v272 = vadd.f32 %v261, 1.0
  %v273 = vadd.f32 %v263, 1.0
  %v274 = vadd.f32 %v265, 1.0
  %v275 = vadd.f32 %v267, 1.0
  %v276 = vrcp.pop %v268
  %v277 = vmul.f32 1.0, %v276
  %v278 = vrcp.pop %v269
  %v279 = vmul.f32 1.0, %v278
  %v280 = vrcp.pop %v270
  %v281 = vmul.f32 1.0, %v280
  %v282 = vrcp.pop %v271
  %v283 = vmul.f32 1.0, %v282
  %v284 = vrcp.pop %v272
  %v285 = vmul.f32 1.0, %v284
  %v286 = vrcp.pop %v273
  %v287 = vmul.f32 1.0, %v286
  %v288 = vrcp.pop %v274
  %v289 = vmul.f32 1.0, %v288
  %v290 = vrcp.pop %v275
  %v291 = vmul.f32 1.0, %v290
  %v292 = vtanh.pop %v236
  %v293 = vtanh.pop %v237
  %v294 = vtanh.pop %v238
  %v295 = vtanh.pop %v239
  %v296 = vtanh.pop %v240
  %v297 = vtanh.pop %v241
  %v298 = vtanh.pop %v242
  %v299 = vtanh.pop %v243
  %v301 = vrot.slane %v162, 1
  %v302 = vrot.slane %v162, 2
  %v303 = vrot.slane %v162, 3
  %v304 = vrot.slane %v162, 4
  %v305 = vrot.slane %v162, 5
  %v306 = vrot.slane %v162, 6
  %v307 = vrot.slane %v162, 7
  %v316 = vmul.f32 %v277, %v162
  %v317 = vmul.f32 %v279, %v301
  %v318 = vmul.f32 %v281, %v302
  %v319 = vmul.f32 %v283, %v303
  %v320 = vmul.f32 %v285, %v304
  %v321 = vmul.f32 %v287, %v305
  %v322 = vmul.f32 %v289, %v306
  %v323 = vmul.f32 %v291, %v307
  %332 = vrot.lane.b32.xlu0 %v292, 32
  %v333 = vpop.permute.xlu0 %332
  %334 = vrot.lane.b32.xlu0 %v293, 32
  %v335 = vpop.permute.xlu0 %334
  %336 = vrot.lane.b32.xlu0 %v294, 32
  %v337 = vpop.permute.xlu0 %336
  %338 = vrot.lane.b32.xlu0 %v295, 32
  %v339 = vpop.permute.xlu0 %338
  %340 = vrot.lane.b32.xlu0 %v296, 32
  %v341 = vpop.permute.xlu0 %340
  %342 = vrot.lane.b32.xlu0 %v297, 32
  %v343 = vpop.permute.xlu0 %342
  %344 = vrot.lane.b32.xlu0 %v298, 32
  %v345 = vpop.permute.xlu0 %344
  %346 = vrot.lane.b32.xlu0 %v299, 32
  %v347 = vpop.permute.xlu0 %346
  %v356 = vmul.f32 %v277, %v333
  %v357 = vmul.f32 %v279, %v335
  %v358 = vmul.f32 %v281, %v337
  %v359 = vmul.f32 %v283, %v339
  %v360 = vmul.f32 %v285, %v341
  %v361 = vmul.f32 %v287, %v343
  %v362 = vmul.f32 %v289, %v345
  %v363 = vmul.f32 %v291, %v347
  %372 = vrot.lane.b32.xlu0 %v356, 64
  %v373 = vpop.permute.xlu0 %372
  %374 = vrot.lane.b32.xlu0 %v357, 64
  %v375 = vpop.permute.xlu0 %374
  %376 = vrot.lane.b32.xlu0 %v358, 64
  %v377 = vpop.permute.xlu0 %376
  %378 = vrot.lane.b32.xlu0 %v359, 64
  %v379 = vpop.permute.xlu0 %378
  %380 = vrot.lane.b32.xlu0 %v360, 64
  %v381 = vpop.permute.xlu0 %380
  %382 = vrot.lane.b32.xlu0 %v361, 64
  %v383 = vpop.permute.xlu0 %382
  %384 = vrot.lane.b32.xlu0 %v362, 64
  %v385 = vpop.permute.xlu0 %384
  %386 = vrot.lane.b32.xlu0 %v363, 64
  %v387 = vpop.permute.xlu0 %386
  %v396 = vadd.f32 %v316, %v373
  %v397 = vadd.f32 %v317, %v375
  %v398 = vadd.f32 %v318, %v377
  %v399 = vadd.f32 %v319, %v379
  %v400 = vadd.f32 %v320, %v381
  %v401 = vadd.f32 %v321, %v383
  %v402 = vadd.f32 %v322, %v385
  %v403 = vadd.f32 %v323, %v387
  %v404 = vtanh.pop %v396
  %v405 = vtanh.pop %v397
  %v406 = vtanh.pop %v398
  %v407 = vtanh.pop %v399
  %v408 = vtanh.pop %v400
  %v409 = vtanh.pop %v401
  %v410 = vtanh.pop %v402
  %v411 = vtanh.pop %v403
  %420 = vrot.lane.b32.xlu0 %v404, 96
  %v421 = vpop.permute.xlu0 %420
  %422 = vrot.lane.b32.xlu0 %v405, 96
  %v423 = vpop.permute.xlu0 %422
  %424 = vrot.lane.b32.xlu0 %v406, 96
  %v425 = vpop.permute.xlu0 %424
  %426 = vrot.lane.b32.xlu0 %v407, 96
  %v427 = vpop.permute.xlu0 %426
  %428 = vrot.lane.b32.xlu0 %v408, 96
  %v429 = vpop.permute.xlu0 %428
  %430 = vrot.lane.b32.xlu0 %v409, 96
  %v431 = vpop.permute.xlu0 %430
  %432 = vrot.lane.b32.xlu0 %v410, 96
  %v433 = vpop.permute.xlu0 %432
  %434 = vrot.lane.b32.xlu0 %v411, 96
  %v435 = vpop.permute.xlu0 %434
  %v444 = vmul.f32 %v277, %v421
  %v445 = vmul.f32 %v279, %v423
  %v446 = vmul.f32 %v281, %v425
  %v447 = vmul.f32 %v283, %v427
  %v448 = vmul.f32 %v285, %v429
  %v449 = vmul.f32 %v287, %v431
  %v450 = vmul.f32 %v289, %v433
  %v451 = vmul.f32 %v291, %v435
  %460 = vrot.lane.b32.xlu0 %v444, 32
  %v461 = vpop.permute.xlu0 %460
  %462 = vrot.lane.b32.xlu0 %v445, 32
  %v463 = vpop.permute.xlu0 %462
  %464 = vrot.lane.b32.xlu0 %v446, 32
  %v465 = vpop.permute.xlu0 %464
  %466 = vrot.lane.b32.xlu0 %v447, 32
  %v467 = vpop.permute.xlu0 %466
  %468 = vrot.lane.b32.xlu0 %v448, 32
  %v469 = vpop.permute.xlu0 %468
  %470 = vrot.lane.b32.xlu0 %v449, 32
  %v471 = vpop.permute.xlu0 %470
  %472 = vrot.lane.b32.xlu0 %v450, 32
  %v473 = vpop.permute.xlu0 %472
  %474 = vrot.lane.b32.xlu0 %v451, 32
  %v475 = vpop.permute.xlu0 %474
  %vm484 = vcmask 253952
  %485 = vst.msk [vmem:[%s4] sm:$0x1] %vm484, %v461
  %486 = vst.msk [vmem:[%s4 + $0x8] sm:$0x1] %vm484, %v463
  %487 = vst.msk [vmem:[%s4 + $0x10] sm:$0x1] %vm484, %v465
  %488 = vst.msk [vmem:[%s4 + $0x18] sm:$0x1] %vm484, %v467
  %489 = vst.msk [vmem:[%s4 + $0x20] sm:$0x1] %vm484, %v469
  %490 = vst.msk [vmem:[%s4 + $0x28] sm:$0x1] %vm484, %v471
  %491 = vst.msk [vmem:[%s4 + $0x30] sm:$0x1] %vm484, %v473
  %492 = vst.msk [vmem:[%s4 + $0x38] sm:$0x1] %vm484, %v475
  %v493 = vpack.c.bf16 %v444, %v444
  %v494 = vpack.c.bf16 %v445, %v445
  %v495 = vpack.c.bf16 %v446, %v446
  %v496 = vpack.c.bf16 %v447, %v447
  %v497 = vpack.c.bf16 %v448, %v448
  %v498 = vpack.c.bf16 %v449, %v449
  %v499 = vpack.c.bf16 %v450, %v450
  %v500 = vpack.c.bf16 %v451, %v451
  %v509 = vunpack.c.l.b16 %v493
  %v510 = vunpack.c.l.b16 %v494
  %v511 = vunpack.c.l.b16 %v495
  %v512 = vunpack.c.l.b16 %v496
  %v513 = vunpack.c.l.b16 %v497
  %v514 = vunpack.c.l.b16 %v498
  %v515 = vunpack.c.l.b16 %v499
  %v516 = vunpack.c.l.b16 %v500
  %v517 = vrot.slane %v510, 7
  %vm518 = vcmask 1041409
  %v519 = vsel %vm518, %v517, %v509
  %v520 = vrot.slane %v511, 6
  %vm521 = vcmask 1042434
  %v522 = vsel %vm521, %v520, %v519
  %v523 = vrot.slane %v512, 5
  %vm524 = vcmask 1043459
  %v525 = vsel %vm524, %v523, %v522
  %v526 = vrot.slane %v513, 4
  %vm527 = vcmask 1044484
  %v528 = vsel %vm527, %v526, %v525
  %v529 = vrot.slane %v514, 3
  %vm530 = vcmask 1045509
  %v531 = vsel %vm530, %v529, %v528
  %v532 = vrot.slane %v515, 2
  %vm533 = vcmask 1046534
  %v534 = vsel %vm533, %v532, %v531
  %v535 = vrot.slane %v516, 1
  %vm536 = vcmask 1047559
  %v537 = vsel %vm536, %v535, %v534
  %v538 = vpack.c.b16 %v537, %v537
  %539 = vrot.lane.b32.xlu0 %v538, 32
  %v540 = vpop.permute.xlu0 %539
  %v542 = vsel %vm176, %v540, 0
  %544 = vmatprep.subr.bf16.mxu0 0
  %545 = vmatpush1.bf16.msra.mxu0 %v172
  %546 = vmatprep.subr.bf16.mxu0 0
  %547 = vmatpush1.bf16.msra.mxu0 %v173
  %548 = vmatprep.subr.bf16.mxu0 0
  %549 = vmatpush1.bf16.msra.mxu0 0
  %550 = vmatprep.subr.bf16.mxu0 0
  %551 = vmatpush1.bf16.msra.mxu0 0
  %552 = vmatprep.subr.bf16.mxu0 0
  %553 = vmatpush1.bf16.msra.mxu0 0
  %554 = vmatprep.subr.bf16.mxu0 0
  %555 = vmatpush1.bf16.msra.mxu0 0
  %556 = vmatprep.subr.bf16.mxu0 0
  %557 = vmatpush1.bf16.msra.mxu0 0
  %558 = vmatprep.subr.bf16.mxu0 0
  %559 = vmatpush1.bf16.msra.mxu0 0
  %560 = vmatprep.subr.bf16.mxu0 0
  %561 = vmatpush1.bf16.msra.mxu0 0
  %562 = vmatprep.subr.bf16.mxu0 0
  %563 = vmatpush1.bf16.msra.mxu0 0
  %564 = vmatprep.subr.bf16.mxu0 0
  %565 = vmatpush1.bf16.msra.mxu0 0
  %566 = vmatprep.subr.bf16.mxu0 0
  %567 = vmatpush1.bf16.msra.mxu0 0
  %568 = vmatprep.subr.bf16.mxu0 0
  %569 = vmatpush1.bf16.msra.mxu0 0
  %570 = vmatprep.subr.bf16.mxu0 0
  %571 = vmatpush1.bf16.msra.mxu0 0
  %572 = vmatprep.subr.bf16.mxu0 0
  %573 = vmatpush1.bf16.msra.mxu0 0
  %574 = vmatprep.subr.bf16.mxu0 0
  %575 = vmatpush1.bf16.msra.mxu0 0
  %576 = vmatprep.mubr.bf16.mxu0 0
  %577 = vmatmul.mubr.bf16.gmra.mrb[0].mxu0 %v542
  %v578 = vpop.f32.mrb[0].mxu0
  %v579 = vadd.f32 0.0, %v578
  %v580 = vpop.f32.mrb[0].mxu0
  %v581 = vpop.f32.mrb[0].mxu0
  %v582 = vpop.f32.mrb[0].mxu0
  %583 = vdwg.mxu0
  %v585 = vrot.slane %v579, 7
  %v586 = vrot.slane %v579, 1
  %v587 = vrot.slane %v579, 2
  %v588 = vrot.slane %v579, 3
  %v589 = vrot.slane %v579, 4
  %v590 = vrot.slane %v579, 5
  %v591 = vrot.slane %v579, 6
  %v600 = vadd.f32 %v127, %v585
  %v601 = vadd.f32 %v130, %v579
  %v602 = vadd.f32 %v135, %v586
  %v603 = vadd.f32 %v138, %v587
  %v604 = vadd.f32 %v143, %v588
  %v605 = vadd.f32 %v146, %v589
  %v606 = vadd.f32 %v151, %v590
  %v607 = vadd.f32 %v154, %v591
  %v608 = vxor.u32 %v600, 2147483648
  %v609 = vxor.u32 %v601, 2147483648
  %v610 = vxor.u32 %v602, 2147483648
  %v611 = vxor.u32 %v603, 2147483648
  %v612 = vxor.u32 %v604, 2147483648
  %v613 = vxor.u32 %v605, 2147483648
  %v614 = vxor.u32 %v606, 2147483648
  %v615 = vxor.u32 %v607, 2147483648
  %v616 = vmul.f32 %v608, 1.442695
  %v617 = vpow.pop %v616
  %v618 = vmul.f32 %v609, 1.442695
  %v619 = vpow.pop %v618
  %v620 = vmul.f32 %v610, 1.442695
  %v621 = vpow.pop %v620
  %v622 = vmul.f32 %v611, 1.442695
  %v623 = vpow.pop %v622
  %v624 = vmul.f32 %v612, 1.442695
  %v625 = vpow.pop %v624
  %v626 = vmul.f32 %v613, 1.442695
  %v627 = vpow.pop %v626
  %v628 = vmul.f32 %v614, 1.442695
  %v629 = vpow.pop %v628
  %v630 = vmul.f32 %v615, 1.442695
  %v631 = vpow.pop %v630
  %v632 = vadd.f32 %v617, 1.0
  %v633 = vadd.f32 %v619, 1.0
  %v634 = vadd.f32 %v621, 1.0
  %v635 = vadd.f32 %v623, 1.0
  %v636 = vadd.f32 %v625, 1.0
  %v637 = vadd.f32 %v627, 1.0
  %v638 = vadd.f32 %v629, 1.0
  %v639 = vadd.f32 %v631, 1.0
  %v640 = vrcp.pop %v632
  %v641 = vmul.f32 1.0, %v640
  %v642 = vrcp.pop %v633
  %v643 = vmul.f32 1.0, %v642
  %v644 = vrcp.pop %v634
  %v645 = vmul.f32 1.0, %v644
  %v646 = vrcp.pop %v635
  %v647 = vmul.f32 1.0, %v646
  %v648 = vrcp.pop %v636
  %v649 = vmul.f32 1.0, %v648
  %v650 = vrcp.pop %v637
  %v651 = vmul.f32 1.0, %v650
  %v652 = vrcp.pop %v638
  %v653 = vmul.f32 1.0, %v652
  %v654 = vrcp.pop %v639
  %v655 = vmul.f32 1.0, %v654
  %v656 = vtanh.pop %v600
  %v657 = vtanh.pop %v601
  %v658 = vtanh.pop %v602
  %v659 = vtanh.pop %v603
  %v660 = vtanh.pop %v604
  %v661 = vtanh.pop %v605
  %v662 = vtanh.pop %v606
  %v663 = vtanh.pop %v607
  %v672 = vrot.slane %v396, 7
  %v673 = vrot.slane %v397, 7
  %v674 = vrot.slane %v398, 7
  %v675 = vrot.slane %v399, 7
  %v676 = vrot.slane %v400, 7
  %v677 = vrot.slane %v401, 7
  %v678 = vrot.slane %v402, 7
  %v679 = vrot.slane %v403, 7
  %v688 = vmul.f32 %v641, %v672
  %v689 = vmul.f32 %v643, %v673
  %v690 = vmul.f32 %v645, %v674
  %v691 = vmul.f32 %v647, %v675
  %v692 = vmul.f32 %v649, %v676
  %v693 = vmul.f32 %v651, %v677
  %v694 = vmul.f32 %v653, %v678
  %v695 = vmul.f32 %v655, %v679
  %704 = vrot.lane.b32.xlu0 %v656, 32
  %v705 = vpop.permute.xlu0 %704
  %706 = vrot.lane.b32.xlu0 %v657, 32
  %v707 = vpop.permute.xlu0 %706
  %708 = vrot.lane.b32.xlu0 %v658, 32
  %v709 = vpop.permute.xlu0 %708
  %710 = vrot.lane.b32.xlu0 %v659, 32
  %v711 = vpop.permute.xlu0 %710
  %712 = vrot.lane.b32.xlu0 %v660, 32
  %v713 = vpop.permute.xlu0 %712
  %714 = vrot.lane.b32.xlu0 %v661, 32
  %v715 = vpop.permute.xlu0 %714
  %716 = vrot.lane.b32.xlu0 %v662, 32
  %v717 = vpop.permute.xlu0 %716
  %718 = vrot.lane.b32.xlu0 %v663, 32
  %v719 = vpop.permute.xlu0 %718
  %v728 = vmul.f32 %v641, %v705
  %v729 = vmul.f32 %v643, %v707
  %v730 = vmul.f32 %v645, %v709
  %v731 = vmul.f32 %v647, %v711
  %v732 = vmul.f32 %v649, %v713
  %v733 = vmul.f32 %v651, %v715
  %v734 = vmul.f32 %v653, %v717
  %v735 = vmul.f32 %v655, %v719
  %744 = vrot.lane.b32.xlu0 %v728, 64
  %v745 = vpop.permute.xlu0 %744
  %746 = vrot.lane.b32.xlu0 %v729, 64
  %v747 = vpop.permute.xlu0 %746
  %748 = vrot.lane.b32.xlu0 %v730, 64
  %v749 = vpop.permute.xlu0 %748
  %750 = vrot.lane.b32.xlu0 %v731, 64
  %v751 = vpop.permute.xlu0 %750
  %752 = vrot.lane.b32.xlu0 %v732, 64
  %v753 = vpop.permute.xlu0 %752
  %754 = vrot.lane.b32.xlu0 %v733, 64
  %v755 = vpop.permute.xlu0 %754
  %756 = vrot.lane.b32.xlu0 %v734, 64
  %v757 = vpop.permute.xlu0 %756
  %758 = vrot.lane.b32.xlu0 %v735, 64
  %v759 = vpop.permute.xlu0 %758
  %v768 = vadd.f32 %v688, %v745
  %v769 = vadd.f32 %v689, %v747
  %v770 = vadd.f32 %v690, %v749
  %v771 = vadd.f32 %v691, %v751
  %v772 = vadd.f32 %v692, %v753
  %v773 = vadd.f32 %v693, %v755
  %v774 = vadd.f32 %v694, %v757
  %v775 = vadd.f32 %v695, %v759
  %v776 = vtanh.pop %v768
  %v777 = vtanh.pop %v769
  %v778 = vtanh.pop %v770
  %v779 = vtanh.pop %v771
  %v780 = vtanh.pop %v772
  %v781 = vtanh.pop %v773
  %v782 = vtanh.pop %v774
  %v783 = vtanh.pop %v775
  %792 = vrot.lane.b32.xlu0 %v776, 96
  %v793 = vpop.permute.xlu0 %792
  %794 = vrot.lane.b32.xlu0 %v777, 96
  %v795 = vpop.permute.xlu0 %794
  %796 = vrot.lane.b32.xlu0 %v778, 96
  %v797 = vpop.permute.xlu0 %796
  %798 = vrot.lane.b32.xlu0 %v779, 96
  %v799 = vpop.permute.xlu0 %798
  %800 = vrot.lane.b32.xlu0 %v780, 96
  %v801 = vpop.permute.xlu0 %800
  %802 = vrot.lane.b32.xlu0 %v781, 96
  %v803 = vpop.permute.xlu0 %802
  %804 = vrot.lane.b32.xlu0 %v782, 96
  %v805 = vpop.permute.xlu0 %804
  %806 = vrot.lane.b32.xlu0 %v783, 96
  %v807 = vpop.permute.xlu0 %806
  %v816 = vmul.f32 %v641, %v793
  %v817 = vmul.f32 %v643, %v795
  %v818 = vmul.f32 %v645, %v797
  %v819 = vmul.f32 %v647, %v799
  %v820 = vmul.f32 %v649, %v801
  %v821 = vmul.f32 %v651, %v803
  %v822 = vmul.f32 %v653, %v805
  %v823 = vmul.f32 %v655, %v807
  %832 = vrot.lane.b32.xlu0 %v816, 32
  %v833 = vpop.permute.xlu0 %832
  %834 = vrot.lane.b32.xlu0 %v817, 32
  %v835 = vpop.permute.xlu0 %834
  %836 = vrot.lane.b32.xlu0 %v818, 32
  %v837 = vpop.permute.xlu0 %836
  %838 = vrot.lane.b32.xlu0 %v819, 32
  %v839 = vpop.permute.xlu0 %838
  %840 = vrot.lane.b32.xlu0 %v820, 32
  %v841 = vpop.permute.xlu0 %840
  %842 = vrot.lane.b32.xlu0 %v821, 32
  %v843 = vpop.permute.xlu0 %842
  %844 = vrot.lane.b32.xlu0 %v822, 32
  %v845 = vpop.permute.xlu0 %844
  %846 = vrot.lane.b32.xlu0 %v823, 32
  %v847 = vpop.permute.xlu0 %846
  %vm856 = vcmask 254977
  %857 = vst.msk [vmem:[%s4] sm:$0x2] %vm856, %v833
  %858 = vst.msk [vmem:[%s4 + $0x8] sm:$0x2] %vm856, %v835
  %859 = vst.msk [vmem:[%s4 + $0x10] sm:$0x2] %vm856, %v837
  %860 = vst.msk [vmem:[%s4 + $0x18] sm:$0x2] %vm856, %v839
  %861 = vst.msk [vmem:[%s4 + $0x20] sm:$0x2] %vm856, %v841
  %862 = vst.msk [vmem:[%s4 + $0x28] sm:$0x2] %vm856, %v843
  %863 = vst.msk [vmem:[%s4 + $0x30] sm:$0x2] %vm856, %v845
  %864 = vst.msk [vmem:[%s4 + $0x38] sm:$0x2] %vm856, %v847
  %v865 = vpack.c.bf16 %v816, %v816
  %v866 = vpack.c.bf16 %v817, %v817
  %v867 = vpack.c.bf16 %v818, %v818
  %v868 = vpack.c.bf16 %v819, %v819
  %v869 = vpack.c.bf16 %v820, %v820
  %v870 = vpack.c.bf16 %v821, %v821
  %v871 = vpack.c.bf16 %v822, %v822
  %v872 = vpack.c.bf16 %v823, %v823
  %v881 = vunpack.c.l.b16 %v865
  %v882 = vunpack.c.l.b16 %v866
  %v883 = vunpack.c.l.b16 %v867
  %v884 = vunpack.c.l.b16 %v868
  %v885 = vunpack.c.l.b16 %v869
  %v886 = vunpack.c.l.b16 %v870
  %v887 = vunpack.c.l.b16 %v871
  %v888 = vunpack.c.l.b16 %v872
  %v889 = vrot.slane %v881, 1
  %v890 = vsel %vm518, %v882, %v889
  %v891 = vrot.slane %v883, 7
  %v892 = vsel %vm521, %v891, %v890
  %v893 = vrot.slane %v884, 6
  %v894 = vsel %vm524, %v893, %v892
  %v895 = vrot.slane %v885, 5
  %v896 = vsel %vm527, %v895, %v894
  %v897 = vrot.slane %v886, 4
  %v898 = vsel %vm530, %v897, %v896
  %v899 = vrot.slane %v887, 3
  %v900 = vsel %vm533, %v899, %v898
  %v901 = vrot.slane %v888, 2
  %v902 = vsel %vm536, %v901, %v900
  %v903 = vpack.c.b16 %v902, %v902
  %904 = vrot.lane.b32.xlu0 %v903, 32
  %v905 = vpop.permute.xlu0 %904
  %v907 = vsel %vm176, %v905, 0
  %909 = vmatprep.subr.bf16.mxu0 0
  %910 = vmatpush1.bf16.msra.mxu0 %v172
  %911 = vmatprep.subr.bf16.mxu0 0
  %912 = vmatpush1.bf16.msra.mxu0 %v173
  %913 = vmatprep.subr.bf16.mxu0 0
  %914 = vmatpush1.bf16.msra.mxu0 0
  %915 = vmatprep.subr.bf16.mxu0 0
  %916 = vmatpush1.bf16.msra.mxu0 0
  %917 = vmatprep.subr.bf16.mxu0 0
  %918 = vmatpush1.bf16.msra.mxu0 0
  %919 = vmatprep.subr.bf16.mxu0 0
  %920 = vmatpush1.bf16.msra.mxu0 0
  %921 = vmatprep.subr.bf16.mxu0 0
  %922 = vmatpush1.bf16.msra.mxu0 0
  %923 = vmatprep.subr.bf16.mxu0 0
  %924 = vmatpush1.bf16.msra.mxu0 0
  %925 = vmatprep.subr.bf16.mxu0 0
  %926 = vmatpush1.bf16.msra.mxu0 0
  %927 = vmatprep.subr.bf16.mxu0 0
  %928 = vmatpush1.bf16.msra.mxu0 0
  %929 = vmatprep.subr.bf16.mxu0 0
  %930 = vmatpush1.bf16.msra.mxu0 0
  %931 = vmatprep.subr.bf16.mxu0 0
  %932 = vmatpush1.bf16.msra.mxu0 0
  %933 = vmatprep.subr.bf16.mxu0 0
  %934 = vmatpush1.bf16.msra.mxu0 0
  %935 = vmatprep.subr.bf16.mxu0 0
  %936 = vmatpush1.bf16.msra.mxu0 0
  %937 = vmatprep.subr.bf16.mxu0 0
  %938 = vmatpush1.bf16.msra.mxu0 0
  %939 = vmatprep.subr.bf16.mxu0 0
  %940 = vmatpush1.bf16.msra.mxu0 0
  %941 = vmatprep.mubr.bf16.mxu0 0
  %942 = vmatmul.mubr.bf16.gmra.mrb[0].mxu0 %v907
  %v943 = vpop.f32.mrb[0].mxu0
  %v944 = vadd.f32 0.0, %v943
  %v945 = vpop.f32.mrb[0].mxu0
  %v946 = vpop.f32.mrb[0].mxu0
  %v947 = vpop.f32.mrb[0].mxu0
  %948 = vdwg.mxu0
  %v950 = vrot.slane %v944, 6
  %v951 = vrot.slane %v944, 7
  %v952 = vrot.slane %v944, 1
  %v953 = vrot.slane %v944, 2
  %v954 = vrot.slane %v944, 3
  %v955 = vrot.slane %v944, 4
  %v956 = vrot.slane %v944, 5
  %v965 = vadd.f32 %v127, %v950
  %v966 = vadd.f32 %v130, %v951
  %v967 = vadd.f32 %v135, %v944
  %v968 = vadd.f32 %v138, %v952
  %v969 = vadd.f32 %v143, %v953
  %v970 = vadd.f32 %v146, %v954
  %v971 = vadd.f32 %v151, %v955
  %v972 = vadd.f32 %v154, %v956
  %v973 = vxor.u32 %v965, 2147483648
  %v974 = vxor.u32 %v966, 2147483648
  %v975 = vxor.u32 %v967, 2147483648
  %v976 = vxor.u32 %v968, 2147483648
  %v977 = vxor.u32 %v969, 2147483648
  %v978 = vxor.u32 %v970, 2147483648
  %v979 = vxor.u32 %v971, 2147483648
  %v980 = vxor.u32 %v972, 2147483648
  %v981 = vmul.f32 %v973, 1.442695
  %v982 = vpow.pop %v981
  %v983 = vmul.f32 %v974, 1.442695
  %v984 = vpow.pop %v983
  %v985 = vmul.f32 %v975, 1.442695
  %v986 = vpow.pop %v985
  %v987 = vmul.f32 %v976, 1.442695
  %v988 = vpow.pop %v987
  %v989 = vmul.f32 %v977, 1.442695
  %v990 = vpow.pop %v989
  %v991 = vmul.f32 %v978, 1.442695
  %v992 = vpow.pop %v991
  %v993 = vmul.f32 %v979, 1.442695
  %v994 = vpow.pop %v993
  %v995 = vmul.f32 %v980, 1.442695
  %v996 = vpow.pop %v995
  %v997 = vadd.f32 %v982, 1.0
  %v998 = vadd.f32 %v984, 1.0
  %v999 = vadd.f32 %v986, 1.0
  %v1000 = vadd.f32 %v988, 1.0
  %v1001 = vadd.f32 %v990, 1.0
  %v1002 = vadd.f32 %v992, 1.0
  %v1003 = vadd.f32 %v994, 1.0
  %v1004 = vadd.f32 %v996, 1.0
  %v1005 = vrcp.pop %v997
  %v1006 = vmul.f32 1.0, %v1005
  %v1007 = vrcp.pop %v998
  %v1008 = vmul.f32 1.0, %v1007
  %v1009 = vrcp.pop %v999
  %v1010 = vmul.f32 1.0, %v1009
  %v1011 = vrcp.pop %v1000
  %v1012 = vmul.f32 1.0, %v1011
  %v1013 = vrcp.pop %v1001
  %v1014 = vmul.f32 1.0, %v1013
  %v1015 = vrcp.pop %v1002
  %v1016 = vmul.f32 1.0, %v1015
  %v1017 = vrcp.pop %v1003
  %v1018 = vmul.f32 1.0, %v1017
  %v1019 = vrcp.pop %v1004
  %v1020 = vmul.f32 1.0, %v1019
  %v1021 = vtanh.pop %v965
  %v1022 = vtanh.pop %v966
  %v1023 = vtanh.pop %v967
  %v1024 = vtanh.pop %v968
  %v1025 = vtanh.pop %v969
  %v1026 = vtanh.pop %v970
  %v1027 = vtanh.pop %v971
  %v1028 = vtanh.pop %v972
  %v1037 = vrot.slane %v768, 7
  %v1038 = vrot.slane %v769, 7
  %v1039 = vrot.slane %v770, 7
  %v1040 = vrot.slane %v771, 7
  %v1041 = vrot.slane %v772, 7
  %v1042 = vrot.slane %v773, 7
  %v1043 = vrot.slane %v774, 7
  %v1044 = vrot.slane %v775, 7
  %v1053 = vmul.f32 %v1006, %v1037
  %v1054 = vmul.f32 %v1008, %v1038
  %v1055 = vmul.f32 %v1010, %v1039
  %v1056 = vmul.f32 %v1012, %v1040
  %v1057 = vmul.f32 %v1014, %v1041
  %v1058 = vmul.f32 %v1016, %v1042
  %v1059 = vmul.f32 %v1018, %v1043
  %v1060 = vmul.f32 %v1020, %v1044
  %1069 = vrot.lane.b32.xlu0 %v1021, 32
  %v1070 = vpop.permute.xlu0 %1069
  %1071 = vrot.lane.b32.xlu0 %v1022, 32
  %v1072 = vpop.permute.xlu0 %1071
  %1073 = vrot.lane.b32.xlu0 %v1023, 32
  %v1074 = vpop.permute.xlu0 %1073
  %1075 = vrot.lane.b32.xlu0 %v1024, 32
  %v1076 = vpop.permute.xlu0 %1075
  %1077 = vrot.lane.b32.xlu0 %v1025, 32
  %v1078 = vpop.permute.xlu0 %1077
  %1079 = vrot.lane.b32.xlu0 %v1026, 32
  %v1080 = vpop.permute.xlu0 %1079
  %1081 = vrot.lane.b32.xlu0 %v1027, 32
  %v1082 = vpop.permute.xlu0 %1081
  %1083 = vrot.lane.b32.xlu0 %v1028, 32
  %v1084 = vpop.permute.xlu0 %1083
  %v1093 = vmul.f32 %v1006, %v1070
  %v1094 = vmul.f32 %v1008, %v1072
  %v1095 = vmul.f32 %v1010, %v1074
  %v1096 = vmul.f32 %v1012, %v1076
  %v1097 = vmul.f32 %v1014, %v1078
  %v1098 = vmul.f32 %v1016, %v1080
  %v1099 = vmul.f32 %v1018, %v1082
  %v1100 = vmul.f32 %v1020, %v1084
  %1109 = vrot.lane.b32.xlu0 %v1093, 64
  %v1110 = vpop.permute.xlu0 %1109
  %1111 = vrot.lane.b32.xlu0 %v1094, 64
  %v1112 = vpop.permute.xlu0 %1111
  %1113 = vrot.lane.b32.xlu0 %v1095, 64
  %v1114 = vpop.permute.xlu0 %1113
  %1115 = vrot.lane.b32.xlu0 %v1096, 64
  %v1116 = vpop.permute.xlu0 %1115
  %1117 = vrot.lane.b32.xlu0 %v1097, 64
  %v1118 = vpop.permute.xlu0 %1117
  %1119 = vrot.lane.b32.xlu0 %v1098, 64
  %v1120 = vpop.permute.xlu0 %1119
  %1121 = vrot.lane.b32.xlu0 %v1099, 64
  %v1122 = vpop.permute.xlu0 %1121
  %1123 = vrot.lane.b32.xlu0 %v1100, 64
  %v1124 = vpop.permute.xlu0 %1123
  %v1133 = vadd.f32 %v1053, %v1110
  %v1134 = vadd.f32 %v1054, %v1112
  %v1135 = vadd.f32 %v1055, %v1114
  %v1136 = vadd.f32 %v1056, %v1116
  %v1137 = vadd.f32 %v1057, %v1118
  %v1138 = vadd.f32 %v1058, %v1120
  %v1139 = vadd.f32 %v1059, %v1122
  %v1140 = vadd.f32 %v1060, %v1124
  %v1141 = vtanh.pop %v1133
  %v1142 = vtanh.pop %v1134
  %v1143 = vtanh.pop %v1135
  %v1144 = vtanh.pop %v1136
  %v1145 = vtanh.pop %v1137
  %v1146 = vtanh.pop %v1138
  %v1147 = vtanh.pop %v1139
  %v1148 = vtanh.pop %v1140
  %1157 = vrot.lane.b32.xlu0 %v1141, 96
  %v1158 = vpop.permute.xlu0 %1157
  %1159 = vrot.lane.b32.xlu0 %v1142, 96
  %v1160 = vpop.permute.xlu0 %1159
  %1161 = vrot.lane.b32.xlu0 %v1143, 96
  %v1162 = vpop.permute.xlu0 %1161
  %1163 = vrot.lane.b32.xlu0 %v1144, 96
  %v1164 = vpop.permute.xlu0 %1163
  %1165 = vrot.lane.b32.xlu0 %v1145, 96
  %v1166 = vpop.permute.xlu0 %1165
  %1167 = vrot.lane.b32.xlu0 %v1146, 96
  %v1168 = vpop.permute.xlu0 %1167
  %1169 = vrot.lane.b32.xlu0 %v1147, 96
  %v1170 = vpop.permute.xlu0 %1169
  %1171 = vrot.lane.b32.xlu0 %v1148, 96
  %v1172 = vpop.permute.xlu0 %1171
  %v1181 = vmul.f32 %v1006, %v1158
  %v1182 = vmul.f32 %v1008, %v1160
  %v1183 = vmul.f32 %v1010, %v1162
  %v1184 = vmul.f32 %v1012, %v1164
  %v1185 = vmul.f32 %v1014, %v1166
  %v1186 = vmul.f32 %v1016, %v1168
  %v1187 = vmul.f32 %v1018, %v1170
  %v1188 = vmul.f32 %v1020, %v1172
  %1197 = vrot.lane.b32.xlu0 %v1181, 32
  %v1198 = vpop.permute.xlu0 %1197
  %1199 = vrot.lane.b32.xlu0 %v1182, 32
  %v1200 = vpop.permute.xlu0 %1199
  %1201 = vrot.lane.b32.xlu0 %v1183, 32
  %v1202 = vpop.permute.xlu0 %1201
  %1203 = vrot.lane.b32.xlu0 %v1184, 32
  %v1204 = vpop.permute.xlu0 %1203
  %1205 = vrot.lane.b32.xlu0 %v1185, 32
  %v1206 = vpop.permute.xlu0 %1205
  %1207 = vrot.lane.b32.xlu0 %v1186, 32
  %v1208 = vpop.permute.xlu0 %1207
  %1209 = vrot.lane.b32.xlu0 %v1187, 32
  %v1210 = vpop.permute.xlu0 %1209
  %1211 = vrot.lane.b32.xlu0 %v1188, 32
  %v1212 = vpop.permute.xlu0 %1211
  %vm1221 = vcmask 256002
  %1222 = vst.msk [vmem:[%s4] sm:$0x4] %vm1221, %v1198
  %1223 = vst.msk [vmem:[%s4 + $0x8] sm:$0x4] %vm1221, %v1200
  %1224 = vst.msk [vmem:[%s4 + $0x10] sm:$0x4] %vm1221, %v1202
  %1225 = vst.msk [vmem:[%s4 + $0x18] sm:$0x4] %vm1221, %v1204
  %1226 = vst.msk [vmem:[%s4 + $0x20] sm:$0x4] %vm1221, %v1206
  %1227 = vst.msk [vmem:[%s4 + $0x28] sm:$0x4] %vm1221, %v1208
  %1228 = vst.msk [vmem:[%s4 + $0x30] sm:$0x4] %vm1221, %v1210
  %1229 = vst.msk [vmem:[%s4 + $0x38] sm:$0x4] %vm1221, %v1212
  %v1230 = vpack.c.bf16 %v1181, %v1181
  %v1231 = vpack.c.bf16 %v1182, %v1182
  %v1232 = vpack.c.bf16 %v1183, %v1183
  %v1233 = vpack.c.bf16 %v1184, %v1184
  %v1234 = vpack.c.bf16 %v1185, %v1185
  %v1235 = vpack.c.bf16 %v1186, %v1186
  %v1236 = vpack.c.bf16 %v1187, %v1187
  %v1237 = vpack.c.bf16 %v1188, %v1188
  %v1246 = vunpack.c.l.b16 %v1230
  %v1247 = vunpack.c.l.b16 %v1231
  %v1248 = vunpack.c.l.b16 %v1232
  %v1249 = vunpack.c.l.b16 %v1233
  %v1250 = vunpack.c.l.b16 %v1234
  %v1251 = vunpack.c.l.b16 %v1235
  %v1252 = vunpack.c.l.b16 %v1236
  %v1253 = vunpack.c.l.b16 %v1237
  %v1254 = vrot.slane %v1246, 2
  %v1255 = vrot.slane %v1247, 1
  %v1256 = vsel %vm518, %v1255, %v1254
  %v1257 = vsel %vm521, %v1248, %v1256
  %v1258 = vrot.slane %v1249, 7
  %v1259 = vsel %vm524, %v1258, %v1257
  %v1260 = vrot.slane %v1250, 6
  %v1261 = vsel %vm527, %v1260, %v1259
  %v1262 = vrot.slane %v1251, 5
  %v1263 = vsel %vm530, %v1262, %v1261
  %v1264 = vrot.slane %v1252, 4
  %v1265 = vsel %vm533, %v1264, %v1263
  %v1266 = vrot.slane %v1253, 3
  %v1267 = vsel %vm536, %v1266, %v1265
  %v1268 = vpack.c.b16 %v1267, %v1267
  %1269 = vrot.lane.b32.xlu0 %v1268, 32
  %v1270 = vpop.permute.xlu0 %1269
  %v1272 = vsel %vm176, %v1270, 0
  %1274 = vmatprep.subr.bf16.mxu0 0
  %1275 = vmatpush1.bf16.msra.mxu0 %v172
  %1276 = vmatprep.subr.bf16.mxu0 0
  %1277 = vmatpush1.bf16.msra.mxu0 %v173
  %1278 = vmatprep.subr.bf16.mxu0 0
  %1279 = vmatpush1.bf16.msra.mxu0 0
  %1280 = vmatprep.subr.bf16.mxu0 0
  %1281 = vmatpush1.bf16.msra.mxu0 0
  %1282 = vmatprep.subr.bf16.mxu0 0
  %1283 = vmatpush1.bf16.msra.mxu0 0
  %1284 = vmatprep.subr.bf16.mxu0 0
  %1285 = vmatpush1.bf16.msra.mxu0 0
  %1286 = vmatprep.subr.bf16.mxu0 0
  %1287 = vmatpush1.bf16.msra.mxu0 0
  %1288 = vmatprep.subr.bf16.mxu0 0
  %1289 = vmatpush1.bf16.msra.mxu0 0
  %1290 = vmatprep.subr.bf16.mxu0 0
  %1291 = vmatpush1.bf16.msra.mxu0 0
  %1292 = vmatprep.subr.bf16.mxu0 0
  %1293 = vmatpush1.bf16.msra.mxu0 0
  %1294 = vmatprep.subr.bf16.mxu0 0
  %1295 = vmatpush1.bf16.msra.mxu0 0
  %1296 = vmatprep.subr.bf16.mxu0 0
  %1297 = vmatpush1.bf16.msra.mxu0 0
  %1298 = vmatprep.subr.bf16.mxu0 0
  %1299 = vmatpush1.bf16.msra.mxu0 0
  %1300 = vmatprep.subr.bf16.mxu0 0
  %1301 = vmatpush1.bf16.msra.mxu0 0
  %1302 = vmatprep.subr.bf16.mxu0 0
  %1303 = vmatpush1.bf16.msra.mxu0 0
  %1304 = vmatprep.subr.bf16.mxu0 0
  %1305 = vmatpush1.bf16.msra.mxu0 0
  %1306 = vmatprep.mubr.bf16.mxu0 0
  %1307 = vmatmul.mubr.bf16.gmra.mrb[0].mxu0 %v1272
  %v1308 = vpop.f32.mrb[0].mxu0
  %v1309 = vadd.f32 0.0, %v1308
  %v1310 = vpop.f32.mrb[0].mxu0
  %v1311 = vpop.f32.mrb[0].mxu0
  %v1312 = vpop.f32.mrb[0].mxu0
  %1313 = vdwg.mxu0
  %v1315 = vrot.slane %v1309, 5
  %v1316 = vrot.slane %v1309, 6
  %v1317 = vrot.slane %v1309, 7
  %v1318 = vrot.slane %v1309, 1
  %v1319 = vrot.slane %v1309, 2
  %v1320 = vrot.slane %v1309, 3
  %v1321 = vrot.slane %v1309, 4
  %v1330 = vadd.f32 %v127, %v1315
  %v1331 = vadd.f32 %v130, %v1316
  %v1332 = vadd.f32 %v135, %v1317
  %v1333 = vadd.f32 %v138, %v1309
  %v1334 = vadd.f32 %v143, %v1318
  %v1335 = vadd.f32 %v146, %v1319
  %v1336 = vadd.f32 %v151, %v1320
  %v1337 = vadd.f32 %v154, %v1321
  %v1338 = vxor.u32 %v1330, 2147483648
  %v1339 = vxor.u32 %v1331, 2147483648
  %v1340 = vxor.u32 %v1332, 2147483648
  %v1341 = vxor.u32 %v1333, 2147483648
  %v1342 = vxor.u32 %v1334, 2147483648
  %v1343 = vxor.u32 %v1335, 2147483648
  %v1344 = vxor.u32 %v1336, 2147483648
  %v1345 = vxor.u32 %v1337, 2147483648
  %v1346 = vmul.f32 %v1338, 1.442695
  %v1347 = vpow.pop %v1346
  %v1348 = vmul.f32 %v1339, 1.442695
  %v1349 = vpow.pop %v1348
  %v1350 = vmul.f32 %v1340, 1.442695
  %v1351 = vpow.pop %v1350
  %v1352 = vmul.f32 %v1341, 1.442695
  %v1353 = vpow.pop %v1352
  %v1354 = vmul.f32 %v1342, 1.442695
  %v1355 = vpow.pop %v1354
  %v1356 = vmul.f32 %v1343, 1.442695
  %v1357 = vpow.pop %v1356
  %v1358 = vmul.f32 %v1344, 1.442695
  %v1359 = vpow.pop %v1358
  %v1360 = vmul.f32 %v1345, 1.442695
  %v1361 = vpow.pop %v1360
  %v1362 = vadd.f32 %v1347, 1.0
  %v1363 = vadd.f32 %v1349, 1.0
  %v1364 = vadd.f32 %v1351, 1.0
  %v1365 = vadd.f32 %v1353, 1.0
  %v1366 = vadd.f32 %v1355, 1.0
  %v1367 = vadd.f32 %v1357, 1.0
  %v1368 = vadd.f32 %v1359, 1.0
  %v1369 = vadd.f32 %v1361, 1.0
  %v1370 = vrcp.pop %v1362
  %v1371 = vmul.f32 1.0, %v1370
  %v1372 = vrcp.pop %v1363
  %v1373 = vmul.f32 1.0, %v1372
  %v1374 = vrcp.pop %v1364
  %v1375 = vmul.f32 1.0, %v1374
  %v1376 = vrcp.pop %v1365
  %v1377 = vmul.f32 1.0, %v1376
  %v1378 = vrcp.pop %v1366
  %v1379 = vmul.f32 1.0, %v1378
  %v1380 = vrcp.pop %v1367
  %v1381 = vmul.f32 1.0, %v1380
  %v1382 = vrcp.pop %v1368
  %v1383 = vmul.f32 1.0, %v1382
  %v1384 = vrcp.pop %v1369
  %v1385 = vmul.f32 1.0, %v1384
  %v1386 = vtanh.pop %v1330
  %v1387 = vtanh.pop %v1331
  %v1388 = vtanh.pop %v1332
  %v1389 = vtanh.pop %v1333
  %v1390 = vtanh.pop %v1334
  %v1391 = vtanh.pop %v1335
  %v1392 = vtanh.pop %v1336
  %v1393 = vtanh.pop %v1337
  %v1402 = vrot.slane %v1133, 7
  %v1403 = vrot.slane %v1134, 7
  %v1404 = vrot.slane %v1135, 7
  %v1405 = vrot.slane %v1136, 7
  %v1406 = vrot.slane %v1137, 7
  %v1407 = vrot.slane %v1138, 7
  %v1408 = vrot.slane %v1139, 7
  %v1409 = vrot.slane %v1140, 7
  %v1418 = vmul.f32 %v1371, %v1402
  %v1419 = vmul.f32 %v1373, %v1403
  %v1420 = vmul.f32 %v1375, %v1404
  %v1421 = vmul.f32 %v1377, %v1405
  %v1422 = vmul.f32 %v1379, %v1406
  %v1423 = vmul.f32 %v1381, %v1407
  %v1424 = vmul.f32 %v1383, %v1408
  %v1425 = vmul.f32 %v1385, %v1409
  %1434 = vrot.lane.b32.xlu0 %v1386, 32
  %v1435 = vpop.permute.xlu0 %1434
  %1436 = vrot.lane.b32.xlu0 %v1387, 32
  %v1437 = vpop.permute.xlu0 %1436
  %1438 = vrot.lane.b32.xlu0 %v1388, 32
  %v1439 = vpop.permute.xlu0 %1438
  %1440 = vrot.lane.b32.xlu0 %v1389, 32
  %v1441 = vpop.permute.xlu0 %1440
  %1442 = vrot.lane.b32.xlu0 %v1390, 32
  %v1443 = vpop.permute.xlu0 %1442
  %1444 = vrot.lane.b32.xlu0 %v1391, 32
  %v1445 = vpop.permute.xlu0 %1444
  %1446 = vrot.lane.b32.xlu0 %v1392, 32
  %v1447 = vpop.permute.xlu0 %1446
  %1448 = vrot.lane.b32.xlu0 %v1393, 32
  %v1449 = vpop.permute.xlu0 %1448
  %v1458 = vmul.f32 %v1371, %v1435
  %v1459 = vmul.f32 %v1373, %v1437
  %v1460 = vmul.f32 %v1375, %v1439
  %v1461 = vmul.f32 %v1377, %v1441
  %v1462 = vmul.f32 %v1379, %v1443
  %v1463 = vmul.f32 %v1381, %v1445
  %v1464 = vmul.f32 %v1383, %v1447
  %v1465 = vmul.f32 %v1385, %v1449
  %1474 = vrot.lane.b32.xlu0 %v1458, 64
  %v1475 = vpop.permute.xlu0 %1474
  %1476 = vrot.lane.b32.xlu0 %v1459, 64
  %v1477 = vpop.permute.xlu0 %1476
  %1478 = vrot.lane.b32.xlu0 %v1460, 64
  %v1479 = vpop.permute.xlu0 %1478
  %1480 = vrot.lane.b32.xlu0 %v1461, 64
  %v1481 = vpop.permute.xlu0 %1480
  %1482 = vrot.lane.b32.xlu0 %v1462, 64
  %v1483 = vpop.permute.xlu0 %1482
  %1484 = vrot.lane.b32.xlu0 %v1463, 64
  %v1485 = vpop.permute.xlu0 %1484
  %1486 = vrot.lane.b32.xlu0 %v1464, 64
  %v1487 = vpop.permute.xlu0 %1486
  %1488 = vrot.lane.b32.xlu0 %v1465, 64
  %v1489 = vpop.permute.xlu0 %1488
  %v1498 = vadd.f32 %v1418, %v1475
  %v1499 = vadd.f32 %v1419, %v1477
  %v1500 = vadd.f32 %v1420, %v1479
  %v1501 = vadd.f32 %v1421, %v1481
  %v1502 = vadd.f32 %v1422, %v1483
  %v1503 = vadd.f32 %v1423, %v1485
  %v1504 = vadd.f32 %v1424, %v1487
  %v1505 = vadd.f32 %v1425, %v1489
  %v1506 = vtanh.pop %v1498
  %v1507 = vtanh.pop %v1499
  %v1508 = vtanh.pop %v1500
  %v1509 = vtanh.pop %v1501
  %v1510 = vtanh.pop %v1502
  %v1511 = vtanh.pop %v1503
  %v1512 = vtanh.pop %v1504
  %v1513 = vtanh.pop %v1505
  %1522 = vrot.lane.b32.xlu0 %v1506, 96
  %v1523 = vpop.permute.xlu0 %1522
  %1524 = vrot.lane.b32.xlu0 %v1507, 96
  %v1525 = vpop.permute.xlu0 %1524
  %1526 = vrot.lane.b32.xlu0 %v1508, 96
  %v1527 = vpop.permute.xlu0 %1526
  %1528 = vrot.lane.b32.xlu0 %v1509, 96
  %v1529 = vpop.permute.xlu0 %1528
  %1530 = vrot.lane.b32.xlu0 %v1510, 96
  %v1531 = vpop.permute.xlu0 %1530
  %1532 = vrot.lane.b32.xlu0 %v1511, 96
  %v1533 = vpop.permute.xlu0 %1532
  %1534 = vrot.lane.b32.xlu0 %v1512, 96
  %v1535 = vpop.permute.xlu0 %1534
  %1536 = vrot.lane.b32.xlu0 %v1513, 96
  %v1537 = vpop.permute.xlu0 %1536
  %v1546 = vmul.f32 %v1371, %v1523
  %v1547 = vmul.f32 %v1373, %v1525
  %v1548 = vmul.f32 %v1375, %v1527
  %v1549 = vmul.f32 %v1377, %v1529
  %v1550 = vmul.f32 %v1379, %v1531
  %v1551 = vmul.f32 %v1381, %v1533
  %v1552 = vmul.f32 %v1383, %v1535
  %v1553 = vmul.f32 %v1385, %v1537
  %1562 = vrot.lane.b32.xlu0 %v1546, 32
  %v1563 = vpop.permute.xlu0 %1562
  %1564 = vrot.lane.b32.xlu0 %v1547, 32
  %v1565 = vpop.permute.xlu0 %1564
  %1566 = vrot.lane.b32.xlu0 %v1548, 32
  %v1567 = vpop.permute.xlu0 %1566
  %1568 = vrot.lane.b32.xlu0 %v1549, 32
  %v1569 = vpop.permute.xlu0 %1568
  %1570 = vrot.lane.b32.xlu0 %v1550, 32
  %v1571 = vpop.permute.xlu0 %1570
  %1572 = vrot.lane.b32.xlu0 %v1551, 32
  %v1573 = vpop.permute.xlu0 %1572
  %1574 = vrot.lane.b32.xlu0 %v1552, 32
  %v1575 = vpop.permute.xlu0 %1574
  %1576 = vrot.lane.b32.xlu0 %v1553, 32
  %v1577 = vpop.permute.xlu0 %1576
  %vm1586 = vcmask 257027
  %1587 = vst.msk [vmem:[%s4] sm:$0x8] %vm1586, %v1563
  %1588 = vst.msk [vmem:[%s4 + $0x8] sm:$0x8] %vm1586, %v1565
  %1589 = vst.msk [vmem:[%s4 + $0x10] sm:$0x8] %vm1586, %v1567
  %1590 = vst.msk [vmem:[%s4 + $0x18] sm:$0x8] %vm1586, %v1569
  %1591 = vst.msk [vmem:[%s4 + $0x20] sm:$0x8] %vm1586, %v1571
  %1592 = vst.msk [vmem:[%s4 + $0x28] sm:$0x8] %vm1586, %v1573
  %1593 = vst.msk [vmem:[%s4 + $0x30] sm:$0x8] %vm1586, %v1575
  %1594 = vst.msk [vmem:[%s4 + $0x38] sm:$0x8] %vm1586, %v1577
  %v1595 = vpack.c.bf16 %v1546, %v1546
  %v1596 = vpack.c.bf16 %v1547, %v1547
  %v1597 = vpack.c.bf16 %v1548, %v1548
  %v1598 = vpack.c.bf16 %v1549, %v1549
  %v1599 = vpack.c.bf16 %v1550, %v1550
  %v1600 = vpack.c.bf16 %v1551, %v1551
  %v1601 = vpack.c.bf16 %v1552, %v1552
  %v1602 = vpack.c.bf16 %v1553, %v1553
  %v1611 = vunpack.c.l.b16 %v1595
  %v1612 = vunpack.c.l.b16 %v1596
  %v1613 = vunpack.c.l.b16 %v1597
  %v1614 = vunpack.c.l.b16 %v1598
  %v1615 = vunpack.c.l.b16 %v1599
  %v1616 = vunpack.c.l.b16 %v1600
  %v1617 = vunpack.c.l.b16 %v1601
  %v1618 = vunpack.c.l.b16 %v1602
  %v1619 = vrot.slane %v1611, 3
  %v1620 = vrot.slane %v1612, 2
  %v1621 = vsel %vm518, %v1620, %v1619
  %v1622 = vrot.slane %v1613, 1
  %v1623 = vsel %vm521, %v1622, %v1621
  %v1624 = vsel %vm524, %v1614, %v1623
  %v1625 = vrot.slane %v1615, 7
  %v1626 = vsel %vm527, %v1625, %v1624
  %v1627 = vrot.slane %v1616, 6
  %v1628 = vsel %vm530, %v1627, %v1626
  %v1629 = vrot.slane %v1617, 5
  %v1630 = vsel %vm533, %v1629, %v1628
  %v1631 = vrot.slane %v1618, 4
  %v1632 = vsel %vm536, %v1631, %v1630
  %v1633 = vpack.c.b16 %v1632, %v1632
  %1634 = vrot.lane.b32.xlu0 %v1633, 32
  %v1635 = vpop.permute.xlu0 %1634
  %v1637 = vsel %vm176, %v1635, 0
  %1639 = vmatprep.subr.bf16.mxu0 0
  %1640 = vmatpush1.bf16.msra.mxu0 %v172
  %1641 = vmatprep.subr.bf16.mxu0 0
  %1642 = vmatpush1.bf16.msra.mxu0 %v173
  %1643 = vmatprep.subr.bf16.mxu0 0
  %1644 = vmatpush1.bf16.msra.mxu0 0
  %1645 = vmatprep.subr.bf16.mxu0 0
  %1646 = vmatpush1.bf16.msra.mxu0 0
  %1647 = vmatprep.subr.bf16.mxu0 0
  %1648 = vmatpush1.bf16.msra.mxu0 0
  %1649 = vmatprep.subr.bf16.mxu0 0
  %1650 = vmatpush1.bf16.msra.mxu0 0
  %1651 = vmatprep.subr.bf16.mxu0 0
  %1652 = vmatpush1.bf16.msra.mxu0 0
  %1653 = vmatprep.subr.bf16.mxu0 0
  %1654 = vmatpush1.bf16.msra.mxu0 0
  %1655 = vmatprep.subr.bf16.mxu0 0
  %1656 = vmatpush1.bf16.msra.mxu0 0
  %1657 = vmatprep.subr.bf16.mxu0 0
  %1658 = vmatpush1.bf16.msra.mxu0 0
  %1659 = vmatprep.subr.bf16.mxu0 0
  %1660 = vmatpush1.bf16.msra.mxu0 0
  %1661 = vmatprep.subr.bf16.mxu0 0
  %1662 = vmatpush1.bf16.msra.mxu0 0
  %1663 = vmatprep.subr.bf16.mxu0 0
  %1664 = vmatpush1.bf16.msra.mxu0 0
  %1665 = vmatprep.subr.bf16.mxu0 0
  %1666 = vmatpush1.bf16.msra.mxu0 0
  %1667 = vmatprep.subr.bf16.mxu0 0
  %1668 = vmatpush1.bf16.msra.mxu0 0
  %1669 = vmatprep.subr.bf16.mxu0 0
  %1670 = vmatpush1.bf16.msra.mxu0 0
  %1671 = vmatprep.mubr.bf16.mxu0 0
  %1672 = vmatmul.mubr.bf16.gmra.mrb[0].mxu0 %v1637
  %v1673 = vpop.f32.mrb[0].mxu0
  %v1674 = vadd.f32 0.0, %v1673
  %v1675 = vpop.f32.mrb[0].mxu0
  %v1676 = vpop.f32.mrb[0].mxu0
  %v1677 = vpop.f32.mrb[0].mxu0
  %1678 = vdwg.mxu0
  %v1680 = vrot.slane %v1674, 4
  %v1681 = vrot.slane %v1674, 5
  %v1682 = vrot.slane %v1674, 6
  %v1683 = vrot.slane %v1674, 7
  %v1684 = vrot.slane %v1674, 1
  %v1685 = vrot.slane %v1674, 2
  %v1686 = vrot.slane %v1674, 3
  %v1695 = vadd.f32 %v127, %v1680
  %v1696 = vadd.f32 %v130, %v1681
  %v1697 = vadd.f32 %v135, %v1682
  %v1698 = vadd.f32 %v138, %v1683
  %v1699 = vadd.f32 %v143, %v1674
  %v1700 = vadd.f32 %v146, %v1684
  %v1701 = vadd.f32 %v151, %v1685
  %v1702 = vadd.f32 %v154, %v1686
  %v1703 = vxor.u32 %v1695, 2147483648
  %v1704 = vxor.u32 %v1696, 2147483648
  %v1705 = vxor.u32 %v1697, 2147483648
  %v1706 = vxor.u32 %v1698, 2147483648
  %v1707 = vxor.u32 %v1699, 2147483648
  %v1708 = vxor.u32 %v1700, 2147483648
  %v1709 = vxor.u32 %v1701, 2147483648
  %v1710 = vxor.u32 %v1702, 2147483648
  %v1711 = vmul.f32 %v1703, 1.442695
  %v1712 = vpow.pop %v1711
  %v1713 = vmul.f32 %v1704, 1.442695
  %v1714 = vpow.pop %v1713
  %v1715 = vmul.f32 %v1705, 1.442695
  %v1716 = vpow.pop %v1715
  %v1717 = vmul.f32 %v1706, 1.442695
  %v1718 = vpow.pop %v1717
  %v1719 = vmul.f32 %v1707, 1.442695
  %v1720 = vpow.pop %v1719
  %v1721 = vmul.f32 %v1708, 1.442695
  %v1722 = vpow.pop %v1721
  %v1723 = vmul.f32 %v1709, 1.442695
  %v1724 = vpow.pop %v1723
  %v1725 = vmul.f32 %v1710, 1.442695
  %v1726 = vpow.pop %v1725
  %v1727 = vadd.f32 %v1712, 1.0
  %v1728 = vadd.f32 %v1714, 1.0
  %v1729 = vadd.f32 %v1716, 1.0
  %v1730 = vadd.f32 %v1718, 1.0
  %v1731 = vadd.f32 %v1720, 1.0
  %v1732 = vadd.f32 %v1722, 1.0
  %v1733 = vadd.f32 %v1724, 1.0
  %v1734 = vadd.f32 %v1726, 1.0
  %v1735 = vrcp.pop %v1727
  %v1736 = vmul.f32 1.0, %v1735
  %v1737 = vrcp.pop %v1728
  %v1738 = vmul.f32 1.0, %v1737
  %v1739 = vrcp.pop %v1729
  %v1740 = vmul.f32 1.0, %v1739
  %v1741 = vrcp.pop %v1730
  %v1742 = vmul.f32 1.0, %v1741
  %v1743 = vrcp.pop %v1731
  %v1744 = vmul.f32 1.0, %v1743
  %v1745 = vrcp.pop %v1732
  %v1746 = vmul.f32 1.0, %v1745
  %v1747 = vrcp.pop %v1733
  %v1748 = vmul.f32 1.0, %v1747
  %v1749 = vrcp.pop %v1734
  %v1750 = vmul.f32 1.0, %v1749
  %v1751 = vtanh.pop %v1695
  %v1752 = vtanh.pop %v1696
  %v1753 = vtanh.pop %v1697
  %v1754 = vtanh.pop %v1698
  %v1755 = vtanh.pop %v1699
  %v1756 = vtanh.pop %v1700
  %v1757 = vtanh.pop %v1701
  %v1758 = vtanh.pop %v1702
  %v1767 = vrot.slane %v1498, 7
  %v1768 = vrot.slane %v1499, 7
  %v1769 = vrot.slane %v1500, 7
  %v1770 = vrot.slane %v1501, 7
  %v1771 = vrot.slane %v1502, 7
  %v1772 = vrot.slane %v1503, 7
  %v1773 = vrot.slane %v1504, 7
  %v1774 = vrot.slane %v1505, 7
  %v1783 = vmul.f32 %v1736, %v1767
  %v1784 = vmul.f32 %v1738, %v1768
  %v1785 = vmul.f32 %v1740, %v1769
  %v1786 = vmul.f32 %v1742, %v1770
  %v1787 = vmul.f32 %v1744, %v1771
  %v1788 = vmul.f32 %v1746, %v1772
  %v1789 = vmul.f32 %v1748, %v1773
  %v1790 = vmul.f32 %v1750, %v1774
  %1799 = vrot.lane.b32.xlu0 %v1751, 32
  %v1800 = vpop.permute.xlu0 %1799
  %1801 = vrot.lane.b32.xlu0 %v1752, 32
  %v1802 = vpop.permute.xlu0 %1801
  %1803 = vrot.lane.b32.xlu0 %v1753, 32
  %v1804 = vpop.permute.xlu0 %1803
  %1805 = vrot.lane.b32.xlu0 %v1754, 32
  %v1806 = vpop.permute.xlu0 %1805
  %1807 = vrot.lane.b32.xlu0 %v1755, 32
  %v1808 = vpop.permute.xlu0 %1807
  %1809 = vrot.lane.b32.xlu0 %v1756, 32
  %v1810 = vpop.permute.xlu0 %1809
  %1811 = vrot.lane.b32.xlu0 %v1757, 32
  %v1812 = vpop.permute.xlu0 %1811
  %1813 = vrot.lane.b32.xlu0 %v1758, 32
  %v1814 = vpop.permute.xlu0 %1813
  %v1823 = vmul.f32 %v1736, %v1800
  %v1824 = vmul.f32 %v1738, %v1802
  %v1825 = vmul.f32 %v1740, %v1804
  %v1826 = vmul.f32 %v1742, %v1806
  %v1827 = vmul.f32 %v1744, %v1808
  %v1828 = vmul.f32 %v1746, %v1810
  %v1829 = vmul.f32 %v1748, %v1812
  %v1830 = vmul.f32 %v1750, %v1814
  %1839 = vrot.lane.b32.xlu0 %v1823, 64
  %v1840 = vpop.permute.xlu0 %1839
  %1841 = vrot.lane.b32.xlu0 %v1824, 64
  %v1842 = vpop.permute.xlu0 %1841
  %1843 = vrot.lane.b32.xlu0 %v1825, 64
  %v1844 = vpop.permute.xlu0 %1843
  %1845 = vrot.lane.b32.xlu0 %v1826, 64
  %v1846 = vpop.permute.xlu0 %1845
  %1847 = vrot.lane.b32.xlu0 %v1827, 64
  %v1848 = vpop.permute.xlu0 %1847
  %1849 = vrot.lane.b32.xlu0 %v1828, 64
  %v1850 = vpop.permute.xlu0 %1849
  %1851 = vrot.lane.b32.xlu0 %v1829, 64
  %v1852 = vpop.permute.xlu0 %1851
  %1853 = vrot.lane.b32.xlu0 %v1830, 64
  %v1854 = vpop.permute.xlu0 %1853
  %v1863 = vadd.f32 %v1783, %v1840
  %v1864 = vadd.f32 %v1784, %v1842
  %v1865 = vadd.f32 %v1785, %v1844
  %v1866 = vadd.f32 %v1786, %v1846
  %v1867 = vadd.f32 %v1787, %v1848
  %v1868 = vadd.f32 %v1788, %v1850
  %v1869 = vadd.f32 %v1789, %v1852
  %v1870 = vadd.f32 %v1790, %v1854
  %v1871 = vtanh.pop %v1863
  %v1872 = vtanh.pop %v1864
  %v1873 = vtanh.pop %v1865
  %v1874 = vtanh.pop %v1866
  %v1875 = vtanh.pop %v1867
  %v1876 = vtanh.pop %v1868
  %v1877 = vtanh.pop %v1869
  %v1878 = vtanh.pop %v1870
  %1887 = vrot.lane.b32.xlu0 %v1871, 96
  %v1888 = vpop.permute.xlu0 %1887
  %1889 = vrot.lane.b32.xlu0 %v1872, 96
  %v1890 = vpop.permute.xlu0 %1889
  %1891 = vrot.lane.b32.xlu0 %v1873, 96
  %v1892 = vpop.permute.xlu0 %1891
  %1893 = vrot.lane.b32.xlu0 %v1874, 96
  %v1894 = vpop.permute.xlu0 %1893
  %1895 = vrot.lane.b32.xlu0 %v1875, 96
  %v1896 = vpop.permute.xlu0 %1895
  %1897 = vrot.lane.b32.xlu0 %v1876, 96
  %v1898 = vpop.permute.xlu0 %1897
  %1899 = vrot.lane.b32.xlu0 %v1877, 96
  %v1900 = vpop.permute.xlu0 %1899
  %1901 = vrot.lane.b32.xlu0 %v1878, 96
  %v1902 = vpop.permute.xlu0 %1901
  %v1911 = vmul.f32 %v1736, %v1888
  %v1912 = vmul.f32 %v1738, %v1890
  %v1913 = vmul.f32 %v1740, %v1892
  %v1914 = vmul.f32 %v1742, %v1894
  %v1915 = vmul.f32 %v1744, %v1896
  %v1916 = vmul.f32 %v1746, %v1898
  %v1917 = vmul.f32 %v1748, %v1900
  %v1918 = vmul.f32 %v1750, %v1902
  %1927 = vrot.lane.b32.xlu0 %v1911, 32
  %v1928 = vpop.permute.xlu0 %1927
  %1929 = vrot.lane.b32.xlu0 %v1912, 32
  %v1930 = vpop.permute.xlu0 %1929
  %1931 = vrot.lane.b32.xlu0 %v1913, 32
  %v1932 = vpop.permute.xlu0 %1931
  %1933 = vrot.lane.b32.xlu0 %v1914, 32
  %v1934 = vpop.permute.xlu0 %1933
  %1935 = vrot.lane.b32.xlu0 %v1915, 32
  %v1936 = vpop.permute.xlu0 %1935
  %1937 = vrot.lane.b32.xlu0 %v1916, 32
  %v1938 = vpop.permute.xlu0 %1937
  %1939 = vrot.lane.b32.xlu0 %v1917, 32
  %v1940 = vpop.permute.xlu0 %1939
  %1941 = vrot.lane.b32.xlu0 %v1918, 32
  %v1942 = vpop.permute.xlu0 %1941
  %vm1951 = vcmask 258052
  %1952 = vst.msk [vmem:[%s4] sm:$0x10] %vm1951, %v1928
  %1953 = vst.msk [vmem:[%s4 + $0x8] sm:$0x10] %vm1951, %v1930
  %1954 = vst.msk [vmem:[%s4 + $0x10] sm:$0x10] %vm1951, %v1932
  %1955 = vst.msk [vmem:[%s4 + $0x18] sm:$0x10] %vm1951, %v1934
  %1956 = vst.msk [vmem:[%s4 + $0x20] sm:$0x10] %vm1951, %v1936
  %1957 = vst.msk [vmem:[%s4 + $0x28] sm:$0x10] %vm1951, %v1938
  %1958 = vst.msk [vmem:[%s4 + $0x30] sm:$0x10] %vm1951, %v1940
  %1959 = vst.msk [vmem:[%s4 + $0x38] sm:$0x10] %vm1951, %v1942
  %v1960 = vpack.c.bf16 %v1911, %v1911
  %v1961 = vpack.c.bf16 %v1912, %v1912
  %v1962 = vpack.c.bf16 %v1913, %v1913
  %v1963 = vpack.c.bf16 %v1914, %v1914
  %v1964 = vpack.c.bf16 %v1915, %v1915
  %v1965 = vpack.c.bf16 %v1916, %v1916
  %v1966 = vpack.c.bf16 %v1917, %v1917
  %v1967 = vpack.c.bf16 %v1918, %v1918
  %v1976 = vunpack.c.l.b16 %v1960
  %v1977 = vunpack.c.l.b16 %v1961
  %v1978 = vunpack.c.l.b16 %v1962
  %v1979 = vunpack.c.l.b16 %v1963
  %v1980 = vunpack.c.l.b16 %v1964
  %v1981 = vunpack.c.l.b16 %v1965
  %v1982 = vunpack.c.l.b16 %v1966
  %v1983 = vunpack.c.l.b16 %v1967
  %v1984 = vrot.slane %v1976, 4
  %v1985 = vrot.slane %v1977, 3
  %v1986 = vsel %vm518, %v1985, %v1984
  %v1987 = vrot.slane %v1978, 2
  %v1988 = vsel %vm521, %v1987, %v1986
  %v1989 = vrot.slane %v1979, 1
  %v1990 = vsel %vm524, %v1989, %v1988
  %v1991 = vsel %vm527, %v1980, %v1990
  %v1992 = vrot.slane %v1981, 7
  %v1993 = vsel %vm530, %v1992, %v1991
  %v1994 = vrot.slane %v1982, 6
  %v1995 = vsel %vm533, %v1994, %v1993
  %v1996 = vrot.slane %v1983, 5
  %v1997 = vsel %vm536, %v1996, %v1995
  %v1998 = vpack.c.b16 %v1997, %v1997
  %1999 = vrot.lane.b32.xlu0 %v1998, 32
  %v2000 = vpop.permute.xlu0 %1999
  %v2002 = vsel %vm176, %v2000, 0
  %2004 = vmatprep.subr.bf16.mxu0 0
  %2005 = vmatpush1.bf16.msra.mxu0 %v172
  %2006 = vmatprep.subr.bf16.mxu0 0
  %2007 = vmatpush1.bf16.msra.mxu0 %v173
  %2008 = vmatprep.subr.bf16.mxu0 0
  %2009 = vmatpush1.bf16.msra.mxu0 0
  %2010 = vmatprep.subr.bf16.mxu0 0
  %2011 = vmatpush1.bf16.msra.mxu0 0
  %2012 = vmatprep.subr.bf16.mxu0 0
  %2013 = vmatpush1.bf16.msra.mxu0 0
  %2014 = vmatprep.subr.bf16.mxu0 0
  %2015 = vmatpush1.bf16.msra.mxu0 0
  %2016 = vmatprep.subr.bf16.mxu0 0
  %2017 = vmatpush1.bf16.msra.mxu0 0
  %2018 = vmatprep.subr.bf16.mxu0 0
  %2019 = vmatpush1.bf16.msra.mxu0 0
  %2020 = vmatprep.subr.bf16.mxu0 0
  %2021 = vmatpush1.bf16.msra.mxu0 0
  %2022 = vmatprep.subr.bf16.mxu0 0
  %2023 = vmatpush1.bf16.msra.mxu0 0
  %2024 = vmatprep.subr.bf16.mxu0 0
  %2025 = vmatpush1.bf16.msra.mxu0 0
  %2026 = vmatprep.subr.bf16.mxu0 0
  %2027 = vmatpush1.bf16.msra.mxu0 0
  %2028 = vmatprep.subr.bf16.mxu0 0
  %2029 = vmatpush1.bf16.msra.mxu0 0
  %2030 = vmatprep.subr.bf16.mxu0 0
  %2031 = vmatpush1.bf16.msra.mxu0 0
  %2032 = vmatprep.subr.bf16.mxu0 0
  %2033 = vmatpush1.bf16.msra.mxu0 0
  %2034 = vmatprep.subr.bf16.mxu0 0
  %2035 = vmatpush1.bf16.msra.mxu0 0
  %2036 = vmatprep.mubr.bf16.mxu0 0
  %2037 = vmatmul.mubr.bf16.gmra.mrb[0].mxu0 %v2002
  %v2038 = vpop.f32.mrb[0].mxu0
  %v2039 = vadd.f32 0.0, %v2038
  %v2040 = vpop.f32.mrb[0].mxu0
  %v2041 = vpop.f32.mrb[0].mxu0
  %v2042 = vpop.f32.mrb[0].mxu0
  %2043 = vdwg.mxu0
  %v2045 = vrot.slane %v2039, 3
  %v2046 = vrot.slane %v2039, 4
  %v2047 = vrot.slane %v2039, 5
  %v2048 = vrot.slane %v2039, 6
  %v2049 = vrot.slane %v2039, 7
  %v2050 = vrot.slane %v2039, 1
  %v2051 = vrot.slane %v2039, 2
  %v2060 = vadd.f32 %v127, %v2045
  %v2061 = vadd.f32 %v130, %v2046
  %v2062 = vadd.f32 %v135, %v2047
  %v2063 = vadd.f32 %v138, %v2048
  %v2064 = vadd.f32 %v143, %v2049
  %v2065 = vadd.f32 %v146, %v2039
  %v2066 = vadd.f32 %v151, %v2050
  %v2067 = vadd.f32 %v154, %v2051
  %v2068 = vxor.u32 %v2060, 2147483648
  %v2069 = vxor.u32 %v2061, 2147483648
  %v2070 = vxor.u32 %v2062, 2147483648
  %v2071 = vxor.u32 %v2063, 2147483648
  %v2072 = vxor.u32 %v2064, 2147483648
  %v2073 = vxor.u32 %v2065, 2147483648
  %v2074 = vxor.u32 %v2066, 2147483648
  %v2075 = vxor.u32 %v2067, 2147483648
  %v2076 = vmul.f32 %v2068, 1.442695
  %v2077 = vpow.pop %v2076
  %v2078 = vmul.f32 %v2069, 1.442695
  %v2079 = vpow.pop %v2078
  %v2080 = vmul.f32 %v2070, 1.442695
  %v2081 = vpow.pop %v2080
  %v2082 = vmul.f32 %v2071, 1.442695
  %v2083 = vpow.pop %v2082
  %v2084 = vmul.f32 %v2072, 1.442695
  %v2085 = vpow.pop %v2084
  %v2086 = vmul.f32 %v2073, 1.442695
  %v2087 = vpow.pop %v2086
  %v2088 = vmul.f32 %v2074, 1.442695
  %v2089 = vpow.pop %v2088
  %v2090 = vmul.f32 %v2075, 1.442695
  %v2091 = vpow.pop %v2090
  %v2092 = vadd.f32 %v2077, 1.0
  %v2093 = vadd.f32 %v2079, 1.0
  %v2094 = vadd.f32 %v2081, 1.0
  %v2095 = vadd.f32 %v2083, 1.0
  %v2096 = vadd.f32 %v2085, 1.0
  %v2097 = vadd.f32 %v2087, 1.0
  %v2098 = vadd.f32 %v2089, 1.0
  %v2099 = vadd.f32 %v2091, 1.0
  %v2100 = vrcp.pop %v2092
  %v2101 = vmul.f32 1.0, %v2100
  %v2102 = vrcp.pop %v2093
  %v2103 = vmul.f32 1.0, %v2102
  %v2104 = vrcp.pop %v2094
  %v2105 = vmul.f32 1.0, %v2104
  %v2106 = vrcp.pop %v2095
  %v2107 = vmul.f32 1.0, %v2106
  %v2108 = vrcp.pop %v2096
  %v2109 = vmul.f32 1.0, %v2108
  %v2110 = vrcp.pop %v2097
  %v2111 = vmul.f32 1.0, %v2110
  %v2112 = vrcp.pop %v2098
  %v2113 = vmul.f32 1.0, %v2112
  %v2114 = vrcp.pop %v2099
  %v2115 = vmul.f32 1.0, %v2114
  %v2116 = vtanh.pop %v2060
  %v2117 = vtanh.pop %v2061
  %v2118 = vtanh.pop %v2062
  %v2119 = vtanh.pop %v2063
  %v2120 = vtanh.pop %v2064
  %v2121 = vtanh.pop %v2065
  %v2122 = vtanh.pop %v2066
  %v2123 = vtanh.pop %v2067
  %v2132 = vrot.slane %v1863, 7
  %v2133 = vrot.slane %v1864, 7
  %v2134 = vrot.slane %v1865, 7
  %v2135 = vrot.slane %v1866, 7
  %v2136 = vrot.slane %v1867, 7
  %v2137 = vrot.slane %v1868, 7
  %v2138 = vrot.slane %v1869, 7
  %v2139 = vrot.slane %v1870, 7
  %v2148 = vmul.f32 %v2101, %v2132
  %v2149 = vmul.f32 %v2103, %v2133
  %v2150 = vmul.f32 %v2105, %v2134
  %v2151 = vmul.f32 %v2107, %v2135
  %v2152 = vmul.f32 %v2109, %v2136
  %v2153 = vmul.f32 %v2111, %v2137
  %v2154 = vmul.f32 %v2113, %v2138
  %v2155 = vmul.f32 %v2115, %v2139
  %2164 = vrot.lane.b32.xlu0 %v2116, 32
  %v2165 = vpop.permute.xlu0 %2164
  %2166 = vrot.lane.b32.xlu0 %v2117, 32
  %v2167 = vpop.permute.xlu0 %2166
  %2168 = vrot.lane.b32.xlu0 %v2118, 32
  %v2169 = vpop.permute.xlu0 %2168
  %2170 = vrot.lane.b32.xlu0 %v2119, 32
  %v2171 = vpop.permute.xlu0 %2170
  %2172 = vrot.lane.b32.xlu0 %v2120, 32
  %v2173 = vpop.permute.xlu0 %2172
  %2174 = vrot.lane.b32.xlu0 %v2121, 32
  %v2175 = vpop.permute.xlu0 %2174
  %2176 = vrot.lane.b32.xlu0 %v2122, 32
  %v2177 = vpop.permute.xlu0 %2176
  %2178 = vrot.lane.b32.xlu0 %v2123, 32
  %v2179 = vpop.permute.xlu0 %2178
  %v2188 = vmul.f32 %v2101, %v2165
  %v2189 = vmul.f32 %v2103, %v2167
  %v2190 = vmul.f32 %v2105, %v2169
  %v2191 = vmul.f32 %v2107, %v2171
  %v2192 = vmul.f32 %v2109, %v2173
  %v2193 = vmul.f32 %v2111, %v2175
  %v2194 = vmul.f32 %v2113, %v2177
  %v2195 = vmul.f32 %v2115, %v2179
  %2204 = vrot.lane.b32.xlu0 %v2188, 64
  %v2205 = vpop.permute.xlu0 %2204
  %2206 = vrot.lane.b32.xlu0 %v2189, 64
  %v2207 = vpop.permute.xlu0 %2206
  %2208 = vrot.lane.b32.xlu0 %v2190, 64
  %v2209 = vpop.permute.xlu0 %2208
  %2210 = vrot.lane.b32.xlu0 %v2191, 64
  %v2211 = vpop.permute.xlu0 %2210
  %2212 = vrot.lane.b32.xlu0 %v2192, 64
  %v2213 = vpop.permute.xlu0 %2212
  %2214 = vrot.lane.b32.xlu0 %v2193, 64
  %v2215 = vpop.permute.xlu0 %2214
  %2216 = vrot.lane.b32.xlu0 %v2194, 64
  %v2217 = vpop.permute.xlu0 %2216
  %2218 = vrot.lane.b32.xlu0 %v2195, 64
  %v2219 = vpop.permute.xlu0 %2218
  %v2228 = vadd.f32 %v2148, %v2205
  %v2229 = vadd.f32 %v2149, %v2207
  %v2230 = vadd.f32 %v2150, %v2209
  %v2231 = vadd.f32 %v2151, %v2211
  %v2232 = vadd.f32 %v2152, %v2213
  %v2233 = vadd.f32 %v2153, %v2215
  %v2234 = vadd.f32 %v2154, %v2217
  %v2235 = vadd.f32 %v2155, %v2219
  %v2236 = vtanh.pop %v2228
  %v2237 = vtanh.pop %v2229
  %v2238 = vtanh.pop %v2230
  %v2239 = vtanh.pop %v2231
  %v2240 = vtanh.pop %v2232
  %v2241 = vtanh.pop %v2233
  %v2242 = vtanh.pop %v2234
  %v2243 = vtanh.pop %v2235
  %2252 = vrot.lane.b32.xlu0 %v2236, 96
  %v2253 = vpop.permute.xlu0 %2252
  %2254 = vrot.lane.b32.xlu0 %v2237, 96
  %v2255 = vpop.permute.xlu0 %2254
  %2256 = vrot.lane.b32.xlu0 %v2238, 96
  %v2257 = vpop.permute.xlu0 %2256
  %2258 = vrot.lane.b32.xlu0 %v2239, 96
  %v2259 = vpop.permute.xlu0 %2258
  %2260 = vrot.lane.b32.xlu0 %v2240, 96
  %v2261 = vpop.permute.xlu0 %2260
  %2262 = vrot.lane.b32.xlu0 %v2241, 96
  %v2263 = vpop.permute.xlu0 %2262
  %2264 = vrot.lane.b32.xlu0 %v2242, 96
  %v2265 = vpop.permute.xlu0 %2264
  %2266 = vrot.lane.b32.xlu0 %v2243, 96
  %v2267 = vpop.permute.xlu0 %2266
  %v2276 = vmul.f32 %v2101, %v2253
  %v2277 = vmul.f32 %v2103, %v2255
  %v2278 = vmul.f32 %v2105, %v2257
  %v2279 = vmul.f32 %v2107, %v2259
  %v2280 = vmul.f32 %v2109, %v2261
  %v2281 = vmul.f32 %v2111, %v2263
  %v2282 = vmul.f32 %v2113, %v2265
  %v2283 = vmul.f32 %v2115, %v2267
  %2292 = vrot.lane.b32.xlu0 %v2276, 32
  %v2293 = vpop.permute.xlu0 %2292
  %2294 = vrot.lane.b32.xlu0 %v2277, 32
  %v2295 = vpop.permute.xlu0 %2294
  %2296 = vrot.lane.b32.xlu0 %v2278, 32
  %v2297 = vpop.permute.xlu0 %2296
  %2298 = vrot.lane.b32.xlu0 %v2279, 32
  %v2299 = vpop.permute.xlu0 %2298
  %2300 = vrot.lane.b32.xlu0 %v2280, 32
  %v2301 = vpop.permute.xlu0 %2300
  %2302 = vrot.lane.b32.xlu0 %v2281, 32
  %v2303 = vpop.permute.xlu0 %2302
  %2304 = vrot.lane.b32.xlu0 %v2282, 32
  %v2305 = vpop.permute.xlu0 %2304
  %2306 = vrot.lane.b32.xlu0 %v2283, 32
  %v2307 = vpop.permute.xlu0 %2306
  %vm2316 = vcmask 259077
  %2317 = vst.msk [vmem:[%s4] sm:$0x20] %vm2316, %v2293
  %2318 = vst.msk [vmem:[%s4 + $0x8] sm:$0x20] %vm2316, %v2295
  %2319 = vst.msk [vmem:[%s4 + $0x10] sm:$0x20] %vm2316, %v2297
  %2320 = vst.msk [vmem:[%s4 + $0x18] sm:$0x20] %vm2316, %v2299
  %2321 = vst.msk [vmem:[%s4 + $0x20] sm:$0x20] %vm2316, %v2301
  %2322 = vst.msk [vmem:[%s4 + $0x28] sm:$0x20] %vm2316, %v2303
  %2323 = vst.msk [vmem:[%s4 + $0x30] sm:$0x20] %vm2316, %v2305
  %2324 = vst.msk [vmem:[%s4 + $0x38] sm:$0x20] %vm2316, %v2307
  %v2325 = vpack.c.bf16 %v2276, %v2276
  %v2326 = vpack.c.bf16 %v2277, %v2277
  %v2327 = vpack.c.bf16 %v2278, %v2278
  %v2328 = vpack.c.bf16 %v2279, %v2279
  %v2329 = vpack.c.bf16 %v2280, %v2280
  %v2330 = vpack.c.bf16 %v2281, %v2281
  %v2331 = vpack.c.bf16 %v2282, %v2282
  %v2332 = vpack.c.bf16 %v2283, %v2283
  %v2341 = vunpack.c.l.b16 %v2325
  %v2342 = vunpack.c.l.b16 %v2326
  %v2343 = vunpack.c.l.b16 %v2327
  %v2344 = vunpack.c.l.b16 %v2328
  %v2345 = vunpack.c.l.b16 %v2329
  %v2346 = vunpack.c.l.b16 %v2330
  %v2347 = vunpack.c.l.b16 %v2331
  %v2348 = vunpack.c.l.b16 %v2332
  %v2349 = vrot.slane %v2341, 5
  %v2350 = vrot.slane %v2342, 4
  %v2351 = vsel %vm518, %v2350, %v2349
  %v2352 = vrot.slane %v2343, 3
  %v2353 = vsel %vm521, %v2352, %v2351
  %v2354 = vrot.slane %v2344, 2
  %v2355 = vsel %vm524, %v2354, %v2353
  %v2356 = vrot.slane %v2345, 1
  %v2357 = vsel %vm527, %v2356, %v2355
  %v2358 = vsel %vm530, %v2346, %v2357
  %v2359 = vrot.slane %v2347, 7
  %v2360 = vsel %vm533, %v2359, %v2358
  %v2361 = vrot.slane %v2348, 6
  %v2362 = vsel %vm536, %v2361, %v2360
  %v2363 = vpack.c.b16 %v2362, %v2362
  %2364 = vrot.lane.b32.xlu0 %v2363, 32
  %v2365 = vpop.permute.xlu0 %2364
  %v2367 = vsel %vm176, %v2365, 0
  %2369 = vmatprep.subr.bf16.mxu0 0
  %2370 = vmatpush1.bf16.msra.mxu0 %v172
  %2371 = vmatprep.subr.bf16.mxu0 0
  %2372 = vmatpush1.bf16.msra.mxu0 %v173
  %2373 = vmatprep.subr.bf16.mxu0 0
  %2374 = vmatpush1.bf16.msra.mxu0 0
  %2375 = vmatprep.subr.bf16.mxu0 0
  %2376 = vmatpush1.bf16.msra.mxu0 0
  %2377 = vmatprep.subr.bf16.mxu0 0
  %2378 = vmatpush1.bf16.msra.mxu0 0
  %2379 = vmatprep.subr.bf16.mxu0 0
  %2380 = vmatpush1.bf16.msra.mxu0 0
  %2381 = vmatprep.subr.bf16.mxu0 0
  %2382 = vmatpush1.bf16.msra.mxu0 0
  %2383 = vmatprep.subr.bf16.mxu0 0
  %2384 = vmatpush1.bf16.msra.mxu0 0
  %2385 = vmatprep.subr.bf16.mxu0 0
  %2386 = vmatpush1.bf16.msra.mxu0 0
  %2387 = vmatprep.subr.bf16.mxu0 0
  %2388 = vmatpush1.bf16.msra.mxu0 0
  %2389 = vmatprep.subr.bf16.mxu0 0
  %2390 = vmatpush1.bf16.msra.mxu0 0
  %2391 = vmatprep.subr.bf16.mxu0 0
  %2392 = vmatpush1.bf16.msra.mxu0 0
  %2393 = vmatprep.subr.bf16.mxu0 0
  %2394 = vmatpush1.bf16.msra.mxu0 0
  %2395 = vmatprep.subr.bf16.mxu0 0
  %2396 = vmatpush1.bf16.msra.mxu0 0
  %2397 = vmatprep.subr.bf16.mxu0 0
  %2398 = vmatpush1.bf16.msra.mxu0 0
  %2399 = vmatprep.subr.bf16.mxu0 0
  %2400 = vmatpush1.bf16.msra.mxu0 0
  %2401 = vmatprep.mubr.bf16.mxu0 0
  %2402 = vmatmul.mubr.bf16.gmra.mrb[0].mxu0 %v2367
  %v2403 = vpop.f32.mrb[0].mxu0
  %v2404 = vadd.f32 0.0, %v2403
  %v2405 = vpop.f32.mrb[0].mxu0
  %v2406 = vpop.f32.mrb[0].mxu0
  %v2407 = vpop.f32.mrb[0].mxu0
  %2408 = vdwg.mxu0
  %v2410 = vrot.slane %v2404, 2
  %v2411 = vrot.slane %v2404, 3
  %v2412 = vrot.slane %v2404, 4
  %v2413 = vrot.slane %v2404, 5
  %v2414 = vrot.slane %v2404, 6
  %v2415 = vrot.slane %v2404, 7
  %v2416 = vrot.slane %v2404, 1
  %v2425 = vadd.f32 %v127, %v2410
  %v2426 = vadd.f32 %v130, %v2411
  %v2427 = vadd.f32 %v135, %v2412
  %v2428 = vadd.f32 %v138, %v2413
  %v2429 = vadd.f32 %v143, %v2414
  %v2430 = vadd.f32 %v146, %v2415
  %v2431 = vadd.f32 %v151, %v2404
  %v2432 = vadd.f32 %v154, %v2416
  %v2433 = vxor.u32 %v2425, 2147483648
  %v2434 = vxor.u32 %v2426, 2147483648
  %v2435 = vxor.u32 %v2427, 2147483648
  %v2436 = vxor.u32 %v2428, 2147483648
  %v2437 = vxor.u32 %v2429, 2147483648
  %v2438 = vxor.u32 %v2430, 2147483648
  %v2439 = vxor.u32 %v2431, 2147483648
  %v2440 = vxor.u32 %v2432, 2147483648
  %v2441 = vmul.f32 %v2433, 1.442695
  %v2442 = vpow.pop %v2441
  %v2443 = vmul.f32 %v2434, 1.442695
  %v2444 = vpow.pop %v2443
  %v2445 = vmul.f32 %v2435, 1.442695
  %v2446 = vpow.pop %v2445
  %v2447 = vmul.f32 %v2436, 1.442695
  %v2448 = vpow.pop %v2447
  %v2449 = vmul.f32 %v2437, 1.442695
  %v2450 = vpow.pop %v2449
  %v2451 = vmul.f32 %v2438, 1.442695
  %v2452 = vpow.pop %v2451
  %v2453 = vmul.f32 %v2439, 1.442695
  %v2454 = vpow.pop %v2453
  %v2455 = vmul.f32 %v2440, 1.442695
  %v2456 = vpow.pop %v2455
  %v2457 = vadd.f32 %v2442, 1.0
  %v2458 = vadd.f32 %v2444, 1.0
  %v2459 = vadd.f32 %v2446, 1.0
  %v2460 = vadd.f32 %v2448, 1.0
  %v2461 = vadd.f32 %v2450, 1.0
  %v2462 = vadd.f32 %v2452, 1.0
  %v2463 = vadd.f32 %v2454, 1.0
  %v2464 = vadd.f32 %v2456, 1.0
  %v2465 = vrcp.pop %v2457
  %v2466 = vmul.f32 1.0, %v2465
  %v2467 = vrcp.pop %v2458
  %v2468 = vmul.f32 1.0, %v2467
  %v2469 = vrcp.pop %v2459
  %v2470 = vmul.f32 1.0, %v2469
  %v2471 = vrcp.pop %v2460
  %v2472 = vmul.f32 1.0, %v2471
  %v2473 = vrcp.pop %v2461
  %v2474 = vmul.f32 1.0, %v2473
  %v2475 = vrcp.pop %v2462
  %v2476 = vmul.f32 1.0, %v2475
  %v2477 = vrcp.pop %v2463
  %v2478 = vmul.f32 1.0, %v2477
  %v2479 = vrcp.pop %v2464
  %v2480 = vmul.f32 1.0, %v2479
  %v2481 = vtanh.pop %v2425
  %v2482 = vtanh.pop %v2426
  %v2483 = vtanh.pop %v2427
  %v2484 = vtanh.pop %v2428
  %v2485 = vtanh.pop %v2429
  %v2486 = vtanh.pop %v2430
  %v2487 = vtanh.pop %v2431
  %v2488 = vtanh.pop %v2432
  %v2497 = vrot.slane %v2228, 7
  %v2498 = vrot.slane %v2229, 7
  %v2499 = vrot.slane %v2230, 7
  %v2500 = vrot.slane %v2231, 7
  %v2501 = vrot.slane %v2232, 7
  %v2502 = vrot.slane %v2233, 7
  %v2503 = vrot.slane %v2234, 7
  %v2504 = vrot.slane %v2235, 7
  %v2513 = vmul.f32 %v2466, %v2497
  %v2514 = vmul.f32 %v2468, %v2498
  %v2515 = vmul.f32 %v2470, %v2499
  %v2516 = vmul.f32 %v2472, %v2500
  %v2517 = vmul.f32 %v2474, %v2501
  %v2518 = vmul.f32 %v2476, %v2502
  %v2519 = vmul.f32 %v2478, %v2503
  %v2520 = vmul.f32 %v2480, %v2504
  %2529 = vrot.lane.b32.xlu0 %v2481, 32
  %v2530 = vpop.permute.xlu0 %2529
  %2531 = vrot.lane.b32.xlu0 %v2482, 32
  %v2532 = vpop.permute.xlu0 %2531
  %2533 = vrot.lane.b32.xlu0 %v2483, 32
  %v2534 = vpop.permute.xlu0 %2533
  %2535 = vrot.lane.b32.xlu0 %v2484, 32
  %v2536 = vpop.permute.xlu0 %2535
  %2537 = vrot.lane.b32.xlu0 %v2485, 32
  %v2538 = vpop.permute.xlu0 %2537
  %2539 = vrot.lane.b32.xlu0 %v2486, 32
  %v2540 = vpop.permute.xlu0 %2539
  %2541 = vrot.lane.b32.xlu0 %v2487, 32
  %v2542 = vpop.permute.xlu0 %2541
  %2543 = vrot.lane.b32.xlu0 %v2488, 32
  %v2544 = vpop.permute.xlu0 %2543
  %v2553 = vmul.f32 %v2466, %v2530
  %v2554 = vmul.f32 %v2468, %v2532
  %v2555 = vmul.f32 %v2470, %v2534
  %v2556 = vmul.f32 %v2472, %v2536
  %v2557 = vmul.f32 %v2474, %v2538
  %v2558 = vmul.f32 %v2476, %v2540
  %v2559 = vmul.f32 %v2478, %v2542
  %v2560 = vmul.f32 %v2480, %v2544
  %2569 = vrot.lane.b32.xlu0 %v2553, 64
  %v2570 = vpop.permute.xlu0 %2569
  %2571 = vrot.lane.b32.xlu0 %v2554, 64
  %v2572 = vpop.permute.xlu0 %2571
  %2573 = vrot.lane.b32.xlu0 %v2555, 64
  %v2574 = vpop.permute.xlu0 %2573
  %2575 = vrot.lane.b32.xlu0 %v2556, 64
  %v2576 = vpop.permute.xlu0 %2575
  %2577 = vrot.lane.b32.xlu0 %v2557, 64
  %v2578 = vpop.permute.xlu0 %2577
  %2579 = vrot.lane.b32.xlu0 %v2558, 64
  %v2580 = vpop.permute.xlu0 %2579
  %2581 = vrot.lane.b32.xlu0 %v2559, 64
  %v2582 = vpop.permute.xlu0 %2581
  %2583 = vrot.lane.b32.xlu0 %v2560, 64
  %v2584 = vpop.permute.xlu0 %2583
  %v2593 = vadd.f32 %v2513, %v2570
  %v2594 = vadd.f32 %v2514, %v2572
  %v2595 = vadd.f32 %v2515, %v2574
  %v2596 = vadd.f32 %v2516, %v2576
  %v2597 = vadd.f32 %v2517, %v2578
  %v2598 = vadd.f32 %v2518, %v2580
  %v2599 = vadd.f32 %v2519, %v2582
  %v2600 = vadd.f32 %v2520, %v2584
  %v2601 = vtanh.pop %v2593
  %v2602 = vtanh.pop %v2594
  %v2603 = vtanh.pop %v2595
  %v2604 = vtanh.pop %v2596
  %v2605 = vtanh.pop %v2597
  %v2606 = vtanh.pop %v2598
  %v2607 = vtanh.pop %v2599
  %v2608 = vtanh.pop %v2600
  %2617 = vrot.lane.b32.xlu0 %v2601, 96
  %v2618 = vpop.permute.xlu0 %2617
  %2619 = vrot.lane.b32.xlu0 %v2602, 96
  %v2620 = vpop.permute.xlu0 %2619
  %2621 = vrot.lane.b32.xlu0 %v2603, 96
  %v2622 = vpop.permute.xlu0 %2621
  %2623 = vrot.lane.b32.xlu0 %v2604, 96
  %v2624 = vpop.permute.xlu0 %2623
  %2625 = vrot.lane.b32.xlu0 %v2605, 96
  %v2626 = vpop.permute.xlu0 %2625
  %2627 = vrot.lane.b32.xlu0 %v2606, 96
  %v2628 = vpop.permute.xlu0 %2627
  %2629 = vrot.lane.b32.xlu0 %v2607, 96
  %v2630 = vpop.permute.xlu0 %2629
  %2631 = vrot.lane.b32.xlu0 %v2608, 96
  %v2632 = vpop.permute.xlu0 %2631
  %v2641 = vmul.f32 %v2466, %v2618
  %v2642 = vmul.f32 %v2468, %v2620
  %v2643 = vmul.f32 %v2470, %v2622
  %v2644 = vmul.f32 %v2472, %v2624
  %v2645 = vmul.f32 %v2474, %v2626
  %v2646 = vmul.f32 %v2476, %v2628
  %v2647 = vmul.f32 %v2478, %v2630
  %v2648 = vmul.f32 %v2480, %v2632
  %2657 = vrot.lane.b32.xlu0 %v2641, 32
  %v2658 = vpop.permute.xlu0 %2657
  %2659 = vrot.lane.b32.xlu0 %v2642, 32
  %v2660 = vpop.permute.xlu0 %2659
  %2661 = vrot.lane.b32.xlu0 %v2643, 32
  %v2662 = vpop.permute.xlu0 %2661
  %2663 = vrot.lane.b32.xlu0 %v2644, 32
  %v2664 = vpop.permute.xlu0 %2663
  %2665 = vrot.lane.b32.xlu0 %v2645, 32
  %v2666 = vpop.permute.xlu0 %2665
  %2667 = vrot.lane.b32.xlu0 %v2646, 32
  %v2668 = vpop.permute.xlu0 %2667
  %2669 = vrot.lane.b32.xlu0 %v2647, 32
  %v2670 = vpop.permute.xlu0 %2669
  %2671 = vrot.lane.b32.xlu0 %v2648, 32
  %v2672 = vpop.permute.xlu0 %2671
  %vm2681 = vcmask 260102
  %2682 = vst.msk [vmem:[%s4] sm:$0x40] %vm2681, %v2658
  %2683 = vst.msk [vmem:[%s4 + $0x8] sm:$0x40] %vm2681, %v2660
  %2684 = vst.msk [vmem:[%s4 + $0x10] sm:$0x40] %vm2681, %v2662
  %2685 = vst.msk [vmem:[%s4 + $0x18] sm:$0x40] %vm2681, %v2664
  %2686 = vst.msk [vmem:[%s4 + $0x20] sm:$0x40] %vm2681, %v2666
  %2687 = vst.msk [vmem:[%s4 + $0x28] sm:$0x40] %vm2681, %v2668
  %2688 = vst.msk [vmem:[%s4 + $0x30] sm:$0x40] %vm2681, %v2670
  %2689 = vst.msk [vmem:[%s4 + $0x38] sm:$0x40] %vm2681, %v2672
  %v2690 = vpack.c.bf16 %v2641, %v2641
  %v2691 = vpack.c.bf16 %v2642, %v2642
  %v2692 = vpack.c.bf16 %v2643, %v2643
  %v2693 = vpack.c.bf16 %v2644, %v2644
  %v2694 = vpack.c.bf16 %v2645, %v2645
  %v2695 = vpack.c.bf16 %v2646, %v2646
  %v2696 = vpack.c.bf16 %v2647, %v2647
  %v2697 = vpack.c.bf16 %v2648, %v2648
  %v2706 = vunpack.c.l.b16 %v2690
  %v2707 = vunpack.c.l.b16 %v2691
  %v2708 = vunpack.c.l.b16 %v2692
  %v2709 = vunpack.c.l.b16 %v2693
  %v2710 = vunpack.c.l.b16 %v2694
  %v2711 = vunpack.c.l.b16 %v2695
  %v2712 = vunpack.c.l.b16 %v2696
  %v2713 = vunpack.c.l.b16 %v2697
  %v2714 = vrot.slane %v2706, 6
  %v2715 = vrot.slane %v2707, 5
  %v2716 = vsel %vm518, %v2715, %v2714
  %v2717 = vrot.slane %v2708, 4
  %v2718 = vsel %vm521, %v2717, %v2716
  %v2719 = vrot.slane %v2709, 3
  %v2720 = vsel %vm524, %v2719, %v2718
  %v2721 = vrot.slane %v2710, 2
  %v2722 = vsel %vm527, %v2721, %v2720
  %v2723 = vrot.slane %v2711, 1
  %v2724 = vsel %vm530, %v2723, %v2722
  %v2725 = vsel %vm533, %v2712, %v2724
  %v2726 = vrot.slane %v2713, 7
  %v2727 = vsel %vm536, %v2726, %v2725
  %v2728 = vpack.c.b16 %v2727, %v2727
  %2729 = vrot.lane.b32.xlu0 %v2728, 32
  %v2730 = vpop.permute.xlu0 %2729
  %v2732 = vsel %vm176, %v2730, 0
  %2734 = vmatprep.subr.bf16.mxu0 0
  %2735 = vmatpush1.bf16.msra.mxu0 %v172
  %2736 = vmatprep.subr.bf16.mxu0 0
  %2737 = vmatpush1.bf16.msra.mxu0 %v173
  %2738 = vmatprep.subr.bf16.mxu0 0
  %2739 = vmatpush1.bf16.msra.mxu0 0
  %2740 = vmatprep.subr.bf16.mxu0 0
  %2741 = vmatpush1.bf16.msra.mxu0 0
  %2742 = vmatprep.subr.bf16.mxu0 0
  %2743 = vmatpush1.bf16.msra.mxu0 0
  %2744 = vmatprep.subr.bf16.mxu0 0
  %2745 = vmatpush1.bf16.msra.mxu0 0
  %2746 = vmatprep.subr.bf16.mxu0 0
  %2747 = vmatpush1.bf16.msra.mxu0 0
  %2748 = vmatprep.subr.bf16.mxu0 0
  %2749 = vmatpush1.bf16.msra.mxu0 0
  %2750 = vmatprep.subr.bf16.mxu0 0
  %2751 = vmatpush1.bf16.msra.mxu0 0
  %2752 = vmatprep.subr.bf16.mxu0 0
  %2753 = vmatpush1.bf16.msra.mxu0 0
  %2754 = vmatprep.subr.bf16.mxu0 0
  %2755 = vmatpush1.bf16.msra.mxu0 0
  %2756 = vmatprep.subr.bf16.mxu0 0
  %2757 = vmatpush1.bf16.msra.mxu0 0
  %2758 = vmatprep.subr.bf16.mxu0 0
  %2759 = vmatpush1.bf16.msra.mxu0 0
  %2760 = vmatprep.subr.bf16.mxu0 0
  %2761 = vmatpush1.bf16.msra.mxu0 0
  %2762 = vmatprep.subr.bf16.mxu0 0
  %2763 = vmatpush1.bf16.msra.mxu0 0
  %2764 = vmatprep.subr.bf16.mxu0 0
  %2765 = vmatpush1.bf16.msra.mxu0 0
  %2766 = vmatprep.mubr.bf16.mxu0 0
  %2767 = vmatmul.mubr.bf16.gmra.mrb[0].mxu0 %v2732
  %v2768 = vpop.f32.mrb[0].mxu0
  %v2769 = vadd.f32 0.0, %v2768
  %v2770 = vpop.f32.mrb[0].mxu0
  %v2771 = vpop.f32.mrb[0].mxu0
  %v2772 = vpop.f32.mrb[0].mxu0
  %2773 = vdwg.mxu0
  %v2775 = vrot.slane %v2769, 1
  %v2776 = vrot.slane %v2769, 2
  %v2777 = vrot.slane %v2769, 3
  %v2778 = vrot.slane %v2769, 4
  %v2779 = vrot.slane %v2769, 5
  %v2780 = vrot.slane %v2769, 6
  %v2781 = vrot.slane %v2769, 7
  %v2790 = vadd.f32 %v127, %v2775
  %v2791 = vadd.f32 %v130, %v2776
  %v2792 = vadd.f32 %v135, %v2777
  %v2793 = vadd.f32 %v138, %v2778
  %v2794 = vadd.f32 %v143, %v2779
  %v2795 = vadd.f32 %v146, %v2780
  %v2796 = vadd.f32 %v151, %v2781
  %v2797 = vadd.f32 %v154, %v2769
  %v2798 = vxor.u32 %v2790, 2147483648
  %v2799 = vxor.u32 %v2791, 2147483648
  %v2800 = vxor.u32 %v2792, 2147483648
  %v2801 = vxor.u32 %v2793, 2147483648
  %v2802 = vxor.u32 %v2794, 2147483648
  %v2803 = vxor.u32 %v2795, 2147483648
  %v2804 = vxor.u32 %v2796, 2147483648
  %v2805 = vxor.u32 %v2797, 2147483648
  %v2806 = vmul.f32 %v2798, 1.442695
  %v2807 = vpow.pop %v2806
  %v2808 = vmul.f32 %v2799, 1.442695
  %v2809 = vpow.pop %v2808
  %v2810 = vmul.f32 %v2800, 1.442695
  %v2811 = vpow.pop %v2810
  %v2812 = vmul.f32 %v2801, 1.442695
  %v2813 = vpow.pop %v2812
  %v2814 = vmul.f32 %v2802, 1.442695
  %v2815 = vpow.pop %v2814
  %v2816 = vmul.f32 %v2803, 1.442695
  %v2817 = vpow.pop %v2816
  %v2818 = vmul.f32 %v2804, 1.442695
  %v2819 = vpow.pop %v2818
  %v2820 = vmul.f32 %v2805, 1.442695
  %v2821 = vpow.pop %v2820
  %v2822 = vadd.f32 %v2807, 1.0
  %v2823 = vadd.f32 %v2809, 1.0
  %v2824 = vadd.f32 %v2811, 1.0
  %v2825 = vadd.f32 %v2813, 1.0
  %v2826 = vadd.f32 %v2815, 1.0
  %v2827 = vadd.f32 %v2817, 1.0
  %v2828 = vadd.f32 %v2819, 1.0
  %v2829 = vadd.f32 %v2821, 1.0
  %v2830 = vrcp.pop %v2822
  %v2831 = vmul.f32 1.0, %v2830
  %v2832 = vrcp.pop %v2823
  %v2833 = vmul.f32 1.0, %v2832
  %v2834 = vrcp.pop %v2824
  %v2835 = vmul.f32 1.0, %v2834
  %v2836 = vrcp.pop %v2825
  %v2837 = vmul.f32 1.0, %v2836
  %v2838 = vrcp.pop %v2826
  %v2839 = vmul.f32 1.0, %v2838
  %v2840 = vrcp.pop %v2827
  %v2841 = vmul.f32 1.0, %v2840
  %v2842 = vrcp.pop %v2828
  %v2843 = vmul.f32 1.0, %v2842
  %v2844 = vrcp.pop %v2829
  %v2845 = vmul.f32 1.0, %v2844
  %v2846 = vtanh.pop %v2790
  %v2847 = vtanh.pop %v2791
  %v2848 = vtanh.pop %v2792
  %v2849 = vtanh.pop %v2793
  %v2850 = vtanh.pop %v2794
  %v2851 = vtanh.pop %v2795
  %v2852 = vtanh.pop %v2796
  %v2853 = vtanh.pop %v2797
  %v2862 = vrot.slane %v2593, 7
  %v2863 = vrot.slane %v2594, 7
  %v2864 = vrot.slane %v2595, 7
  %v2865 = vrot.slane %v2596, 7
  %v2866 = vrot.slane %v2597, 7
  %v2867 = vrot.slane %v2598, 7
  %v2868 = vrot.slane %v2599, 7
  %v2869 = vrot.slane %v2600, 7
  %v2878 = vmul.f32 %v2831, %v2862
  %v2879 = vmul.f32 %v2833, %v2863
  %v2880 = vmul.f32 %v2835, %v2864
  %v2881 = vmul.f32 %v2837, %v2865
  %v2882 = vmul.f32 %v2839, %v2866
  %v2883 = vmul.f32 %v2841, %v2867
  %v2884 = vmul.f32 %v2843, %v2868
  %v2885 = vmul.f32 %v2845, %v2869
  %2894 = vrot.lane.b32.xlu0 %v2846, 32
  %v2895 = vpop.permute.xlu0 %2894
  %2896 = vrot.lane.b32.xlu0 %v2847, 32
  %v2897 = vpop.permute.xlu0 %2896
  %2898 = vrot.lane.b32.xlu0 %v2848, 32
  %v2899 = vpop.permute.xlu0 %2898
  %2900 = vrot.lane.b32.xlu0 %v2849, 32
  %v2901 = vpop.permute.xlu0 %2900
  %2902 = vrot.lane.b32.xlu0 %v2850, 32
  %v2903 = vpop.permute.xlu0 %2902
  %2904 = vrot.lane.b32.xlu0 %v2851, 32
  %v2905 = vpop.permute.xlu0 %2904
  %2906 = vrot.lane.b32.xlu0 %v2852, 32
  %v2907 = vpop.permute.xlu0 %2906
  %2908 = vrot.lane.b32.xlu0 %v2853, 32
  %v2909 = vpop.permute.xlu0 %2908
  %v2918 = vmul.f32 %v2831, %v2895
  %v2919 = vmul.f32 %v2833, %v2897
  %v2920 = vmul.f32 %v2835, %v2899
  %v2921 = vmul.f32 %v2837, %v2901
  %v2922 = vmul.f32 %v2839, %v2903
  %v2923 = vmul.f32 %v2841, %v2905
  %v2924 = vmul.f32 %v2843, %v2907
  %v2925 = vmul.f32 %v2845, %v2909
  %2934 = vrot.lane.b32.xlu0 %v2918, 64
  %v2935 = vpop.permute.xlu0 %2934
  %2936 = vrot.lane.b32.xlu0 %v2919, 64
  %v2937 = vpop.permute.xlu0 %2936
  %2938 = vrot.lane.b32.xlu0 %v2920, 64
  %v2939 = vpop.permute.xlu0 %2938
  %2940 = vrot.lane.b32.xlu0 %v2921, 64
  %v2941 = vpop.permute.xlu0 %2940
  %2942 = vrot.lane.b32.xlu0 %v2922, 64
  %v2943 = vpop.permute.xlu0 %2942
  %2944 = vrot.lane.b32.xlu0 %v2923, 64
  %v2945 = vpop.permute.xlu0 %2944
  %2946 = vrot.lane.b32.xlu0 %v2924, 64
  %v2947 = vpop.permute.xlu0 %2946
  %2948 = vrot.lane.b32.xlu0 %v2925, 64
  %v2949 = vpop.permute.xlu0 %2948
  %v2958 = vadd.f32 %v2878, %v2935
  %v2959 = vadd.f32 %v2879, %v2937
  %v2960 = vadd.f32 %v2880, %v2939
  %v2961 = vadd.f32 %v2881, %v2941
  %v2962 = vadd.f32 %v2882, %v2943
  %v2963 = vadd.f32 %v2883, %v2945
  %v2964 = vadd.f32 %v2884, %v2947
  %v2965 = vadd.f32 %v2885, %v2949
  %v2966 = vtanh.pop %v2958
  %v2967 = vtanh.pop %v2959
  %v2968 = vtanh.pop %v2960
  %v2969 = vtanh.pop %v2961
  %v2970 = vtanh.pop %v2962
  %v2971 = vtanh.pop %v2963
  %v2972 = vtanh.pop %v2964
  %v2973 = vtanh.pop %v2965
  %2982 = vrot.lane.b32.xlu0 %v2966, 96
  %v2983 = vpop.permute.xlu0 %2982
  %2984 = vrot.lane.b32.xlu0 %v2967, 96
  %v2985 = vpop.permute.xlu0 %2984
  %2986 = vrot.lane.b32.xlu0 %v2968, 96
  %v2987 = vpop.permute.xlu0 %2986
  %2988 = vrot.lane.b32.xlu0 %v2969, 96
  %v2989 = vpop.permute.xlu0 %2988
  %2990 = vrot.lane.b32.xlu0 %v2970, 96
  %v2991 = vpop.permute.xlu0 %2990
  %2992 = vrot.lane.b32.xlu0 %v2971, 96
  %v2993 = vpop.permute.xlu0 %2992
  %2994 = vrot.lane.b32.xlu0 %v2972, 96
  %v2995 = vpop.permute.xlu0 %2994
  %2996 = vrot.lane.b32.xlu0 %v2973, 96
  %v2997 = vpop.permute.xlu0 %2996
  %v3006 = vmul.f32 %v2831, %v2983
  %v3007 = vmul.f32 %v2833, %v2985
  %v3008 = vmul.f32 %v2835, %v2987
  %v3009 = vmul.f32 %v2837, %v2989
  %v3010 = vmul.f32 %v2839, %v2991
  %v3011 = vmul.f32 %v2841, %v2993
  %v3012 = vmul.f32 %v2843, %v2995
  %v3013 = vmul.f32 %v2845, %v2997
  %3022 = vrot.lane.b32.xlu0 %v3006, 32
  %v3023 = vpop.permute.xlu0 %3022
  %3024 = vrot.lane.b32.xlu0 %v3007, 32
  %v3025 = vpop.permute.xlu0 %3024
  %3026 = vrot.lane.b32.xlu0 %v3008, 32
  %v3027 = vpop.permute.xlu0 %3026
  %3028 = vrot.lane.b32.xlu0 %v3009, 32
  %v3029 = vpop.permute.xlu0 %3028
  %3030 = vrot.lane.b32.xlu0 %v3010, 32
  %v3031 = vpop.permute.xlu0 %3030
  %3032 = vrot.lane.b32.xlu0 %v3011, 32
  %v3033 = vpop.permute.xlu0 %3032
  %3034 = vrot.lane.b32.xlu0 %v3012, 32
  %v3035 = vpop.permute.xlu0 %3034
  %3036 = vrot.lane.b32.xlu0 %v3013, 32
  %v3037 = vpop.permute.xlu0 %3036
  %vm3046 = vcmask 261127
  %3047 = vst.msk [vmem:[%s4] sm:$0x80] %vm3046, %v3023
  %3048 = vst.msk [vmem:[%s4 + $0x8] sm:$0x80] %vm3046, %v3025
  %3049 = vst.msk [vmem:[%s4 + $0x10] sm:$0x80] %vm3046, %v3027
  %3050 = vst.msk [vmem:[%s4 + $0x18] sm:$0x80] %vm3046, %v3029
  %3051 = vst.msk [vmem:[%s4 + $0x20] sm:$0x80] %vm3046, %v3031
  %3052 = vst.msk [vmem:[%s4 + $0x28] sm:$0x80] %vm3046, %v3033
  %3053 = vst.msk [vmem:[%s4 + $0x30] sm:$0x80] %vm3046, %v3035
  %3054 = vst.msk [vmem:[%s4 + $0x38] sm:$0x80] %vm3046, %v3037
  %v3055 = vrot.slane %v3007, 7
  %v3056 = vrot.slane %v3008, 6
  %v3057 = vsel %vm518, %v3056, %v3055
  %v3058 = vrot.slane %v3009, 5
  %v3059 = vsel %vm521, %v3058, %v3057
  %v3060 = vrot.slane %v3010, 4
  %v3061 = vsel %vm524, %v3060, %v3059
  %v3062 = vrot.slane %v3011, 3
  %v3063 = vsel %vm527, %v3062, %v3061
  %v3064 = vrot.slane %v3012, 2
  %v3065 = vsel %vm530, %v3064, %v3063
  %v3066 = vrot.slane %v3013, 1
  %v3067 = vsel %vm533, %v3066, %v3065
  %3068 = vrot.lane.b32.xlu0 %v3067, 32
  %v3069 = vpop.permute.xlu0 %3068
  %3071 = vst.msk [vmem:[#allocation2 - $0x7] sm:$0x80] %vm3046, %v3023
  %vm3072 = vcmask 260096
  %3073 = vst.msk [vmem:[#allocation2 + $0x1] sm:$0x7f] %vm3072, %v3069
  %v3082 = vrot.slane %v2959, 7
  %v3083 = vrot.slane %v2960, 6
  %v3084 = vsel %vm518, %v3083, %v3082
  %v3085 = vrot.slane %v2961, 5
  %v3086 = vsel %vm521, %v3085, %v3084
  %v3087 = vrot.slane %v2962, 4
  %v3088 = vsel %vm524, %v3087, %v3086
  %v3089 = vrot.slane %v2963, 3
  %v3090 = vsel %vm527, %v3089, %v3088
  %v3091 = vrot.slane %v2964, 2
  %v3092 = vsel %vm530, %v3091, %v3090
  %v3093 = vrot.slane %v2965, 1
  %v3094 = vsel %vm533, %v3093, %v3092
  %3097 = vst.msk [vmem:[#allocation3 - $0x7] sm:$0x80] %vm3046, %v2958
  %3098 = vst.msk [vmem:[#allocation3 + $0x1] sm:$0x7f] %vm3072, %v3094
  // Predicated region
  $region22: #{lstm_forward.2} parent=0 // pred_check
    %p3099 = pneg %p21
  $region23: #{lstm_forward.2} parent=0 // pred_check_branch
    %3101 = sbr.rel (%p3099) target = $region25
  $region24: #{lstm_forward.2} parent=0 // pred_region
    %3102 = vst.msk [vmem:[%s5 - $0x7] sm:$0x80] %vm3046, %v3023
    %3103 = vst.msk [vmem:[%s5 + $0x1] sm:$0x7f] %vm3072, %v3069
    %3104 = vst.msk [vmem:[%s6 - $0x7] sm:$0x80] %vm3046, %v2958
    %3105 = vst.msk [vmem:[%s6 + $0x1] sm:$0x7f] %vm3072, %v3094
  $region25: #{lstm_forward.2} parent=0 // pred_fallthru
    _
  // Predicated region
  $region26: #{lstm_forward.2} parent=0 // pred_check
    _
  $region27: #{lstm_forward.2} parent=0 // pred_check_branch
    %3107 = sbr.rel (0) target = $region29
  $region28: #{lstm_forward.2} parent=0 // pred_region
    _
  $region29: #{lstm_forward.2} parent=0 // pred_fallthru
    _
  // Predicated region
  $region30: #{lstm_forward.2} parent=0 // pred_check
    _
  $region31: #{lstm_forward.2} parent=0 // pred_check_branch
    %3109 = sbr.rel (0) target = $region33
  $region32: #{lstm_forward.2} parent=0 // pred_region
    _
  $region33: #{lstm_forward.2} parent=0 // pred_fallthru
    _
  // Predicated region
  $region34: #{lstm_forward.2} parent=0 // pred_check
    _
  $region35: #{lstm_forward.2} parent=0 // pred_check_branch
    %3111 = sbr.rel (0) target = $region37
  $region36: #{lstm_forward.2} parent=0 // pred_region
    _
  $region37: #{lstm_forward.2} parent=0 // pred_fallthru
    _
  // Predicated region
  $region38: #{lstm_forward.2} parent=0 // pred_check
    _
  $region39: #{lstm_forward.2} parent=0 // pred_check_branch
    %3113 = sbr.rel (0) target = $region41
  $region40: #{lstm_forward.2} parent=0 // pred_region
    _
  $region41: #{lstm_forward.2} parent=0 // pred_fallthru
    _
  // Predicated region
  $region42: #{lstm_forward.2} parent=0 // pred_check
    _
  $region43: #{lstm_forward.2} parent=0 // pred_check_branch
    %3115 = sbr.rel (0) target = $region45
  $region44: #{lstm_forward.2} parent=0 // pred_region
    _
  $region45: #{lstm_forward.2} parent=0 // pred_fallthru
    _
  // Predicated region
  $region46: #{lstm_forward.2} parent=0 // pred_check
    _
  $region47: #{lstm_forward.2} parent=0 // pred_check_branch
    %3117 = sbr.rel (0) target = $region49
  $region48: #{lstm_forward.2} parent=0 // pred_region
    _
  $region49: #{lstm_forward.2} parent=0 // pred_fallthru
    _

</llo_original>
